<compile_context>
chip_gen: v5e
topology: v5e:2x2
jax: 0.10.0
libtpu: 0.0.40
codegen_flags: <defaults>
</compile_context>

<pallas_src>
import functools
import math

import numpy as np
import jax
import jax.numpy as jnp
from jax import lax
from jax.experimental import pallas as pl
from jax.experimental.pallas import tpu as pltpu


# ----------------------------------------------------------------------------
# small helpers
# ----------------------------------------------------------------------------
def _round_up(x, m):
    return ((x + m - 1) // m) * m


def _choose_time_tile(t, max_tile):
    """Pick a time tile TT (multiple of 128, <= max_tile) and padded length."""
    t128 = _round_up(max(int(t), 1), 128)
    n_tiles = max(1, -(-t128 // max_tile))
    tt = _round_up(-(-t128 // n_tiles), 128)
    return tt, tt * n_tiles


# ----------------------------------------------------------------------------
# Phase-matrix construction: a strided 'valid' conv stack (total stride S) applied to
# S-sample frames becomes, per layer, a sum over a few SHIFTS of
#   frames[shift : shift + n, :] @ M_shift
# where M packs (input-phase, input-channel) -> (output-phase, output-channel).
# ----------------------------------------------------------------------------
def _build_phase_matrix(w, p_in, stride):
    """w: (C_out, C_in, K) conv weight; p_in: input phases per frame; stride: conv stride."""
    c_out, c_in, k = w.shape
    assert p_in % stride == 0
    p_out = p_in // stride
    n_shift = -(-(p_in - stride + k) // p_in)
    rows = p_in * c_in                       # rows per shift
    m = np.zeros((n_shift * rows, p_out * c_out), np.float32)
    for q in range(p_out):
        for r in range(n_shift * p_in):
            j = r - stride * q
            if 0 <= j < k:
                shift, s_in = divmod(r, p_in)
                row0 = shift * rows + s_in * c_in
                m[row0:row0 + c_in, q * c_out:(q + 1) * c_out] = np.asarray(w)[:, :, j].T
    return m, n_shift, p_out, rows


# ----------------------------------------------------------------------------
# Pallas kernel 1: fully fused conv encoder over one halo'd time tile.
# ----------------------------------------------------------------------------
def _fused_encoder_kernel(x_ref, *rest, layer_cfg, tt):
    """x_ref: (1, 1, F, S) raw-audio frames (F = tt + halo_pad frames of S samples).
    rest: n_layers phase-matrix refs, n_layers bias refs, then the output ref.
    layer_cfg: tuple of (n_shift, rows_per_shift, apply_elu) per layer (static)."""
    n_layers = len(layer_cfg)
    m_refs = rest[:n_layers]
    b_refs = rest[n_layers:2 * n_layers]
    o_ref = rest[2 * n_layers]

    a = x_ref[0, 0].astype(jnp.bfloat16)                 # (F, S) frame-major
    out = None
    for li, (n_shift, rows, apply_elu) in enumerate(layer_cfg):
        m = m_refs[li][...]                               # (n_shift*rows, C_lanes) bf16
        n = a.shape[0] - (n_shift - 1)
        acc = jnp.zeros((n, m.shape[1]), jnp.float32)
        for s in range(n_shift):                          # unit-stride sublane slices only
            acc = acc + jnp.dot(a[s:s + n, :], m[s * rows:(s + 1) * rows, :],
                                preferred_element_type=jnp.float32)
        acc = acc + b_refs[li][...]                       # (1, C_lanes) bias
        if apply_elu:
            # clamp before exp so a later bf16 cast never sees an overflowed positive branch
            acc = jnp.where(acc > 0.0, acc, jnp.exp(jnp.minimum(acc, 0.0)) - 1.0)
        if li + 1 < n_layers:
            a = acc.astype(jnp.bfloat16)
        else:
            out = acc
    o_ref[0] = out[:tt, :].astype(o_ref.dtype)            # (tt, D) frame-major embedding


def encoder_forward(x, prep, tt, t_pad):
    """x: (B, L) mono 24 kHz audio.  Returns emb (B, t_pad, D) bf16 (frame-major)."""
    # TODO(synk): PyTorch EnCodec convs use causal/reflect padding; 'valid' conv here.
    bsz, length = x.shape
    stride = prep["total_stride"]
    halo_pad = prep["halo_pad"]
    d = prep["emb_dim"]
    n_t = t_pad // tt
    frames_total = t_pad + halo_pad

    x_pad = jnp.pad(x, ((0, 0), (0, stride * frames_total - length)))
    frames = x_pad.reshape(bsz, frames_total, stride)                       # (B, F_total, S)
    # halo'd (overlapping) tiles of the tiny raw-audio frames: all conv activations stay
    # in VMEM inside the single fused kernel below.
    tiles = jnp.stack(
        [lax.slice_in_dim(frames, i * tt, i * tt + tt + halo_pad, axis=1) for i in range(n_t)],
        axis=1)                                                             # (B, n_t, tt+halo, S)

    mats, biases = prep["mats"], prep["biases"]
    kernel = functools.partial(_fused_encoder_kernel, layer_cfg=prep["layer_cfg"], tt=tt)
    in_specs = [pl.BlockSpec((1, 1, tt + halo_pad, stride), lambda bi, ti: (bi, ti, 0, 0))]
    in_specs += [pl.BlockSpec(m.shape, lambda bi, ti: (0, 0)) for m in mats]
    in_specs += [pl.BlockSpec(b.shape, lambda bi, ti: (0, 0)) for b in biases]

    return pl.pallas_call(
        kernel,
        out_shape=jax.ShapeDtypeStruct((bsz, t_pad, d), jnp.bfloat16),
        grid_spec=pltpu.PrefetchScalarGridSpec(
            num_scalar_prefetch=0,
            grid=(bsz, n_t),
            in_specs=in_specs,
            out_specs=pl.BlockSpec((1, tt, d), lambda bi, ti: (bi, ti, 0)),
        ),
        compiler_params=pltpu.CompilerParams(
            dimension_semantics=("parallel", "parallel"),
            vmem_limit_bytes=48 * 1024 * 1024,
        ),
    )(tiles, *mats, *biases)


# ----------------------------------------------------------------------------
# Pallas kernel 2: residual vector quantization
#   grid = (B, T_tiles, Q); batch/time parallel, Q innermost "arbitrary".
#   per-quantizer codebook slice resident in VMEM; residual scratch persists across Q.
# ----------------------------------------------------------------------------
def _rvq_kernel(emb_ref, cb_ref, cbsq_ref, codes_ref, res_ref):
    qi = pl.program_id(2)

    @pl.when(qi == 0)
    def _():
        res_ref[...] = emb_ref[0].astype(jnp.float32)         # (TT, D) residual

    res = res_ref[...]                                         # (TT, D) f32
    cb = cb_ref[0]                                             # (N, D)  bf16
    n = cb.shape[0]

    # squared-L2 argmin (||res||^2 constant per frame -> dropped); bf16 MXU, f32 accumulate
    scores = cbsq_ref[0] - 2.0 * lax.dot_general(
        cb, res.astype(jnp.bfloat16), (((1,), (1,)), ((), ())),
        preferred_element_type=jnp.float32)                    # (N, TT)
    min_s = jnp.min(scores, axis=0, keepdims=True)             # (1, TT)
    iota = lax.broadcasted_iota(jnp.int32, scores.shape, 0)    # (N, TT)
    idx = jnp.min(jnp.where(scores <= min_s, iota, n), axis=0, keepdims=True)

    codes_ref[...] = idx[None, None, :, :].astype(jnp.int32)   # (1, 1, 1, TT) lane-dense

    # gather selected codewords via one-hot matmul on the SAME codebook slice (no cb^T copy)
    one_hot = (iota == idx).astype(jnp.bfloat16)               # (N, TT)
    quant = lax.dot_general(one_hot, cb, (((0,), (0,)), ((), ())),
                            preferred_element_type=jnp.float32)  # (TT, D)
    res_ref[...] = res - quant


def rvq_encode(emb, prep, tt):
    """emb: (B, T_pad, D) bf16; returns codes (B, Q, T_pad) int32."""
    bsz, t_pad, d = emb.shape
    cb = prep["codebooks"]            # (Q, N, D) bf16
    cb_sq = prep["codebooks_sq"]      # (Q, N, 1) f32
    q, n, _ = cb.shape
    n_t = t_pad // tt

    codes4 = pl.pallas_call(
        _rvq_kernel,
        out_shape=jax.ShapeDtypeStruct((bsz, q, 1, t_pad), jnp.int32),
        grid_spec=pltpu.PrefetchScalarGridSpec(
            num_scalar_prefetch=0,
            grid=(bsz, n_t, q),
            in_specs=[
                pl.BlockSpec((1, tt, d), lambda bi, ti, qi: (bi, ti, 0)),   # emb, invariant over Q
                pl.BlockSpec((1, n, d), lambda bi, ti, qi: (qi, 0, 0)),     # per-q codebook slice
                pl.BlockSpec((1, n, 1), lambda bi, ti, qi: (qi, 0, 0)),     # per-q row norms
            ],
            out_specs=pl.BlockSpec((1, 1, 1, tt), lambda bi, ti, qi: (bi, qi, 0, ti)),
            scratch_shapes=[pltpu.VMEM((tt, d), jnp.float32)],
        ),
        compiler_params=pltpu.CompilerParams(
            dimension_semantics=("parallel", "parallel", "arbitrary"),
            vmem_limit_bytes=48 * 1024 * 1024,
        ),
    )(emb, cb, cb_sq)
    return codes4[:, :, 0, :]


# ----------------------------------------------------------------------------
# Glue: polyphase resample + parameter preparation + full batched encode() path
# ----------------------------------------------------------------------------
def resample_linear(x, in_freq, out_freq):
    """Polyphase linear-interpolation resampler: static per-phase weights applied via
    strided slices + weighted adds (no gather)."""
    # TODO(synk): torchaudio.functional.resample uses windowed-sinc interpolation;
    # a linear-interpolation approximation is used here (plain JAX glue).
    if in_freq == out_freq:
        return x
    length = x.shape[-1]
    g = math.gcd(int(in_freq), int(out_freq))
    up, down = out_freq // g, in_freq // g
    out_len = length * out_freq // in_freq
    n_u = -(-out_len // up)
    need = n_u * down + 1
    pad = max(0, need - length)
    xp = jnp.concatenate([x, jnp.repeat(x[..., -1:], pad, axis=-1)], axis=-1) if pad else x
    phases = []
    for p in range(up):
        off = (p * down) // up
        frac = (p * down) / up - off
        limit = (n_u - 1) * down + 1
        a = lax.slice_in_dim(xp, off, off + limit, stride=down, axis=-1)
        b = lax.slice_in_dim(xp, off + 1, off + 1 + limit, stride=down, axis=-1)
        phases.append((1.0 - frac) * a + frac * b)
    out = jnp.stack(phases, axis=-1).reshape(*x.shape[:-1], n_u * up)
    return out[..., :out_len]


def make_params(key):
    """Deterministic synthetic EnCodec-style encoder + RVQ codebooks."""
    # (C_out, C_in, K, stride, apply_elu) — small stand-in for the 24kHz encoder stack
    layer_cfg = [
        (16, 1, 4, 2, True),
        (32, 16, 4, 2, True),
        (64, 32, 4, 2, True),
        (64, 64, 3, 1, False),   # final projection to embedding dim D=64
    ]
    convs = []
    for i, (c_out, c_in, k, s, act) in enumerate(layer_cfg):
        kw, kb = jax.random.split(jax.random.fold_in(key, i))
        w = jax.random.normal(kw, (c_out, c_in, k), jnp.float32) / jnp.sqrt(c_in * k)
        b = 0.01 * jax.random.normal(kb, (c_out,), jnp.float32)
        convs.append((w, b, s, act))

    num_quantizers, codebook_size, d = 8, 64, 64
    codebooks = jax.random.normal(
        jax.random.fold_in(key, 100), (num_quantizers, codebook_size, d), jnp.float32
    )
    # TODO(synk): real EnCodec encoder also has an LSTM and residual units; omitted here.
    return {"convs": convs, "codebooks": codebooks}


def prepare_params(params):
    """One-time (outside jit) conversion of conv weights into phase matrices + bf16 codebooks."""
    convs = params["convs"]
    total_stride = 1
    for (_, _, s, _) in convs:
        total_stride *= s

    mats, biases, layer_cfg, ks = [], [], [], []
    p_in, halo = total_stride, 0
    for (w, b, s, act) in convs:
        w_np = np.asarray(w, np.float32)
        b_np = np.asarray(b, np.float32)
        m, n_shift, p_out, rows = _build_phase_matrix(w_np, p_in, s)
        mats.append(jnp.asarray(m, dtype=jnp.bfloat16))
        biases.append(jnp.asarray(np.tile(b_np, p_out)[None, :], dtype=jnp.float32))
        layer_cfg.append((n_shift, rows, bool(act)))
        ks.append((int(w_np.shape[2]), int(s)))
        halo += n_shift - 1
        p_in = p_out
    assert p_in == 1, "conv stack must reduce to one output phase per frame"

    cb = jnp.asarray(params["codebooks"], jnp.float32).astype(jnp.bfloat16)      # (Q, N, D)
    cb_sq = jnp.sum(cb.astype(jnp.float32) ** 2, axis=-1, keepdims=True)         # (Q, N, 1)
    return dict(
        mats=mats, biases=biases, layer_cfg=tuple(layer_cfg), ks=tuple(ks),
        total_stride=total_stride, halo_pad=_round_up(max(halo, 1), 8),
        emb_dim=int(convs[-1][0].shape[0]), codebooks=cb, codebooks_sq=cb_sq,
    )


def encodec_encode(input_values, prep, in_sample_freq=16000, coarse_quantizers=4,
                   max_tile_t=1024):
    """Mirrors Encodec.encode(): encode, split coarse/fine codes per quantizer, flatten.

    input_values: (B, 1, L) float32 (PyTorch NCL audio layout)
    returns (coarse (B, 4*T), fine (B, (Q-4)*T), audio_scales list)
    """
    target_freq = 24000  # facebook/encodec_24khz sampling rate
    bsz = input_values.shape[0]

    x = resample_linear(input_values, in_sample_freq, target_freq)       # (B, 1, L')
    x = x[:, 0, :].astype(jnp.float32)                                   # mono (B, L')

    t = x.shape[-1]
    for (k, s) in prep["ks"]:
        t = (t - k) // s + 1
    t_out = int(t)
    assert t_out >= 1, "input audio too short for the conv stack"

    tt, t_pad = _choose_time_tile(t_out, max_tile_t)
    emb = encoder_forward(x, prep, tt, t_pad)                            # (B, t_pad, D) bf16
    codes = rvq_encode(emb, prep, tt)[:, :, :t_out]                      # (B, Q, T) int32

    num_q = codes.shape[1]
    fine_q = num_q - coarse_quantizers
    coarse = codes[:, :coarse_quantizers].reshape(bsz, coarse_quantizers * t_out)
    fine = codes[:, coarse_quantizers:].reshape(bsz, fine_q * t_out)
    audio_scales = [None] * bsz  # bandwidth=6 / no normalization -> scales are None
    return coarse, fine, audio_scales


if __name__ == "__main__":
    key = jax.random.PRNGKey(0)
    params = make_params(key)
    prepared = prepare_params(params)

    # small deterministic "audio": batch=2, channels=1, 256 samples @ 16 kHz
    audio = jax.random.normal(jax.random.fold_in(key, 999), (2, 1, 256), jnp.float32)

    encode = jax.jit(lambda a: encodec_encode(a, prepared))
    coarse, fine, scales = encode(audio)
    coarse = jax.block_until_ready(coarse)
    fine = jax.block_until_ready(fine)

    assert coarse.shape[0] == 2 and fine.shape[0] == 2
    assert coarse.dtype == jnp.int32 and fine.dtype == jnp.int32
    assert int(coarse.max()) < params["codebooks"].shape[1]
    assert int(fine.max()) < params["codebooks"].shape[1]
    assert int(coarse.min()) >= 0 and int(fine.min()) >= 0
    print("KERNEL_OK")
</pallas_src>

<mosaic_0001>
module attributes {stable_mosaic.version = 11 : i64} {
  func.func @_fused_encoder_kernel(%arg0: i32, %arg1: i32, %arg2: memref<1x1x136x8xf32, #tpu.memory_space<vmem>>, %arg3: memref<16x64xbf16, #tpu.memory_space<vmem>>, %arg4: memref<128x64xbf16, #tpu.memory_space<vmem>>, %arg5: memref<128x64xbf16, #tpu.memory_space<vmem>>, %arg6: memref<192x64xbf16, #tpu.memory_space<vmem>>, %arg7: memref<1x64xf32, #tpu.memory_space<vmem>>, %arg8: memref<1x64xf32, #tpu.memory_space<vmem>>, %arg9: memref<1x64xf32, #tpu.memory_space<vmem>>, %arg10: memref<1x64xf32, #tpu.memory_space<vmem>>, %arg11: memref<1x128x64xbf16, #tpu.memory_space<vmem>>) attributes {dimension_semantics = [#tpu.dimension_semantics<parallel>, #tpu.dimension_semantics<parallel>], iteration_bounds = array<i64: 2, 1>, scalar_prefetch = 0 : i64, scratch_operands = 0 : i64, tpu.core_type = #tpu.core_type<tc>, window_params = [{transform_indices = @transform_0, window_bounds = array<i64: 1, 1, 136, 8>}, {pipeline_mode = #tpu.pipeline_mode<synchronous>, transform_indices = @transform_1, window_bounds = array<i64: 16, 64>}, {pipeline_mode = #tpu.pipeline_mode<synchronous>, transform_indices = @transform_2, window_bounds = array<i64: 128, 64>}, {pipeline_mode = #tpu.pipeline_mode<synchronous>, transform_indices = @transform_3, window_bounds = array<i64: 128, 64>}, {pipeline_mode = #tpu.pipeline_mode<synchronous>, transform_indices = @transform_4, window_bounds = array<i64: 192, 64>}, {pipeline_mode = #tpu.pipeline_mode<synchronous>, transform_indices = @transform_5, window_bounds = array<i64: 1, 64>}, {pipeline_mode = #tpu.pipeline_mode<synchronous>, transform_indices = @transform_6, window_bounds = array<i64: 1, 64>}, {pipeline_mode = #tpu.pipeline_mode<synchronous>, transform_indices = @transform_7, window_bounds = array<i64: 1, 64>}, {pipeline_mode = #tpu.pipeline_mode<synchronous>, transform_indices = @transform_8, window_bounds = array<i64: 1, 64>}, {transform_indices = @transform_9, window_bounds = array<i64: 1, 128, 64>}]} {
    %c0 = arith.constant 0 : index
    %c0_0 = arith.constant 0 : index
    %c0_1 = arith.constant 0 : index
    %c0_2 = arith.constant 0 : index
    %0 = vector.load %arg2[%c0, %c0_0, %c0_1, %c0_2] : memref<1x1x136x8xf32, #tpu.memory_space<vmem>>, vector<1x1x136x8xf32>
    %1 = vector.shape_cast %0 : vector<1x1x136x8xf32> to vector<136x8xf32>
    %2 = arith.truncf %1 : vector<136x8xf32> to vector<136x8xbf16>
    %c0_3 = arith.constant 0 : index
    %c0_4 = arith.constant 0 : index
    %3 = vector.load %arg3[%c0_3, %c0_4] : memref<16x64xbf16, #tpu.memory_space<vmem>>, vector<16x64xbf16>
    %cst = arith.constant 0.000000e+00 : f32
    %4 = vector.broadcast %cst : f32 to vector<135x64xf32>
    %5 = vector.extract_strided_slice %2 {offsets = [0, 0], sizes = [135, 8], strides = [1, 1]} : vector<136x8xbf16> to vector<135x8xbf16>
    %6 = vector.extract_strided_slice %3 {offsets = [0, 0], sizes = [8, 64], strides = [1, 1]} : vector<16x64xbf16> to vector<8x64xbf16>
    %cst_5 = arith.constant dense<0.000000e+00> : vector<135x64xf32>
    %7 = tpu.matmul %5, %6, %cst_5 {dimension_numbers = #tpu.dot_dimension_numbers<[1], [0], [0], [1], [0, 0, 1, 1], [], []>} : vector<135x8xbf16>, vector<8x64xbf16>, vector<135x64xf32> -> vector<135x64xf32>
    %8 = arith.addf %4, %7 : vector<135x64xf32>
    %9 = vector.extract_strided_slice %2 {offsets = [1, 0], sizes = [135, 8], strides = [1, 1]} : vector<136x8xbf16> to vector<135x8xbf16>
    %10 = vector.extract_strided_slice %3 {offsets = [8, 0], sizes = [8, 64], strides = [1, 1]} : vector<16x64xbf16> to vector<8x64xbf16>
    %cst_6 = arith.constant dense<0.000000e+00> : vector<135x64xf32>
    %11 = tpu.matmul %9, %10, %cst_6 {dimension_numbers = #tpu.dot_dimension_numbers<[1], [0], [0], [1], [0, 0, 1, 1], [], []>} : vector<135x8xbf16>, vector<8x64xbf16>, vector<135x64xf32> -> vector<135x64xf32>
    %12 = arith.addf %8, %11 : vector<135x64xf32>
    %c0_7 = arith.constant 0 : index
    %c0_8 = arith.constant 0 : index
    %13 = vector.load %arg7[%c0_7, %c0_8] : memref<1x64xf32, #tpu.memory_space<vmem>>, vector<1x64xf32>
    %14 = vector.broadcast %13 : vector<1x64xf32> to vector<135x64xf32>
    %15 = arith.addf %12, %14 : vector<135x64xf32>
    %cst_9 = arith.constant 0.000000e+00 : f32
    %16 = vector.broadcast %cst_9 : f32 to vector<135x64xf32>
    %17 = arith.cmpf ogt, %15, %16 : vector<135x64xf32>
    %cst_10 = arith.constant 0.000000e+00 : f32
    %18 = vector.broadcast %cst_10 : f32 to vector<135x64xf32>
    %19 = arith.minimumf %15, %18 : vector<135x64xf32>
    %20 = math.exp %19 : vector<135x64xf32>
    %cst_11 = arith.constant 1.000000e+00 : f32
    %21 = vector.broadcast %cst_11 : f32 to vector<135x64xf32>
    %22 = arith.subf %20, %21 : vector<135x64xf32>
    %23 = arith.select %17, %15, %22 : vector<135x64xi1>, vector<135x64xf32>
    %24 = arith.truncf %23 : vector<135x64xf32> to vector<135x64xbf16>
    %c0_12 = arith.constant 0 : index
    %c0_13 = arith.constant 0 : index
    %25 = vector.load %arg4[%c0_12, %c0_13] : memref<128x64xbf16, #tpu.memory_space<vmem>>, vector<128x64xbf16>
    %cst_14 = arith.constant 0.000000e+00 : f32
    %26 = vector.broadcast %cst_14 : f32 to vector<134x64xf32>
    %27 = vector.extract_strided_slice %24 {offsets = [0, 0], sizes = [134, 64], strides = [1, 1]} : vector<135x64xbf16> to vector<134x64xbf16>
    %28 = vector.extract_strided_slice %25 {offsets = [0, 0], sizes = [64, 64], strides = [1, 1]} : vector<128x64xbf16> to vector<64x64xbf16>
    %cst_15 = arith.constant dense<0.000000e+00> : vector<134x64xf32>
    %29 = tpu.matmul %27, %28, %cst_15 {dimension_numbers = #tpu.dot_dimension_numbers<[1], [0], [0], [1], [0, 0, 1, 1], [], []>} : vector<134x64xbf16>, vector<64x64xbf16>, vector<134x64xf32> -> vector<134x64xf32>
    %30 = arith.addf %26, %29 : vector<134x64xf32>
    %31 = vector.extract_strided_slice %24 {offsets = [1, 0], sizes = [134, 64], strides = [1, 1]} : vector<135x64xbf16> to vector<134x64xbf16>
    %32 = vector.extract_strided_slice %25 {offsets = [64, 0], sizes = [64, 64], strides = [1, 1]} : vector<128x64xbf16> to vector<64x64xbf16>
    %cst_16 = arith.constant dense<0.000000e+00> : vector<134x64xf32>
    %33 = tpu.matmul %31, %32, %cst_16 {dimension_numbers = #tpu.dot_dimension_numbers<[1], [0], [0], [1], [0, 0, 1, 1], [], []>} : vector<134x64xbf16>, vector<64x64xbf16>, vector<134x64xf32> -> vector<134x64xf32>
    %34 = arith.addf %30, %33 : vector<134x64xf32>
    %c0_17 = arith.constant 0 : index
    %c0_18 = arith.constant 0 : index
    %35 = vector.load %arg8[%c0_17, %c0_18] : memref<1x64xf32, #tpu.memory_space<vmem>>, vector<1x64xf32>
    %36 = vector.broadcast %35 : vector<1x64xf32> to vector<134x64xf32>
    %37 = arith.addf %34, %36 : vector<134x64xf32>
    %cst_19 = arith.constant 0.000000e+00 : f32
    %38 = vector.broadcast %cst_19 : f32 to vector<134x64xf32>
    %39 = arith.cmpf ogt, %37, %38 : vector<134x64xf32>
    %cst_20 = arith.constant 0.000000e+00 : f32
    %40 = vector.broadcast %cst_20 : f32 to vector<134x64xf32>
    %41 = arith.minimumf %37, %40 : vector<134x64xf32>
    %42 = math.exp %41 : vector<134x64xf32>
    %cst_21 = arith.constant 1.000000e+00 : f32
    %43 = vector.broadcast %cst_21 : f32 to vector<134x64xf32>
    %44 = arith.subf %42, %43 : vector<134x64xf32>
    %45 = arith.select %39, %37, %44 : vector<134x64xi1>, vector<134x64xf32>
    %46 = arith.truncf %45 : vector<134x64xf32> to vector<134x64xbf16>
    %c0_22 = arith.constant 0 : index
    %c0_23 = arith.constant 0 : index
    %47 = vector.load %arg5[%c0_22, %c0_23] : memref<128x64xbf16, #tpu.memory_space<vmem>>, vector<128x64xbf16>
    %cst_24 = arith.constant 0.000000e+00 : f32
    %48 = vector.broadcast %cst_24 : f32 to vector<133x64xf32>
    %49 = vector.extract_strided_slice %46 {offsets = [0, 0], sizes = [133, 64], strides = [1, 1]} : vector<134x64xbf16> to vector<133x64xbf16>
    %50 = vector.extract_strided_slice %47 {offsets = [0, 0], sizes = [64, 64], strides = [1, 1]} : vector<128x64xbf16> to vector<64x64xbf16>
    %cst_25 = arith.constant dense<0.000000e+00> : vector<133x64xf32>
    %51 = tpu.matmul %49, %50, %cst_25 {dimension_numbers = #tpu.dot_dimension_numbers<[1], [0], [0], [1], [0, 0, 1, 1], [], []>} : vector<133x64xbf16>, vector<64x64xbf16>, vector<133x64xf32> -> vector<133x64xf32>
    %52 = arith.addf %48, %51 : vector<133x64xf32>
    %53 = vector.extract_strided_slice %46 {offsets = [1, 0], sizes = [133, 64], strides = [1, 1]} : vector<134x64xbf16> to vector<133x64xbf16>
    %54 = vector.extract_strided_slice %47 {offsets = [64, 0], sizes = [64, 64], strides = [1, 1]} : vector<128x64xbf16> to vector<64x64xbf16>
    %cst_26 = arith.constant dense<0.000000e+00> : vector<133x64xf32>
    %55 = tpu.matmul %53, %54, %cst_26 {dimension_numbers = #tpu.dot_dimension_numbers<[1], [0], [0], [1], [0, 0, 1, 1], [], []>} : vector<133x64xbf16>, vector<64x64xbf16>, vector<133x64xf32> -> vector<133x64xf32>
    %56 = arith.addf %52, %55 : vector<133x64xf32>
    %c0_27 = arith.constant 0 : index
    %c0_28 = arith.constant 0 : index
    %57 = vector.load %arg9[%c0_27, %c0_28] : memref<1x64xf32, #tpu.memory_space<vmem>>, vector<1x64xf32>
    %58 = vector.broadcast %57 : vector<1x64xf32> to vector<133x64xf32>
    %59 = arith.addf %56, %58 : vector<133x64xf32>
    %cst_29 = arith.constant 0.000000e+00 : f32
    %60 = vector.broadcast %cst_29 : f32 to vector<133x64xf32>
    %61 = arith.cmpf ogt, %59, %60 : vector<133x64xf32>
    %cst_30 = arith.constant 0.000000e+00 : f32
    %62 = vector.broadcast %cst_30 : f32 to vector<133x64xf32>
    %63 = arith.minimumf %59, %62 : vector<133x64xf32>
    %64 = math.exp %63 : vector<133x64xf32>
    %cst_31 = arith.constant 1.000000e+00 : f32
    %65 = vector.broadcast %cst_31 : f32 to vector<133x64xf32>
    %66 = arith.subf %64, %65 : vector<133x64xf32>
    %67 = arith.select %61, %59, %66 : vector<133x64xi1>, vector<133x64xf32>
    %68 = arith.truncf %67 : vector<133x64xf32> to vector<133x64xbf16>
    %c0_32 = arith.constant 0 : index
    %c0_33 = arith.constant 0 : index
    %69 = vector.load %arg6[%c0_32, %c0_33] : memref<192x64xbf16, #tpu.memory_space<vmem>>, vector<192x64xbf16>
    %cst_34 = arith.constant 0.000000e+00 : f32
    %70 = vector.broadcast %cst_34 : f32 to vector<131x64xf32>
    %71 = vector.extract_strided_slice %68 {offsets = [0, 0], sizes = [131, 64], strides = [1, 1]} : vector<133x64xbf16> to vector<131x64xbf16>
    %72 = vector.extract_strided_slice %69 {offsets = [0, 0], sizes = [64, 64], strides = [1, 1]} : vector<192x64xbf16> to vector<64x64xbf16>
    %cst_35 = arith.constant dense<0.000000e+00> : vector<131x64xf32>
    %73 = tpu.matmul %71, %72, %cst_35 {dimension_numbers = #tpu.dot_dimension_numbers<[1], [0], [0], [1], [0, 0, 1, 1], [], []>} : vector<131x64xbf16>, vector<64x64xbf16>, vector<131x64xf32> -> vector<131x64xf32>
    %74 = arith.addf %70, %73 : vector<131x64xf32>
    %75 = vector.extract_strided_slice %68 {offsets = [1, 0], sizes = [131, 64], strides = [1, 1]} : vector<133x64xbf16> to vector<131x64xbf16>
    %76 = vector.extract_strided_slice %69 {offsets = [64, 0], sizes = [64, 64], strides = [1, 1]} : vector<192x64xbf16> to vector<64x64xbf16>
    %cst_36 = arith.constant dense<0.000000e+00> : vector<131x64xf32>
    %77 = tpu.matmul %75, %76, %cst_36 {dimension_numbers = #tpu.dot_dimension_numbers<[1], [0], [0], [1], [0, 0, 1, 1], [], []>} : vector<131x64xbf16>, vector<64x64xbf16>, vector<131x64xf32> -> vector<131x64xf32>
    %78 = arith.addf %74, %77 : vector<131x64xf32>
    %79 = vector.extract_strided_slice %68 {offsets = [2, 0], sizes = [131, 64], strides = [1, 1]} : vector<133x64xbf16> to vector<131x64xbf16>
    %80 = vector.extract_strided_slice %69 {offsets = [128, 0], sizes = [64, 64], strides = [1, 1]} : vector<192x64xbf16> to vector<64x64xbf16>
    %cst_37 = arith.constant dense<0.000000e+00> : vector<131x64xf32>
    %81 = tpu.matmul %79, %80, %cst_37 {dimension_numbers = #tpu.dot_dimension_numbers<[1], [0], [0], [1], [0, 0, 1, 1], [], []>} : vector<131x64xbf16>, vector<64x64xbf16>, vector<131x64xf32> -> vector<131x64xf32>
    %82 = arith.addf %78, %81 : vector<131x64xf32>
    %c0_38 = arith.constant 0 : index
    %c0_39 = arith.constant 0 : index
    %83 = vector.load %arg10[%c0_38, %c0_39] : memref<1x64xf32, #tpu.memory_space<vmem>>, vector<1x64xf32>
    %84 = vector.broadcast %83 : vector<1x64xf32> to vector<131x64xf32>
    %85 = arith.addf %82, %84 : vector<131x64xf32>
    %86 = vector.extract_strided_slice %85 {offsets = [0, 0], sizes = [128, 64], strides = [1, 1]} : vector<131x64xf32> to vector<128x64xf32>
    %87 = arith.truncf %86 : vector<128x64xf32> to vector<128x64xbf16>
    %c0_40 = arith.constant 0 : index
    %c0_41 = arith.constant 0 : index
    %c0_42 = arith.constant 0 : index
    %88 = vector.load %arg11[%c0_40, %c0_41, %c0_42] : memref<1x128x64xbf16, #tpu.memory_space<vmem>>, vector<1x128x64xbf16>
    %89 = vector.shape_cast %88 : vector<1x128x64xbf16> to vector<128x64xbf16>
    %90 = vector.shape_cast %87 : vector<128x64xbf16> to vector<1x128x64xbf16>
    tpu.vector_store %arg11[%c0_40, %c0_41, %c0_42], %90 {strides = array<i32>} : memref<1x128x64xbf16, #tpu.memory_space<vmem>>, vector<1x128x64xbf16>,
    return
  }
  func.func @transform_0(%arg0: i32, %arg1: i32) -> (i32, i32, i32, i32) {
    %c0_i32 = arith.constant 0 : i32
    %c0_i32_0 = arith.constant 0 : i32
    %c0_i32_1 = arith.constant 0 : i32
    return %arg0, %arg1, %c0_i32, %c0_i32_0 : i32, i32, i32, i32
  }
  func.func @transform_1(%arg0: i32, %arg1: i32) -> (i32, i32) {
    %c0_i32 = arith.constant 0 : i32
    %c0_i32_0 = arith.constant 0 : i32
    %c0_i32_1 = arith.constant 0 : i32
    return %c0_i32, %c0_i32_0 : i32, i32
  }
  func.func @transform_2(%arg0: i32, %arg1: i32) -> (i32, i32) {
    %c0_i32 = arith.constant 0 : i32
    %c0_i32_0 = arith.constant 0 : i32
    %c0_i32_1 = arith.constant 0 : i32
    return %c0_i32, %c0_i32_0 : i32, i32
  }
  func.func @transform_3(%arg0: i32, %arg1: i32) -> (i32, i32) {
    %c0_i32 = arith.constant 0 : i32
    %c0_i32_0 = arith.constant 0 : i32
    %c0_i32_1 = arith.constant 0 : i32
    return %c0_i32, %c0_i32_0 : i32, i32
  }
  func.func @transform_4(%arg0: i32, %arg1: i32) -> (i32, i32) {
    %c0_i32 = arith.constant 0 : i32
    %c0_i32_0 = arith.constant 0 : i32
    %c0_i32_1 = arith.constant 0 : i32
    return %c0_i32, %c0_i32_0 : i32, i32
  }
  func.func @transform_5(%arg0: i32, %arg1: i32) -> (i32, i32) {
    %c0_i32 = arith.constant 0 : i32
    %c0_i32_0 = arith.constant 0 : i32
    %c0_i32_1 = arith.constant 0 : i32
    return %c0_i32, %c0_i32_0 : i32, i32
  }
  func.func @transform_6(%arg0: i32, %arg1: i32) -> (i32, i32) {
    %c0_i32 = arith.constant 0 : i32
    %c0_i32_0 = arith.constant 0 : i32
    %c0_i32_1 = arith.constant 0 : i32
    return %c0_i32, %c0_i32_0 : i32, i32
  }
  func.func @transform_7(%arg0: i32, %arg1: i32) -> (i32, i32) {
    %c0_i32 = arith.constant 0 : i32
    %c0_i32_0 = arith.constant 0 : i32
    %c0_i32_1 = arith.constant 0 : i32
    return %c0_i32, %c0_i32_0 : i32, i32
  }
  func.func @transform_8(%arg0: i32, %arg1: i32) -> (i32, i32) {
    %c0_i32 = arith.constant 0 : i32
    %c0_i32_0 = arith.constant 0 : i32
    %c0_i32_1 = arith.constant 0 : i32
    return %c0_i32, %c0_i32_0 : i32, i32
  }
  func.func @transform_9(%arg0: i32, %arg1: i32) -> (i32, i32, i32) {
    %c0_i32 = arith.constant 0 : i32
    %c0_i32_0 = arith.constant 0 : i32
    return %arg0, %arg1, %c0_i32 : i32, i32, i32
  }
}

module attributes {stable_mosaic.version = 11 : i64} {
  func.func @_rvq_kernel(%arg0: i32, %arg1: i32, %arg2: i32, %arg3: memref<1x128x64xbf16, #tpu.memory_space<vmem>>, %arg4: memref<1x64x64xbf16, #tpu.memory_space<vmem>>, %arg5: memref<1x64x1xf32, #tpu.memory_space<vmem>>, %arg6: memref<1x1x1x128xi32, #tpu.memory_space<vmem>>, %arg7: memref<128x64xf32, #tpu.memory_space<vmem>>) attributes {dimension_semantics = [#tpu.dimension_semantics<parallel>, #tpu.dimension_semantics<parallel>, #tpu.dimension_semantics<arbitrary>], iteration_bounds = array<i64: 2, 1, 8>, scalar_prefetch = 0 : i64, scratch_operands = 1 : i64, tpu.core_type = #tpu.core_type<tc>, window_params = [{transform_indices = @transform_0, window_bounds = array<i64: 1, 128, 64>}, {transform_indices = @transform_1, window_bounds = array<i64: 1, 64, 64>}, {transform_indices = @transform_2, window_bounds = array<i64: 1, 64, 1>}, {transform_indices = @transform_3, window_bounds = array<i64: 1, 1, 1, 128>}]} {
    %c0_i32 = arith.constant 0 : i32
    %0 = arith.cmpi eq, %arg2, %c0_i32 : i32
    %1 = arith.extui %0 : i1 to i32
    %c0_i32_0 = arith.constant 0 : i32
    %2 = arith.cmpi ne, %1, %c0_i32_0 : i32
    scf.if %2 {
      %c0_18 = arith.constant 0 : index
      %c0_19 = arith.constant 0 : index
      %c0_20 = arith.constant 0 : index
      %33 = vector.load %arg3[%c0_18, %c0_19, %c0_20] : memref<1x128x64xbf16, #tpu.memory_space<vmem>>, vector<1x128x64xbf16>
      %34 = vector.shape_cast %33 : vector<1x128x64xbf16> to vector<128x64xbf16>
      %35 = arith.extf %34 : vector<128x64xbf16> to vector<128x64xf32>
      %c0_21 = arith.constant 0 : index
      %c0_22 = arith.constant 0 : index
      %36 = vector.load %arg7[%c0_21, %c0_22] : memref<128x64xf32, #tpu.memory_space<vmem>>, vector<128x64xf32>
      tpu.vector_store %arg7[%c0_21, %c0_22], %35 {strides = array<i32>} : memref<128x64xf32, #tpu.memory_space<vmem>>, vector<128x64xf32>,
    } else {
    }
    %c0 = arith.constant 0 : index
    %c0_1 = arith.constant 0 : index
    %3 = vector.load %arg7[%c0, %c0_1] : memref<128x64xf32, #tpu.memory_space<vmem>>, vector<128x64xf32>
    %c0_2 = arith.constant 0 : index
    %c0_3 = arith.constant 0 : index
    %c0_4 = arith.constant 0 : index
    %4 = vector.load %arg4[%c0_2, %c0_3, %c0_4] : memref<1x64x64xbf16, #tpu.memory_space<vmem>>, vector<1x64x64xbf16>
    %5 = vector.shape_cast %4 : vector<1x64x64xbf16> to vector<64x64xbf16>
    %c0_5 = arith.constant 0 : index
    %c0_6 = arith.constant 0 : index
    %c0_7 = arith.constant 0 : index
    %6 = vector.load %arg5[%c0_5, %c0_6, %c0_7] : memref<1x64x1xf32, #tpu.memory_space<vmem>>, vector<1x64x1xf32>
    %7 = vector.shape_cast %6 : vector<1x64x1xf32> to vector<64x1xf32>
    %8 = arith.truncf %3 : vector<128x64xf32> to vector<128x64xbf16>
    %cst = arith.constant dense<0.000000e+00> : vector<64x128xf32>
    %9 = tpu.matmul %5, %8, %cst {dimension_numbers = #tpu.dot_dimension_numbers<[1], [1], [0], [0], [0, 0, 1, 0], [], []>} : vector<64x64xbf16>, vector<128x64xbf16>, vector<64x128xf32> -> vector<64x128xf32>
    %cst_8 = arith.constant 2.000000e+00 : f32
    %10 = vector.broadcast %cst_8 : f32 to vector<64x128xf32>
    %11 = arith.mulf %10, %9 : vector<64x128xf32>
    %12 = vector.broadcast %7 : vector<64x1xf32> to vector<64x128xf32>
    %13 = arith.subf %12, %11 : vector<64x128xf32>
    %cst_9 = arith.constant dense<0x7F800000> : vector<128xf32>
    %14 = vector.multi_reduction <minimumf>, %13, %cst_9 [0] : vector<64x128xf32> to vector<128xf32>
    %15 = vector.shape_cast %14 : vector<128xf32> to vector<1x128xf32>
    %16 = tpu.iota {dimensions = array<i32: 0>} : vector<64x128xi32>
    %17 = vector.broadcast %15 : vector<1x128xf32> to vector<64x128xf32>
    %18 = arith.cmpf ole, %13, %17 : vector<64x128xf32>
    %c64_i32 = arith.constant 64 : i32
    %19 = vector.broadcast %c64_i32 : i32 to vector<64x128xi32>
    %20 = arith.select %18, %16, %19 : vector<64x128xi1>, vector<64x128xi32>
    %cst_10 = arith.constant dense<2147483647> : vector<128xi32>
    %21 = vector.multi_reduction <minsi>, %20, %cst_10 [0] : vector<64x128xi32> to vector<128xi32>
    %22 = vector.shape_cast %21 : vector<128xi32> to vector<1x128xi32>
    %23 = vector.shape_cast %22 : vector<1x128xi32> to vector<1x1x1x128xi32>
    %c0_11 = arith.constant 0 : index
    %c0_12 = arith.constant 0 : index
    %c0_13 = arith.constant 0 : index
    %c0_14 = arith.constant 0 : index
    %24 = vector.load %arg6[%c0_11, %c0_12, %c0_13, %c0_14] : memref<1x1x1x128xi32, #tpu.memory_space<vmem>>, vector<1x1x1x128xi32>
    tpu.vector_store %arg6[%c0_11, %c0_12, %c0_13, %c0_14], %23 {strides = array<i32>} : memref<1x1x1x128xi32, #tpu.memory_space<vmem>>, vector<1x1x1x128xi32>,
    %25 = vector.broadcast %22 : vector<1x128xi32> to vector<64x128xi32>
    %26 = arith.cmpi eq, %16, %25 : vector<64x128xi32>
    %27 = arith.extui %26 : vector<64x128xi1> to vector<64x128xi32>
    %28 = arith.sitofp %27 : vector<64x128xi32> to vector<64x128xf32>
    %29 = arith.truncf %28 : vector<64x128xf32> to vector<64x128xbf16>
    %cst_15 = arith.constant dense<0.000000e+00> : vector<128x64xf32>
    %30 = tpu.matmul %29, %5, %cst_15 {dimension_numbers = #tpu.dot_dimension_numbers<[0], [0], [1], [1], [0, 1, 1, 1], [], []>} : vector<64x128xbf16>, vector<64x64xbf16>, vector<128x64xf32> -> vector<128x64xf32>
    %31 = arith.subf %3, %30 : vector<128x64xf32>
    %c0_16 = arith.constant 0 : index
    %c0_17 = arith.constant 0 : index
    %32 = vector.load %arg7[%c0_16, %c0_17] : memref<128x64xf32, #tpu.memory_space<vmem>>, vector<128x64xf32>
    tpu.vector_store %arg7[%c0_16, %c0_17], %31 {strides = array<i32>} : memref<128x64xf32, #tpu.memory_space<vmem>>, vector<128x64xf32>,
    return
  }
  func.func @transform_0(%arg0: i32, %arg1: i32, %arg2: i32) -> (i32, i32, i32) {
    %c0_i32 = arith.constant 0 : i32
    %c0_i32_0 = arith.constant 0 : i32
    return %arg0, %arg1, %c0_i32 : i32, i32, i32
  }
  func.func @transform_1(%arg0: i32, %arg1: i32, %arg2: i32) -> (i32, i32, i32) {
    %c0_i32 = arith.constant 0 : i32
    %c0_i32_0 = arith.constant 0 : i32
    %c0_i32_1 = arith.constant 0 : i32
    return %arg2, %c0_i32, %c0_i32_0 : i32, i32, i32
  }
  func.func @transform_2(%arg0: i32, %arg1: i32, %arg2: i32) -> (i32, i32, i32) {
    %c0_i32 = arith.constant 0 : i32
    %c0_i32_0 = arith.constant 0 : i32
    %c0_i32_1 = arith.constant 0 : i32
    return %arg2, %c0_i32, %c0_i32_0 : i32, i32, i32
  }
  func.func @transform_3(%arg0: i32, %arg1: i32, %arg2: i32) -> (i32, i32, i32, i32) {
    %c0_i32 = arith.constant 0 : i32
    %c0_i32_0 = arith.constant 0 : i32
    return %arg0, %arg2, %c0_i32, %arg1 : i32, i32, i32, i32
  }
}

</mosaic_0001>

<llo_original>
// kernel: _lambda_.3
$region0: #{_lambda_.3}
  #allocation0 [shape = 'u32[]', space=smem, size = 0x4, offset = 0x4, fixed_abs, tag = 'smem constant byte address 0x4 - core index']
  #allocation1 [shape = 'u32[72,128]{1,0:T(1,128)}', space=vmem, size = 0x9000, scoped, tag = 'internal scratch']
  #allocation2 [shape = 'f32[128,64]{1,0:T(8,128)}', space=vmem, size = 0x10000, scoped, tag = 'scratch operand']
  %s0 = inlined_call_operand.vmem [shape: bf16[2,128,64], index: 0, kind: input, shape index: {}]
  %s1 = inlined_call_operand.vmem [shape: bf16[8,64,64], index: 1, kind: input, shape index: {}]
  %s2 = inlined_call_operand.vmem [shape: f32[8,64,1], index: 2, kind: input, shape index: {}]
  %s3 = inlined_call_operand.vmem [shape: s32[2,8,1,128], index: 3, kind: output, shape index: {}]
  %s4 = sld [smem:[#allocation0]]
  $region49: #{_lambda_.3} parent=0
    _
  %s6 = ssub.s32 1, %s4
  %s7 = scalar_select 0, %s6, %s4
  loop: start=0, step=1, limit=18
  $region2: #{_lambda_.3} parent=0 // loop_pre_header
    _
  $region3: #{_lambda_.3} parent=0 // loop_header
    %s9 = sphi 0, %s13
    %p10 = scmp.ge.s32.totalorder %s9, 18
    %s16 = sphi 0, %s35
    %s17 = sphi 0, %s31
    %s18 = sphi 0, %s27
    %s19 = sphi 0, %s16
    %s20 = sphi 0, %s17
    %s21 = sphi 0, %s18
    %s22 = sphi 0, %s19
    %s23 = sphi 0, %s20
    %s24 = sphi 0, %s21
    %s40 = sphi 0, %s42
    %s43 = sphi 0, %s40
    %s44 = sphi 0, %s43
    %s60 = sphi 0, %s44
    %s66 = sphi 0, %s68
    %s69 = sphi 0, %s66
    %s70 = sphi 0, %s69
    %s86 = sphi 0, %s70
    %s92 = sphi 0, %s94
    %s95 = sphi 0, %s92
    %s96 = sphi 0, %s95
    %s112 = sphi 0, %s96
    %s122 = sphi 0, %s124
    %s125 = sphi 0, %s122
    %s126 = sphi 0, %s125
    %s142 = sphi 0, %s126
  $region4: #{_lambda_.3} parent=0 // loop_header_branch
    %12 = sbr.rel (%p10) target = $region8
  $region5: #{_lambda_.3} parent=0 // loop_body
    %s14 = ssub.s32 %s9, 1
    %s15 = ssub.s32 %s9, 2
    %s25 = sadd.s32 1, %s18
    %p26 = scmp.ge.s32.totalorder %s25, 8
    %s27 = scalar_select %p26, 0, %s25
    %s28 = sadd.s32 1, %s17
    %s29 = scalar_select %p26, %s28, %s17
    %p30 = scmp.ge.s32.totalorder %s29, 1
    %s31 = scalar_select %p30, 0, %s29
    %s32 = sadd.s32 1, %s16
    %s33 = scalar_select %p30, %s32, %s16
    %p34 = scmp.ge.s32.totalorder %s33, 2
    %s35 = scalar_select %p34, 0, %s33
    %s36 = ssub.s32 %s16, %s35
    %s37 = ssub.s32 %s17, %s31
    %s38 = sor.u32 %s36, %s37
    %p39 = scmp.eq.s32.totalorder %s38, 0
    %s41 = sadd.s32 %s40, 1
    %s42 = scalar_select %p39, %s40, %s41
    %p45 = pneg %p39
    %p46 = scmp.eq.s32.totalorder %s9, 15
    %p47 = por %p45, %p46
    %p48 = scmp.ne.s32.totalorder %s40, %s43
    %p49 = scmp.eq.s32.totalorder %s9, 0
    %p50 = por %p48, %p49
    %p51 = scmp.ne.s32.totalorder %s40, %s43
    %p52 = scmp.eq.s32.totalorder %s14, 15
    %p53 = por %p51, %p52
    %p54 = scmp.ne.s32.totalorder %s43, %s44
    %p55 = scmp.eq.s32.totalorder %s14, 0
    %p56 = por %p54, %p55
    %p57 = scmp.ne.s32.totalorder %s43, %s44
    %p58 = scmp.eq.s32.totalorder %s15, 15
    %p59 = por %p57, %p58
    %p61 = scmp.ne.s32.totalorder %s44, %s60
    %p62 = scmp.eq.s32.totalorder %s15, 0
    %p63 = por %p61, %p62
    %s64 = ssub.s32 %s18, %s27
    %p65 = scmp.eq.s32.totalorder %s64, 0
    %s67 = sadd.s32 %s66, 1
    %s68 = scalar_select %p65, %s66, %s67
    %p71 = pneg %p65
    %p72 = scmp.eq.s32.totalorder %s9, 15
    %p73 = por %p71, %p72
    %p74 = scmp.ne.s32.totalorder %s66, %s69
    %p75 = scmp.eq.s32.totalorder %s9, 0
    %p76 = por %p74, %p75
    %p77 = scmp.ne.s32.totalorder %s66, %s69
    %p78 = scmp.eq.s32.totalorder %s14, 15
    %p79 = por %p77, %p78
    %p80 = scmp.ne.s32.totalorder %s69, %s70
    %p81 = scmp.eq.s32.totalorder %s14, 0
    %p82 = por %p80, %p81
    %p83 = scmp.ne.s32.totalorder %s69, %s70
    %p84 = scmp.eq.s32.totalorder %s15, 15
    %p85 = por %p83, %p84
    %p87 = scmp.ne.s32.totalorder %s70, %s86
    %p88 = scmp.eq.s32.totalorder %s15, 0
    %p89 = por %p87, %p88
    %s90 = ssub.s32 %s18, %s27
    %p91 = scmp.eq.s32.totalorder %s90, 0
    %s93 = sadd.s32 %s92, 1
    %s94 = scalar_select %p91, %s92, %s93
    %p97 = pneg %p91
    %p98 = scmp.eq.s32.totalorder %s9, 15
    %p99 = por %p97, %p98
    %p100 = scmp.ne.s32.totalorder %s92, %s95
    %p101 = scmp.eq.s32.totalorder %s9, 0
    %p102 = por %p100, %p101
    %p103 = scmp.ne.s32.totalorder %s92, %s95
    %p104 = scmp.eq.s32.totalorder %s14, 15
    %p105 = por %p103, %p104
    %p106 = scmp.ne.s32.totalorder %s95, %s96
    %p107 = scmp.eq.s32.totalorder %s14, 0
    %p108 = por %p106, %p107
    %p109 = scmp.ne.s32.totalorder %s95, %s96
    %p110 = scmp.eq.s32.totalorder %s15, 15
    %p111 = por %p109, %p110
    %p113 = scmp.ne.s32.totalorder %s96, %s112
    %p114 = scmp.eq.s32.totalorder %s15, 0
    %p115 = por %p113, %p114
    %s116 = ssub.s32 %s16, %s35
    %s117 = ssub.s32 %s18, %s27
    %s118 = sor.u32 %s116, %s117
    %s119 = ssub.s32 %s17, %s31
    %s120 = sor.u32 %s118, %s119
    %p121 = scmp.eq.s32.totalorder %s120, 0
    %s123 = sadd.s32 %s122, 1
    %s124 = scalar_select %p121, %s122, %s123
    %p127 = pneg %p121
    %p128 = scmp.eq.s32.totalorder %s9, 15
    %p129 = por %p127, %p128
    %p130 = scmp.ne.s32.totalorder %s122, %s125
    %p131 = scmp.eq.s32.totalorder %s9, 0
    %p132 = por %p130, %p131
    %p133 = scmp.ne.s32.totalorder %s122, %s125
    %p134 = scmp.eq.s32.totalorder %s14, 15
    %p135 = por %p133, %p134
    %p136 = scmp.ne.s32.totalorder %s125, %s126
    %p137 = scmp.eq.s32.totalorder %s14, 0
    %p138 = por %p136, %p137
    %p139 = scmp.ne.s32.totalorder %s125, %s126
    %p140 = scmp.eq.s32.totalorder %s15, 15
    %p141 = por %p139, %p140
    %p143 = scmp.ne.s32.totalorder %s126, %s142
    %p144 = scmp.eq.s32.totalorder %s15, 0
    %p145 = por %p143, %p144
    %p146 = scmp.le.s32.totalorder 1, %s9
    %p147 = scmp.lt.s32.totalorder %s9, 17
    %p148 = pnand %p146, %p147
    %p149 = pneg %p148
    // Predicated region
    $region9: #{_lambda_.3} parent=5 // pred_check
      _
    $region10: #{_lambda_.3} parent=5 // pred_check_branch
      %151 = sbr.rel (%p148) target = $region12
    $region11: #{_lambda_.3} parent=5 // pred_region
      %s152 = ssub.s32 %s9, 1
    $region12: #{_lambda_.3} parent=5 // pred_fallthru
      _
    %p153 = scmp.lt.s32.totalorder %s9, 16
    // Predicated region
    $region13: #{_lambda_.3} parent=5 // pred_check
      %p154 = pneg %p153
    $region14: #{_lambda_.3} parent=5 // pred_check_branch
      %156 = sbr.rel (%p154) target = $region16
    $region15: #{_lambda_.3} parent=5 // pred_region
      // Predicated region
      $region17: #{_lambda_.3} parent=15 // pred_check
        %p157 = pneg %p50
      $region18: #{_lambda_.3} parent=15 // pred_check_branch
        %159 = sbr.rel (%p157) target = $region20
      $region19: #{_lambda_.3} parent=15 // pred_region
        %s160 = smul.u32 16, %s17
        %p161 = scmp.lt.s32.totalorder %s16, 1
        %s162 = scalar_select %p161, %s16, 1
        %p163 = scmp.lt.s32.totalorder %s160, 15
        %s164 = scalar_select %p163, %s160, 15
        %s165 = smul.addr %s162, 16
        %s166 = sadd.s32 %s164, %s165
        %s167 = smul.addr %s166, 4
        %s168 = scalar_lea.vmem %s0, %s167
        %s169 = smul.u32 16, %s17
      $region20: #{_lambda_.3} parent=15 // pred_fallthru
        _
      // Predicated region
      $region21: #{_lambda_.3} parent=15 // pred_check
        %p170 = pneg %p76
      $region22: #{_lambda_.3} parent=15 // pred_check_branch
        %172 = sbr.rel (%p170) target = $region24
      $region23: #{_lambda_.3} parent=15 // pred_region
        %p173 = scmp.lt.s32.totalorder %s18, 7
        %s174 = scalar_select %p173, %s18, 7
        %s175 = smul.addr %s174, 8
        %s176 = smul.addr %s175, 4
        %s177 = scalar_lea.vmem %s1, %s176
      $region24: #{_lambda_.3} parent=15 // pred_fallthru
        _
      // Predicated region
      $region25: #{_lambda_.3} parent=15 // pred_check
        %p178 = pneg %p102
      $region26: #{_lambda_.3} parent=15 // pred_check_branch
        %180 = sbr.rel (%p178) target = $region28
      $region27: #{_lambda_.3} parent=15 // pred_region
        %p181 = scmp.lt.s32.totalorder %s18, 7
        %s182 = scalar_select %p181, %s18, 7
        %s183 = smul.addr %s182, 8
        %s184 = smul.addr %s183, 8
        %s185 = scalar_lea.vmem %s2, %s184
      $region28: #{_lambda_.3} parent=15 // pred_fallthru
        _
    $region16: #{_lambda_.3} parent=5 // pred_fallthru
      _
    %p186 = scmp.le.s32.totalorder 1, %s9
    %p187 = scmp.lt.s32.totalorder %s9, 17
    %p188 = pnand %p186, %p187
    %p189 = pneg %p188
    // Predicated region
    $region29: #{_lambda_.3} parent=5 // pred_check
      _
    $region30: #{_lambda_.3} parent=5 // pred_check_branch
      %191 = sbr.rel (%p188) target = $region32
    $region31: #{_lambda_.3} parent=5 // pred_region
      %s192 = ssub.s32 %s9, 1
      %s193 = smul.u32 16, %s20
      %p194 = scmp.lt.s32.totalorder %s19, 1
      %s195 = scalar_select %p194, %s19, 1
      %p196 = scmp.lt.s32.totalorder %s193, 15
      %s197 = scalar_select %p196, %s193, 15
      %s198 = smul.addr %s195, 16
      %s199 = sadd.s32 %s197, %s198
      %s200 = smul.addr %s199, 4
      %s201 = scalar_lea.vmem %s0, %s200
      %p202 = pneg %p56
      %p203 = pneg %p53
      %p204 = scmp.lt.s32.totalorder %s21, 7
      %s205 = scalar_select %p204, %s21, 7
      %s206 = smul.addr %s205, 8
      %s207 = smul.addr %s206, 4
      %s208 = scalar_lea.vmem %s1, %s207
      %p209 = pneg %p82
      %p210 = pneg %p79
      %p211 = scmp.lt.s32.totalorder %s21, 7
      %s212 = scalar_select %p211, %s21, 7
      %s213 = smul.addr %s212, 8
      %s214 = smul.addr %s213, 8
      %s215 = scalar_lea.vmem %s2, %s214
      %p216 = pneg %p108
      %p217 = pneg %p105
      %p218 = pneg %p138
      %p219 = pneg %p135
      %p220 = scmp.lt.s32.totalorder %s19, 1
      %s221 = scalar_select %p220, %s19, 1
      %p222 = scmp.lt.s32.totalorder %s21, 7
      %s223 = scalar_select %p222, %s21, 7
      %p224 = scmp.lt.s32.totalorder %s20, 0
      %s225 = scalar_select %p224, %s20, 0
      %s226 = sadd.s32 %s225, %s223
      %s227 = smul.addr %s221, 8
      %s228 = sadd.s32 %s226, %s227
      %s229 = scalar_lea.vmem %s3, %s228
      %s230 = smul.u32 16, %s20
      %p231 = scmp.lt.s32.totalorder %s19, 1
      %s232 = scalar_select %p231, %s19, 1
      %p233 = scmp.lt.s32.totalorder %s230, 15
      %s234 = scalar_select %p233, %s230, 15
      %s235 = smul.addr %s232, 16
      %s236 = sadd.s32 %s234, %s235
      %s237 = smul.addr %s236, 4
      %s238 = scalar_lea.vmem %s0, %s237
      %s239 = smul.u32 16, %s20
      %p240 = scmp.lt.s32.totalorder %s21, 7
      %s241 = scalar_select %p240, %s21, 7
      %s242 = smul.addr %s241, 8
      %s243 = smul.addr %s242, 4
      %s244 = scalar_lea.vmem %s1, %s243
      %p245 = scmp.lt.s32.totalorder %s21, 7
      %s246 = scalar_select %p245, %s21, 7
      %s247 = smul.addr %s246, 8
      %s248 = smul.addr %s247, 8
      %s249 = scalar_lea.vmem %s2, %s248
      %p250 = scmp.lt.s32.totalorder %s19, 1
      %s251 = scalar_select %p250, %s19, 1
      %p252 = scmp.lt.s32.totalorder %s21, 7
      %s253 = scalar_select %p252, %s21, 7
      %p254 = scmp.lt.s32.totalorder %s20, 0
      %s255 = scalar_select %p254, %s20, 0
      %s256 = sadd.s32 %s255, %s253
      %s257 = smul.addr %s251, 8
      %s258 = sadd.s32 %s256, %s257
      %s259 = scalar_lea.vmem %s3, %s258
      %p261 = scmp.eq.s32.totalorder %s21, 0
      // Predicated region
      $region33: #{_lambda_.3} parent=31 // pred_check
        %p262 = pneg %p261
      $region34: #{_lambda_.3} parent=31 // pred_check_branch
        %264 = sbr.rel (%p262) target = $region36
      $region35: #{_lambda_.3} parent=31 // pred_region
        %v265 = vld [vmem:[%s238] sm:$0xf]
        %v266 = vld [vmem:[%s238 + $0x4] sm:$0xf]
        %v267 = vld [vmem:[%s238 + $0x8] sm:$0xf]
        %v268 = vld [vmem:[%s238 + $0xc] sm:$0xf]
        %v269 = vld [vmem:[%s238 + $0x10] sm:$0xf]
        %v270 = vld [vmem:[%s238 + $0x14] sm:$0xf]
        %v271 = vld [vmem:[%s238 + $0x18] sm:$0xf]
        %v272 = vld [vmem:[%s238 + $0x1c] sm:$0xf]
        %v273 = vld [vmem:[%s238 + $0x20] sm:$0xf]
        %v274 = vld [vmem:[%s238 + $0x24] sm:$0xf]
        %v275 = vld [vmem:[%s238 + $0x28] sm:$0xf]
        %v276 = vld [vmem:[%s238 + $0x2c] sm:$0xf]
        %v277 = vld [vmem:[%s238 + $0x30] sm:$0xf]
        %v278 = vld [vmem:[%s238 + $0x34] sm:$0xf]
        %v279 = vld [vmem:[%s238 + $0x38] sm:$0xf]
        %v280 = vld [vmem:[%s238 + $0x3c] sm:$0xf]
        %v281 = vunpack.c.l.bf16 %v265
        %v282 = vunpack.c.l.bf16 %v266
        %v283 = vunpack.c.l.bf16 %v267
        %v284 = vunpack.c.l.bf16 %v268
        %v285 = vunpack.c.l.bf16 %v269
        %v286 = vunpack.c.l.bf16 %v270
        %v287 = vunpack.c.l.bf16 %v271
        %v288 = vunpack.c.l.bf16 %v272
        %v289 = vunpack.c.l.bf16 %v273
        %v290 = vunpack.c.l.bf16 %v274
        %v291 = vunpack.c.l.bf16 %v275
        %v292 = vunpack.c.l.bf16 %v276
        %v293 = vunpack.c.l.bf16 %v277
        %v294 = vunpack.c.l.bf16 %v278
        %v295 = vunpack.c.l.bf16 %v279
        %v296 = vunpack.c.l.bf16 %v280
        %vm297 = vcmask 523264
        %298 = vst.msk [vmem:[#allocation2] sm:$0xff] %vm297, %v281
        %299 = vst.msk [vmem:[#allocation2 + $0x8] sm:$0xff] %vm297, %v282
        %300 = vst.msk [vmem:[#allocation2 + $0x10] sm:$0xff] %vm297, %v283
        %301 = vst.msk [vmem:[#allocation2 + $0x18] sm:$0xff] %vm297, %v284
        %302 = vst.msk [vmem:[#allocation2 + $0x20] sm:$0xff] %vm297, %v285
        %303 = vst.msk [vmem:[#allocation2 + $0x28] sm:$0xff] %vm297, %v286
        %304 = vst.msk [vmem:[#allocation2 + $0x30] sm:$0xff] %vm297, %v287
        %305 = vst.msk [vmem:[#allocation2 + $0x38] sm:$0xff] %vm297, %v288
        %306 = vst.msk [vmem:[#allocation2 + $0x40] sm:$0xff] %vm297, %v289
        %307 = vst.msk [vmem:[#allocation2 + $0x48] sm:$0xff] %vm297, %v290
        %308 = vst.msk [vmem:[#allocation2 + $0x50] sm:$0xff] %vm297, %v291
        %309 = vst.msk [vmem:[#allocation2 + $0x58] sm:$0xff] %vm297, %v292
        %310 = vst.msk [vmem:[#allocation2 + $0x60] sm:$0xff] %vm297, %v293
        %311 = vst.msk [vmem:[#allocation2 + $0x68] sm:$0xff] %vm297, %v294
        %312 = vst.msk [vmem:[#allocation2 + $0x70] sm:$0xff] %vm297, %v295
        %313 = vst.msk [vmem:[#allocation2 + $0x78] sm:$0xff] %vm297, %v296
      $region36: #{_lambda_.3} parent=31 // pred_fallthru
        _
      %v314 = vld [vmem:[#allocation2] sm:$0xff]
      %v315 = vld [vmem:[#allocation2 + $0x8] sm:$0xff]
      %v316 = vld [vmem:[#allocation2 + $0x10] sm:$0xff]
      %v317 = vld [vmem:[#allocation2 + $0x18] sm:$0xff]
      %v318 = vld [vmem:[#allocation2 + $0x20] sm:$0xff]
      %v319 = vld [vmem:[#allocation2 + $0x28] sm:$0xff]
      %v320 = vld [vmem:[#allocation2 + $0x30] sm:$0xff]
      %v321 = vld [vmem:[#allocation2 + $0x38] sm:$0xff]
      %v322 = vld [vmem:[#allocation2 + $0x40] sm:$0xff]
      %v323 = vld [vmem:[#allocation2 + $0x48] sm:$0xff]
      %v324 = vld [vmem:[#allocation2 + $0x50] sm:$0xff]
      %v325 = vld [vmem:[#allocation2 + $0x58] sm:$0xff]
      %v326 = vld [vmem:[#allocation2 + $0x60] sm:$0xff]
      %v327 = vld [vmem:[#allocation2 + $0x68] sm:$0xff]
      %v328 = vld [vmem:[#allocation2 + $0x70] sm:$0xff]
      %v329 = vld [vmem:[#allocation2 + $0x78] sm:$0xff]
      %v330 = vld [vmem:[%s244] sm:$0xf]
      %v331 = vld [vmem:[%s244 + $0x4] sm:$0xf]
      %v332 = vld [vmem:[%s244 + $0x8] sm:$0xf]
      %v333 = vld [vmem:[%s244 + $0xc] sm:$0xf]
      %v334 = vld [vmem:[%s244 + $0x10] sm:$0xf]
      %v335 = vld [vmem:[%s244 + $0x14] sm:$0xf]
      %v336 = vld [vmem:[%s244 + $0x18] sm:$0xf]
      %v337 = vld [vmem:[%s244 + $0x1c] sm:$0xf]
      %v338 = vld [vmem:[%s249] sm:$0xff]
      %v339 = vld [vmem:[%s249 + $0x8] sm:$0xff]
      %v340 = vld [vmem:[%s249 + $0x10] sm:$0xff]
      %v341 = vld [vmem:[%s249 + $0x18] sm:$0xff]
      %v342 = vld [vmem:[%s249 + $0x20] sm:$0xff]
      %v343 = vld [vmem:[%s249 + $0x28] sm:$0xff]
      %v344 = vld [vmem:[%s249 + $0x30] sm:$0xff]
      %v345 = vld [vmem:[%s249 + $0x38] sm:$0xff]
      %v346 = vpack.c.bf16 %v315, %v314
      %v347 = vpack.c.bf16 %v317, %v316
      %v348 = vpack.c.bf16 %v319, %v318
      %v349 = vpack.c.bf16 %v321, %v320
      %v350 = vpack.c.bf16 %v323, %v322
      %v351 = vpack.c.bf16 %v325, %v324
      %v352 = vpack.c.bf16 %v327, %v326
      %v353 = vpack.c.bf16 %v329, %v328
      %v362 = vunpack.c.l.b16 %v330
      %v363 = vunpack.c.l.b16 %v331
      %v364 = vunpack.c.l.b16 %v332
      %v365 = vunpack.c.l.b16 %v333
      %v366 = vunpack.c.l.b16 %v334
      %v367 = vunpack.c.l.b16 %v335
      %v368 = vunpack.c.l.b16 %v336
      %v369 = vunpack.c.l.b16 %v337
      %v370 = vpack.c.b16 %v363, %v362
      %v371 = vpack.c.b16 %v365, %v364
      %v372 = vpack.c.b16 %v367, %v366
      %v373 = vpack.c.b16 %v369, %v368
      %vm374 = vcmask 523264
      %v376 = vsel %vm374, %v370, 0
      %v379 = vsel %vm374, %v371, 0
      %v382 = vsel %vm374, %v372, 0
      %v385 = vsel %vm374, %v373, 0
      %v388 = vsel %vm374, %v346, 0
      %v391 = vsel %vm374, %v347, 0
      %v394 = vsel %vm374, %v348, 0
      %v397 = vsel %vm374, %v349, 0
      %v400 = vsel %vm374, %v350, 0
      %v403 = vsel %vm374, %v351, 0
      %v406 = vsel %vm374, %v352, 0
      %v409 = vsel %vm374, %v353, 0
      %411 = vmatpush.bf16.xpose.msra.mxu0 %v409
      %412 = vmatpush.bf16.xpose.msra.mxu0 %v406
      %413 = vmatpush.bf16.xpose.msra.mxu0 %v403
      %414 = vmatpush.bf16.xpose.msra.mxu0 %v400
      %415 = vmatpush.bf16.xpose.msra.mxu0 %v397
      %416 = vmatpush.bf16.xpose.msra.mxu0 %v394
      %417 = vmatpush.bf16.xpose.msra.mxu0 %v391
      %418 = vmatpush.bf16.xpose.msra.mxu0 %v388
      %419 = vmatmul.bf16.gmra.mxu0 %v376
      %v420 = vpop.f32.mrf.mxu0
      %v421 = vadd.f32 0.0, %v420
      %v422 = vpop.f32.mrf.mxu0
      %v423 = vadd.f32 0.0, %v422
      %424 = vmatmul.bf16.gmra.mxu0 %v379
      %v425 = vpop.f32.mrf.mxu0
      %v426 = vadd.f32 0.0, %v425
      %v427 = vpop.f32.mrf.mxu0
      %v428 = vadd.f32 0.0, %v427
      %429 = vmatmul.bf16.gmra.mxu0 %v382
      %v430 = vpop.f32.mrf.mxu0
      %v431 = vadd.f32 0.0, %v430
      %v432 = vpop.f32.mrf.mxu0
      %v433 = vadd.f32 0.0, %v432
      %434 = vmatmul.bf16.gmra.mxu0 %v385
      %v435 = vpop.f32.mrf.mxu0
      %v436 = vadd.f32 0.0, %v435
      %v437 = vpop.f32.mrf.mxu0
      %v438 = vadd.f32 0.0, %v437
      %439 = vdwg.mxu0
      %v440 = vmul.f32 %v421, 2.0
      %v441 = vmul.f32 %v423, 2.0
      %v442 = vmul.f32 %v426, 2.0
      %v443 = vmul.f32 %v428, 2.0
      %v444 = vmul.f32 %v431, 2.0
      %v445 = vmul.f32 %v433, 2.0
      %v446 = vmul.f32 %v436, 2.0
      %v447 = vmul.f32 %v438, 2.0
      %449 = vset.pattern.permute.xlu0 0
      %450 = vperm.xlu0 %449, %v338
      %v451 = vpop.permute.xlu0 %450
      %454 = vset.pattern.permute.xlu0 0
      %455 = vperm.xlu0 %454, %v339
      %v456 = vpop.permute.xlu0 %455
      %459 = vset.pattern.permute.xlu0 0
      %460 = vperm.xlu0 %459, %v340
      %v461 = vpop.permute.xlu0 %460
      %464 = vset.pattern.permute.xlu0 0
      %465 = vperm.xlu0 %464, %v341
      %v466 = vpop.permute.xlu0 %465
      %469 = vset.pattern.permute.xlu0 0
      %470 = vperm.xlu0 %469, %v342
      %v471 = vpop.permute.xlu0 %470
      %474 = vset.pattern.permute.xlu0 0
      %475 = vperm.xlu0 %474, %v343
      %v476 = vpop.permute.xlu0 %475
      %479 = vset.pattern.permute.xlu0 0
      %480 = vperm.xlu0 %479, %v344
      %v481 = vpop.permute.xlu0 %480
      %484 = vset.pattern.permute.xlu0 0
      %485 = vperm.xlu0 %484, %v345
      %v486 = vpop.permute.xlu0 %485
      %v488 = vsub.f32 %v451, %v440
      %v489 = vsub.f32 %v456, %v441
      %v490 = vsub.f32 %v461, %v442
      %v491 = vsub.f32 %v466, %v443
      %v492 = vsub.f32 %v471, %v444
      %v493 = vsub.f32 %v476, %v445
      %v494 = vsub.f32 %v481, %v446
      %v495 = vsub.f32 %v486, %v447
      %v496 = vmin.f32 %v488, %v492
      %v497 = vmin.f32 %v489, %v493
      %v498 = vmin.f32 %v490, %v494
      %v499 = vmin.f32 %v491, %v495
      %v500 = vmin.f32 %v496, %v497
      %v501 = vmin.f32 %v498, %v499
      %v502 = vmin.f32 %v500, %v501
      %v503 = vrot.slane %v502, 4
      %v504 = vmin.f32 %v502, %v503
      %v505 = vrot.slane %v504, 2
      %v506 = vmin.f32 %v504, %v505
      %v507 = vrot.slane %v506, 1
      %v508 = vmin.f32 %v506, %v507
      %v509 = vlaneseq
      %v510 = vshrl.u32 %v509, 7
      %v511 = vadd.s32 %v510, 8
      %v512 = vadd.s32 %v510, 16
      %v513 = vadd.s32 %v510, 24
      %v514 = vadd.s32 %v510, 32
      %v515 = vadd.s32 %v510, 40
      %v516 = vadd.s32 %v510, 48
      %v517 = vadd.s32 %v510, 56
      %vm518 = vcmp.le.f32.partialorder %v488, %v508
      %vm519 = vcmp.le.f32.partialorder %v489, %v508
      %vm520 = vcmp.le.f32.partialorder %v490, %v508
      %vm521 = vcmp.le.f32.partialorder %v491, %v508
      %vm522 = vcmp.le.f32.partialorder %v492, %v508
      %vm523 = vcmp.le.f32.partialorder %v493, %v508
      %vm524 = vcmp.le.f32.partialorder %v494, %v508
      %vm525 = vcmp.le.f32.partialorder %v495, %v508
      %v526 = vsel %vm518, %v510, 64
      %v527 = vsel %vm519, %v511, 64
      %v528 = vsel %vm520, %v512, 64
      %v529 = vsel %vm521, %v513, 64
      %v530 = vsel %vm522, %v514, 64
      %v531 = vsel %vm523, %v515, 64
      %v532 = vsel %vm524, %v516, 64
      %v533 = vsel %vm525, %v517, 64
      %vm534 = vcmp.lt.s32.totalorder %v526, %v530
      %v535 = vsel %vm534, %v526, %v530
      %vm536 = vcmp.lt.s32.totalorder %v527, %v531
      %v537 = vsel %vm536, %v527, %v531
      %vm538 = vcmp.lt.s32.totalorder %v528, %v532
      %v539 = vsel %vm538, %v528, %v532
      %vm540 = vcmp.lt.s32.totalorder %v529, %v533
      %v541 = vsel %vm540, %v529, %v533
      %vm542 = vcmp.lt.s32.totalorder %v535, %v537
      %v543 = vsel %vm542, %v535, %v537
      %vm544 = vcmp.lt.s32.totalorder %v539, %v541
      %v545 = vsel %vm544, %v539, %v541
      %vm546 = vcmp.lt.s32.totalorder %v543, %v545
      %v547 = vsel %vm546, %v543, %v545
      %v548 = vrot.slane %v547, 4
      %vm549 = vcmp.lt.s32.totalorder %v547, %v548
      %v550 = vsel %vm549, %v547, %v548
      %v551 = vrot.slane %v550, 2
      %vm552 = vcmp.lt.s32.totalorder %v550, %v551
      %v553 = vsel %vm552, %v550, %v551
      %v554 = vrot.slane %v553, 1
      %vm555 = vcmp.lt.s32.totalorder %v553, %v554
      %v556 = vsel %vm555, %v553, %v554
      %557 = vst [vmem:[%s259] sm:$0x1] %v556
      %vm558 = vcmp.eq.s32.totalorder %v510, %v556
      %vm559 = vcmp.eq.s32.totalorder %v511, %v556
      %vm560 = vcmp.eq.s32.totalorder %v512, %v556
      %vm561 = vcmp.eq.s32.totalorder %v513, %v556
      %vm562 = vcmp.eq.s32.totalorder %v514, %v556
      %vm563 = vcmp.eq.s32.totalorder %v515, %v556
      %vm564 = vcmp.eq.s32.totalorder %v516, %v556
      %vm565 = vcmp.eq.s32.totalorder %v517, %v556
      %v566 = vsel %vm558, 1, 0
      %v567 = vsel %vm559, 1, 0
      %v568 = vsel %vm560, 1, 0
      %v569 = vsel %vm561, 1, 0
      %v570 = vsel %vm562, 1, 0
      %v571 = vsel %vm563, 1, 0
      %v572 = vsel %vm564, 1, 0
      %v573 = vsel %vm565, 1, 0
      %v574 = vcvt.s32.f32 %v566
      %v575 = vcvt.s32.f32 %v567
      %v576 = vcvt.s32.f32 %v568
      %v577 = vcvt.s32.f32 %v569
      %v578 = vcvt.s32.f32 %v570
      %v579 = vcvt.s32.f32 %v571
      %v580 = vcvt.s32.f32 %v572
      %v581 = vcvt.s32.f32 %v573
      %v582 = vpack.c.bf16 %v575, %v574
      %v583 = vpack.c.bf16 %v577, %v576
      %v584 = vpack.c.bf16 %v579, %v578
      %v585 = vpack.c.bf16 %v581, %v580
      %586 = vxpose.xlu0.c.b16.start [1/8] %v582, 128
      %587 = vxpose.xlu0.c.b16.cont [2/8] %v583, 128
      %588 = vxpose.xlu0.c.b16.cont [3/8] %v584, 128
      %589 = vxpose.xlu0.c.b16.cont [4/8] %v585, 128
      %590 = vxpose.xlu0.c.b16.cont [5/8] 0, 128
      %591 = vxpose.xlu0.c.b16.cont [6/8] 0, 128
      %592 = vxpose.xlu0.c.b16.cont [7/8] 0, 128
      %593 = vxpose.xlu0.c.b16.end [8/8] 0, 128
      %v594 = vpop.trf.xlu0
      %v595 = vpop.trf.xlu0
      %v596 = vpop.trf.xlu0
      %v597 = vpop.trf.xlu0
      %v598 = vpop.trf.xlu0
      %v599 = vpop.trf.xlu0
      %v600 = vpop.trf.xlu0
      %v601 = vpop.trf.xlu0
      %v607 = vsel %vm374, %v594, 0
      %v610 = vsel %vm374, %v595, 0
      %v613 = vsel %vm374, %v596, 0
      %v616 = vsel %vm374, %v597, 0
      %v619 = vsel %vm374, %v598, 0
      %v622 = vsel %vm374, %v599, 0
      %v625 = vsel %vm374, %v600, 0
      %v628 = vsel %vm374, %v601, 0
      %630 = vmatpush.bf16.msra.mxu0 0
      %631 = vmatpush.bf16.msra.mxu0 0
      %632 = vmatpush.bf16.msra.mxu0 0
      %633 = vmatpush.bf16.msra.mxu0 0
      %634 = vmatpush.bf16.msra.mxu0 %v373
      %635 = vmatpush.bf16.msra.mxu0 %v372
      %636 = vmatpush.bf16.msra.mxu0 %v371
      %637 = vmatpush.bf16.msra.mxu0 %v370
      %638 = vmatmul.bf16.gmra.mxu0 %v607
      %v639 = vpop.f32.mrf.mxu0
      %v640 = vadd.f32 0.0, %v639
      %v641 = vpop.f32.mrf.mxu0
      %v642 = vadd.f32 0.0, %v641
      %643 = vmatmul.bf16.gmra.mxu0 %v610
      %v644 = vpop.f32.mrf.mxu0
      %v645 = vadd.f32 0.0, %v644
      %v646 = vpop.f32.mrf.mxu0
      %v647 = vadd.f32 0.0, %v646
      %648 = vmatmul.bf16.gmra.mxu0 %v613
      %v649 = vpop.f32.mrf.mxu0
      %v650 = vadd.f32 0.0, %v649
      %v651 = vpop.f32.mrf.mxu0
      %v652 = vadd.f32 0.0, %v651
      %653 = vmatmul.bf16.gmra.mxu0 %v616
      %v654 = vpop.f32.mrf.mxu0
      %v655 = vadd.f32 0.0, %v654
      %v656 = vpop.f32.mrf.mxu0
      %v657 = vadd.f32 0.0, %v656
      %658 = vmatmul.bf16.gmra.mxu0 %v619
      %v659 = vpop.f32.mrf.mxu0
      %v660 = vadd.f32 0.0, %v659
      %v661 = vpop.f32.mrf.mxu0
      %v662 = vadd.f32 0.0, %v661
      %663 = vmatmul.bf16.gmra.mxu0 %v622
      %v664 = vpop.f32.mrf.mxu0
      %v665 = vadd.f32 0.0, %v664
      %v666 = vpop.f32.mrf.mxu0
      %v667 = vadd.f32 0.0, %v666
      %668 = vmatmul.bf16.gmra.mxu0 %v625
      %v669 = vpop.f32.mrf.mxu0
      %v670 = vadd.f32 0.0, %v669
      %v671 = vpop.f32.mrf.mxu0
      %v672 = vadd.f32 0.0, %v671
      %673 = vmatmul.bf16.gmra.mxu0 %v628
      %v674 = vpop.f32.mrf.mxu0
      %v675 = vadd.f32 0.0, %v674
      %v676 = vpop.f32.mrf.mxu0
      %v677 = vadd.f32 0.0, %v676
      %678 = vdwg.mxu0
      %v679 = vsub.f32 %v314, %v640
      %v680 = vsub.f32 %v315, %v642
      %v681 = vsub.f32 %v316, %v645
      %v682 = vsub.f32 %v317, %v647
      %v683 = vsub.f32 %v318, %v650
      %v684 = vsub.f32 %v319, %v652
      %v685 = vsub.f32 %v320, %v655
      %v686 = vsub.f32 %v321, %v657
      %v687 = vsub.f32 %v322, %v660
      %v688 = vsub.f32 %v323, %v662
      %v689 = vsub.f32 %v324, %v665
      %v690 = vsub.f32 %v325, %v667
      %v691 = vsub.f32 %v326, %v670
      %v692 = vsub.f32 %v327, %v672
      %v693 = vsub.f32 %v328, %v675
      %v694 = vsub.f32 %v329, %v677
      %695 = vst.msk [vmem:[#allocation2] sm:$0xff] %vm374, %v679
      %696 = vst.msk [vmem:[#allocation2 + $0x8] sm:$0xff] %vm374, %v680
      %697 = vst.msk [vmem:[#allocation2 + $0x10] sm:$0xff] %vm374, %v681
      %698 = vst.msk [vmem:[#allocation2 + $0x18] sm:$0xff] %vm374, %v682
      %699 = vst.msk [vmem:[#allocation2 + $0x20] sm:$0xff] %vm374, %v683
      %700 = vst.msk [vmem:[#allocation2 + $0x28] sm:$0xff] %vm374, %v684
      %701 = vst.msk [vmem:[#allocation2 + $0x30] sm:$0xff] %vm374, %v685
      %702 = vst.msk [vmem:[#allocation2 + $0x38] sm:$0xff] %vm374, %v686
      %703 = vst.msk [vmem:[#allocation2 + $0x40] sm:$0xff] %vm374, %v687
      %704 = vst.msk [vmem:[#allocation2 + $0x48] sm:$0xff] %vm374, %v688
      %705 = vst.msk [vmem:[#allocation2 + $0x50] sm:$0xff] %vm374, %v689
      %706 = vst.msk [vmem:[#allocation2 + $0x58] sm:$0xff] %vm374, %v690
      %707 = vst.msk [vmem:[#allocation2 + $0x60] sm:$0xff] %vm374, %v691
      %708 = vst.msk [vmem:[#allocation2 + $0x68] sm:$0xff] %vm374, %v692
      %709 = vst.msk [vmem:[#allocation2 + $0x70] sm:$0xff] %vm374, %v693
      %710 = vst.msk [vmem:[#allocation2 + $0x78] sm:$0xff] %vm374, %v694
      %p711 = scmp.lt.s32.totalorder %s19, 1
      %s712 = scalar_select %p711, %s19, 1
      %p713 = scmp.lt.s32.totalorder %s21, 7
      %s714 = scalar_select %p713, %s21, 7
      %p715 = scmp.lt.s32.totalorder %s20, 0
      %s716 = scalar_select %p715, %s20, 0
      %s717 = sadd.s32 %s716, %s714
      %s718 = smul.addr %s712, 8
      %s719 = sadd.s32 %s717, %s718
      %s720 = scalar_lea.vmem %s3, %s719
      // Predicated region
      $region37: #{_lambda_.3} parent=31 // pred_check
        %p721 = pneg %p135
      $region38: #{_lambda_.3} parent=31 // pred_check_branch
        %723 = sbr.rel (%p721) target = $region40
      $region39: #{_lambda_.3} parent=31 // pred_region
        _
      $region40: #{_lambda_.3} parent=31 // pred_fallthru
        _
    $region32: #{_lambda_.3} parent=5 // pred_fallthru
      _
    %p724 = scmp.le.s32.totalorder 2, %s9
    // Predicated region
    $region41: #{_lambda_.3} parent=5 // pred_check
      %p725 = pneg %p724
    $region42: #{_lambda_.3} parent=5 // pred_check_branch
      %727 = sbr.rel (%p725) target = $region44
    $region43: #{_lambda_.3} parent=5 // pred_region
      %s728 = ssub.s32 %s9, 2
      // Predicated region
      $region45: #{_lambda_.3} parent=43 // pred_check
        %p729 = pneg %p141
      $region46: #{_lambda_.3} parent=43 // pred_check_branch
        %731 = sbr.rel (%p729) target = $region48
      $region47: #{_lambda_.3} parent=43 // pred_region
        %p732 = scmp.lt.s32.totalorder %s22, 1
        %s733 = scalar_select %p732, %s22, 1
        %p734 = scmp.lt.s32.totalorder %s24, 7
        %s735 = scalar_select %p734, %s24, 7
        %p736 = scmp.lt.s32.totalorder %s23, 0
        %s737 = scalar_select %p736, %s23, 0
        %s738 = sadd.s32 %s737, %s735
        %s739 = smul.addr %s733, 8
        %s740 = sadd.s32 %s738, %s739
        %s741 = scalar_lea.vmem %s3, %s740
      $region48: #{_lambda_.3} parent=43 // pred_fallthru
        _
    $region44: #{_lambda_.3} parent=5 // pred_fallthru
      _
  $region6: #{_lambda_.3} parent=0 // loop_footer
    %s13 = sadd.s32 1, %s9
  $region7: #{_lambda_.3} parent=0 // loop_footer_branch
    %8 = sbr.rel target = $region3
  $region8: #{_lambda_.3} parent=0 // loop_exit
    _

// kernel: _lambda_.2
$region0: #{_lambda_.2}
  #allocation0 [shape = 'u32[]', space=smem, size = 0x4, offset = 0x4, fixed_abs, tag = 'smem constant byte address 0x4 - core index']
  #allocation1 [shape = 'u32[72,128]{1,0:T(1,128)}', space=vmem, size = 0x9000, scoped, tag = 'internal scratch']
  %s0 = inlined_call_operand.vmem [shape: f32[2,1,136,8], index: 0, kind: input, shape index: {}]
  %s1 = inlined_call_operand.vmem [shape: bf16[16,64], index: 1, kind: input, shape index: {}]
  %s2 = inlined_call_operand.hbm [shape: bf16[128,64], index: 2, kind: input, shape index: {}]
  %s3 = inlined_call_operand.hbm [shape: bf16[128,64], index: 3, kind: input, shape index: {}]
  %s4 = inlined_call_operand.vmem [shape: bf16[192,64], index: 4, kind: input, shape index: {}]
  %s5 = inlined_call_operand.vmem [shape: f32[1,64], index: 5, kind: input, shape index: {}]
  %s6 = inlined_call_operand.vmem [shape: f32[1,64], index: 6, kind: input, shape index: {}]
  %s7 = inlined_call_operand.vmem [shape: f32[1,64], index: 7, kind: input, shape index: {}]
  %s8 = inlined_call_operand.vmem [shape: f32[1,64], index: 8, kind: input, shape index: {}]
  %s9 = inlined_call_operand.vmem [shape: bf16[2,128,64], index: 9, kind: output, shape index: {}]
  %s10 = sld [smem:[#allocation0]]
  $region77: #{_lambda_.2} parent=0
    _
  %s12 = ssub.s32 1, %s10
  %s13 = scalar_select 0, %s12, %s10
  $region1: #{_lambda_.2} parent=0
    #allocation2 [shape = 'u8[32768]{0}', space=vmem, size = 0x8000, scoped, tag = 'input window, operand 2, single buffered']
    #allocation3 [shape = 's32[2]{0}', space=sflag, size = 0x8, scoped, tag = 'scoped memory for _lambda_.2']
    #allocation4 [shape = 'u8[32768]{0}', space=vmem, size = 0x8000, scoped, tag = 'input window, operand 3, single buffered']
    #allocation5 [shape = 's32[1]{0}', space=sflag, size = 0x4, scoped, tag = 'scoped memory for _lambda_.2']
    %14 = vsyncpa [#allocation3], 0
    %15 = vsyncpa [#allocation5], 0
    loop: start=0, step=1, limit=4
    $region2: #{_lambda_.2} parent=1 // loop_pre_header
      _
    $region3: #{_lambda_.2} parent=1 // loop_header
      %s17 = sphi 0, %s21
      %p18 = scmp.ge.s32.totalorder %s17, 4
      %s24 = sphi 0, %s36
      %s25 = sphi 0, %s32
      %s26 = sphi 0, %s24
      %s27 = sphi 0, %s25
      %s28 = sphi 0, %s26
      %s29 = sphi 0, %s27
      %s41 = sphi 0, %s43
      %s44 = sphi 0, %s41
      %s45 = sphi 0, %s44
      %s61 = sphi 0, %s45
      %s65 = sphi 0, %s65
      %s67 = sphi 0, %s65
      %s68 = sphi 0, %s67
      %s82 = sphi 0, %s68
      %s86 = sphi 0, %s86
      %s88 = sphi 0, %s86
      %s89 = sphi 0, %s88
      %s103 = sphi 0, %s89
      %s107 = sphi 0, %s107
      %s109 = sphi 0, %s107
      %s110 = sphi 0, %s109
      %s124 = sphi 0, %s110
      %s128 = sphi 0, %s128
      %s130 = sphi 0, %s128
      %s131 = sphi 0, %s130
      %s145 = sphi 0, %s131
      %s149 = sphi 0, %s149
      %s151 = sphi 0, %s149
      %s152 = sphi 0, %s151
      %s166 = sphi 0, %s152
      %s170 = sphi 0, %s170
      %s172 = sphi 0, %s170
      %s173 = sphi 0, %s172
      %s187 = sphi 0, %s173
      %s191 = sphi 0, %s191
      %s193 = sphi 0, %s191
      %s194 = sphi 0, %s193
      %s208 = sphi 0, %s194
      %s212 = sphi 0, %s212
      %s214 = sphi 0, %s212
      %s215 = sphi 0, %s214
      %s229 = sphi 0, %s215
      %s237 = sphi 0, %s239
      %s240 = sphi 0, %s237
      %s241 = sphi 0, %s240
      %s257 = sphi 0, %s241
    $region4: #{_lambda_.2} parent=1 // loop_header_branch
      %20 = sbr.rel (%p18) target = $region8
    $region5: #{_lambda_.2} parent=1 // loop_body
      %s22 = ssub.s32 %s17, 1
      %s23 = ssub.s32 %s17, 2
      %s30 = sadd.s32 1, %s25
      %p31 = scmp.ge.s32.totalorder %s30, 1
      %s32 = scalar_select %p31, 0, %s30
      %s33 = sadd.s32 1, %s24
      %s34 = scalar_select %p31, %s33, %s24
      %p35 = scmp.ge.s32.totalorder %s34, 2
      %s36 = scalar_select %p35, 0, %s34
      %s37 = ssub.s32 %s24, %s36
      %s38 = ssub.s32 %s25, %s32
      %s39 = sor.u32 %s37, %s38
      %p40 = scmp.eq.s32.totalorder %s39, 0
      %s42 = sadd.s32 %s41, 1
      %s43 = scalar_select %p40, %s41, %s42
      %p46 = pneg %p40
      %p47 = scmp.eq.s32.totalorder %s17, 1
      %p48 = por %p46, %p47
      %p49 = scmp.ne.s32.totalorder %s41, %s44
      %p50 = scmp.eq.s32.totalorder %s17, 0
      %p51 = por %p49, %p50
      %p52 = scmp.ne.s32.totalorder %s41, %s44
      %p53 = scmp.eq.s32.totalorder %s22, 1
      %p54 = por %p52, %p53
      %p55 = scmp.ne.s32.totalorder %s44, %s45
      %p56 = scmp.eq.s32.totalorder %s22, 0
      %p57 = por %p55, %p56
      %p58 = scmp.ne.s32.totalorder %s44, %s45
      %p59 = scmp.eq.s32.totalorder %s23, 1
      %p60 = por %p58, %p59
      %p62 = scmp.ne.s32.totalorder %s45, %s61
      %p63 = scmp.eq.s32.totalorder %s23, 0
      %p64 = por %p62, %p63
      %s66 = sadd.s32 %s65, 1
      %p69 = scmp.eq.s32.totalorder %s17, 1
      %p70 = scmp.ne.s32.totalorder %s65, %s67
      %p71 = scmp.eq.s32.totalorder %s17, 0
      %p72 = por %p70, %p71
      %p73 = scmp.ne.s32.totalorder %s65, %s67
      %p74 = scmp.eq.s32.totalorder %s22, 1
      %p75 = por %p73, %p74
      %p76 = scmp.ne.s32.totalorder %s67, %s68
      %p77 = scmp.eq.s32.totalorder %s22, 0
      %p78 = por %p76, %p77
      %p79 = scmp.ne.s32.totalorder %s67, %s68
      %p80 = scmp.eq.s32.totalorder %s23, 1
      %p81 = por %p79, %p80
      %p83 = scmp.ne.s32.totalorder %s68, %s82
      %p84 = scmp.eq.s32.totalorder %s23, 0
      %p85 = por %p83, %p84
      %s87 = sadd.s32 %s86, 1
      %p90 = scmp.eq.s32.totalorder %s17, 1
      %p91 = scmp.ne.s32.totalorder %s86, %s88
      %p92 = scmp.eq.s32.totalorder %s17, 0
      %p93 = por %p91, %p92
      %p94 = scmp.ne.s32.totalorder %s86, %s88
      %p95 = scmp.eq.s32.totalorder %s22, 1
      %p96 = por %p94, %p95
      %p97 = scmp.ne.s32.totalorder %s88, %s89
      %p98 = scmp.eq.s32.totalorder %s22, 0
      %p99 = por %p97, %p98
      %p100 = scmp.ne.s32.totalorder %s88, %s89
      %p101 = scmp.eq.s32.totalorder %s23, 1
      %p102 = por %p100, %p101
      %p104 = scmp.ne.s32.totalorder %s89, %s103
      %p105 = scmp.eq.s32.totalorder %s23, 0
      %p106 = por %p104, %p105
      %s108 = sadd.s32 %s107, 1
      %p111 = scmp.eq.s32.totalorder %s17, 1
      %p112 = scmp.ne.s32.totalorder %s107, %s109
      %p113 = scmp.eq.s32.totalorder %s17, 0
      %p114 = por %p112, %p113
      %p115 = scmp.ne.s32.totalorder %s107, %s109
      %p116 = scmp.eq.s32.totalorder %s22, 1
      %p117 = por %p115, %p116
      %p118 = scmp.ne.s32.totalorder %s109, %s110
      %p119 = scmp.eq.s32.totalorder %s22, 0
      %p120 = por %p118, %p119
      %p121 = scmp.ne.s32.totalorder %s109, %s110
      %p122 = scmp.eq.s32.totalorder %s23, 1
      %p123 = por %p121, %p122
      %p125 = scmp.ne.s32.totalorder %s110, %s124
      %p126 = scmp.eq.s32.totalorder %s23, 0
      %p127 = por %p125, %p126
      %s129 = sadd.s32 %s128, 1
      %p132 = scmp.eq.s32.totalorder %s17, 1
      %p133 = scmp.ne.s32.totalorder %s128, %s130
      %p134 = scmp.eq.s32.totalorder %s17, 0
      %p135 = por %p133, %p134
      %p136 = scmp.ne.s32.totalorder %s128, %s130
      %p137 = scmp.eq.s32.totalorder %s22, 1
      %p138 = por %p136, %p137
      %p139 = scmp.ne.s32.totalorder %s130, %s131
      %p140 = scmp.eq.s32.totalorder %s22, 0
      %p141 = por %p139, %p140
      %p142 = scmp.ne.s32.totalorder %s130, %s131
      %p143 = scmp.eq.s32.totalorder %s23, 1
      %p144 = por %p142, %p143
      %p146 = scmp.ne.s32.totalorder %s131, %s145
      %p147 = scmp.eq.s32.totalorder %s23, 0
      %p148 = por %p146, %p147
      %s150 = sadd.s32 %s149, 1
      %p153 = scmp.eq.s32.totalorder %s17, 1
      %p154 = scmp.ne.s32.totalorder %s149, %s151
      %p155 = scmp.eq.s32.totalorder %s17, 0
      %p156 = por %p154, %p155
      %p157 = scmp.ne.s32.totalorder %s149, %s151
      %p158 = scmp.eq.s32.totalorder %s22, 1
      %p159 = por %p157, %p158
      %p160 = scmp.ne.s32.totalorder %s151, %s152
      %p161 = scmp.eq.s32.totalorder %s22, 0
      %p162 = por %p160, %p161
      %p163 = scmp.ne.s32.totalorder %s151, %s152
      %p164 = scmp.eq.s32.totalorder %s23, 1
      %p165 = por %p163, %p164
      %p167 = scmp.ne.s32.totalorder %s152, %s166
      %p168 = scmp.eq.s32.totalorder %s23, 0
      %p169 = por %p167, %p168
      %s171 = sadd.s32 %s170, 1
      %p174 = scmp.eq.s32.totalorder %s17, 1
      %p175 = scmp.ne.s32.totalorder %s170, %s172
      %p176 = scmp.eq.s32.totalorder %s17, 0
      %p177 = por %p175, %p176
      %p178 = scmp.ne.s32.totalorder %s170, %s172
      %p179 = scmp.eq.s32.totalorder %s22, 1
      %p180 = por %p178, %p179
      %p181 = scmp.ne.s32.totalorder %s172, %s173
      %p182 = scmp.eq.s32.totalorder %s22, 0
      %p183 = por %p181, %p182
      %p184 = scmp.ne.s32.totalorder %s172, %s173
      %p185 = scmp.eq.s32.totalorder %s23, 1
      %p186 = por %p184, %p185
      %p188 = scmp.ne.s32.totalorder %s173, %s187
      %p189 = scmp.eq.s32.totalorder %s23, 0
      %p190 = por %p188, %p189
      %s192 = sadd.s32 %s191, 1
      %p195 = scmp.eq.s32.totalorder %s17, 1
      %p196 = scmp.ne.s32.totalorder %s191, %s193
      %p197 = scmp.eq.s32.totalorder %s17, 0
      %p198 = por %p196, %p197
      %p199 = scmp.ne.s32.totalorder %s191, %s193
      %p200 = scmp.eq.s32.totalorder %s22, 1
      %p201 = por %p199, %p200
      %p202 = scmp.ne.s32.totalorder %s193, %s194
      %p203 = scmp.eq.s32.totalorder %s22, 0
      %p204 = por %p202, %p203
      %p205 = scmp.ne.s32.totalorder %s193, %s194
      %p206 = scmp.eq.s32.totalorder %s23, 1
      %p207 = por %p205, %p206
      %p209 = scmp.ne.s32.totalorder %s194, %s208
      %p210 = scmp.eq.s32.totalorder %s23, 0
      %p211 = por %p209, %p210
      %s213 = sadd.s32 %s212, 1
      %p216 = scmp.eq.s32.totalorder %s17, 1
      %p217 = scmp.ne.s32.totalorder %s212, %s214
      %p218 = scmp.eq.s32.totalorder %s17, 0
      %p219 = por %p217, %p218
      %p220 = scmp.ne.s32.totalorder %s212, %s214
      %p221 = scmp.eq.s32.totalorder %s22, 1
      %p222 = por %p220, %p221
      %p223 = scmp.ne.s32.totalorder %s214, %s215
      %p224 = scmp.eq.s32.totalorder %s22, 0
      %p225 = por %p223, %p224
      %p226 = scmp.ne.s32.totalorder %s214, %s215
      %p227 = scmp.eq.s32.totalorder %s23, 1
      %p228 = por %p226, %p227
      %p230 = scmp.ne.s32.totalorder %s215, %s229
      %p231 = scmp.eq.s32.totalorder %s23, 0
      %p232 = por %p230, %p231
      %s233 = ssub.s32 %s24, %s36
      %s234 = ssub.s32 %s25, %s32
      %s235 = sor.u32 %s233, %s234
      %p236 = scmp.eq.s32.totalorder %s235, 0
      %s238 = sadd.s32 %s237, 1
      %s239 = scalar_select %p236, %s237, %s238
      %p242 = pneg %p236
      %p243 = scmp.eq.s32.totalorder %s17, 1
      %p244 = por %p242, %p243
      %p245 = scmp.ne.s32.totalorder %s237, %s240
      %p246 = scmp.eq.s32.totalorder %s17, 0
      %p247 = por %p245, %p246
      %p248 = scmp.ne.s32.totalorder %s237, %s240
      %p249 = scmp.eq.s32.totalorder %s22, 1
      %p250 = por %p248, %p249
      %p251 = scmp.ne.s32.totalorder %s240, %s241
      %p252 = scmp.eq.s32.totalorder %s22, 0
      %p253 = por %p251, %p252
      %p254 = scmp.ne.s32.totalorder %s240, %s241
      %p255 = scmp.eq.s32.totalorder %s23, 1
      %p256 = por %p254, %p255
      %p258 = scmp.ne.s32.totalorder %s241, %s257
      %p259 = scmp.eq.s32.totalorder %s23, 0
      %p260 = por %p258, %p259
      %p261 = scmp.le.s32.totalorder 1, %s17
      %p262 = scmp.lt.s32.totalorder %s17, 3
      %p263 = pnand %p261, %p262
      %p264 = pneg %p263
      // Predicated region
      $region9: #{_lambda_.2} parent=5 // pred_check
        _
      $region10: #{_lambda_.2} parent=5 // pred_check_branch
        %266 = sbr.rel (%p263) target = $region12
      $region11: #{_lambda_.2} parent=5 // pred_region
        %s267 = ssub.s32 %s17, 1
        // Predicated region
        $region13: #{_lambda_.2} parent=11 // pred_check
          %p268 = pneg %p78
        $region14: #{_lambda_.2} parent=11 // pred_check_branch
          %270 = sbr.rel (%p268) target = $region16
        $region15: #{_lambda_.2} parent=11 // pred_region
          _
        $region16: #{_lambda_.2} parent=11 // pred_fallthru
          _
        // Predicated region
        $region17: #{_lambda_.2} parent=11 // pred_check
          %p271 = pneg %p99
        $region18: #{_lambda_.2} parent=11 // pred_check_branch
          %273 = sbr.rel (%p271) target = $region20
        $region19: #{_lambda_.2} parent=11 // pred_region
          %275 = vsyncadd [#allocation3], 0
          %s276 = sshll.u32 %s2, 4
          %s277 = int_to_ptr.hbm [resolvable:$true] %s276
          %s278 = sshll.u32 [#allocation2], 4
          %s279 = int_to_ptr.vmem [resolvable:$true] %s278
          %284 = dma.hbm_to_vmem [thread:$0]  %s277, 1024, %s279, [#allocation3], 64, 64, 4
        $region20: #{_lambda_.2} parent=11 // pred_fallthru
          _
        // Predicated region
        $region21: #{_lambda_.2} parent=11 // pred_check
          %p285 = pneg %p120
        $region22: #{_lambda_.2} parent=11 // pred_check_branch
          %287 = sbr.rel (%p285) target = $region24
        $region23: #{_lambda_.2} parent=11 // pred_region
          %289 = vsyncadd [#allocation5], 0
          %s290 = sshll.u32 %s3, 4
          %s291 = int_to_ptr.hbm [resolvable:$true] %s290
          %s292 = sshll.u32 [#allocation4], 4
          %s293 = int_to_ptr.vmem [resolvable:$true] %s292
          %298 = dma.hbm_to_vmem [thread:$0]  %s291, 1024, %s293, [#allocation5], 64, 64, 4
        $region24: #{_lambda_.2} parent=11 // pred_fallthru
          _
        // Predicated region
        $region25: #{_lambda_.2} parent=11 // pred_check
          %p299 = pneg %p141
        $region26: #{_lambda_.2} parent=11 // pred_check_branch
          %301 = sbr.rel (%p299) target = $region28
        $region27: #{_lambda_.2} parent=11 // pred_region
          _
        $region28: #{_lambda_.2} parent=11 // pred_fallthru
          _
        // Predicated region
        $region29: #{_lambda_.2} parent=11 // pred_check
          %p302 = pneg %p162
        $region30: #{_lambda_.2} parent=11 // pred_check_branch
          %304 = sbr.rel (%p302) target = $region32
        $region31: #{_lambda_.2} parent=11 // pred_region
          _
        $region32: #{_lambda_.2} parent=11 // pred_fallthru
          _
        // Predicated region
        $region33: #{_lambda_.2} parent=11 // pred_check
          %p305 = pneg %p183
        $region34: #{_lambda_.2} parent=11 // pred_check_branch
          %307 = sbr.rel (%p305) target = $region36
        $region35: #{_lambda_.2} parent=11 // pred_region
          _
        $region36: #{_lambda_.2} parent=11 // pred_fallthru
          _
        // Predicated region
        $region37: #{_lambda_.2} parent=11 // pred_check
          %p308 = pneg %p204
        $region38: #{_lambda_.2} parent=11 // pred_check_branch
          %310 = sbr.rel (%p308) target = $region40
        $region39: #{_lambda_.2} parent=11 // pred_region
          _
        $region40: #{_lambda_.2} parent=11 // pred_fallthru
          _
        // Predicated region
        $region41: #{_lambda_.2} parent=11 // pred_check
          %p311 = pneg %p225
        $region42: #{_lambda_.2} parent=11 // pred_check_branch
          %313 = sbr.rel (%p311) target = $region44
        $region43: #{_lambda_.2} parent=11 // pred_region
          _
        $region44: #{_lambda_.2} parent=11 // pred_fallthru
          _
      $region12: #{_lambda_.2} parent=5 // pred_fallthru
        _
      %p314 = scmp.lt.s32.totalorder %s17, 2
      // Predicated region
      $region45: #{_lambda_.2} parent=5 // pred_check
        %p315 = pneg %p314
      $region46: #{_lambda_.2} parent=5 // pred_check_branch
        %317 = sbr.rel (%p315) target = $region48
      $region47: #{_lambda_.2} parent=5 // pred_region
        // Predicated region
        $region49: #{_lambda_.2} parent=47 // pred_check
          %p318 = pneg %p51
        $region50: #{_lambda_.2} parent=47 // pred_check_branch
          %320 = sbr.rel (%p318) target = $region52
        $region51: #{_lambda_.2} parent=47 // pred_region
          %p321 = scmp.lt.s32.totalorder %s24, 1
          %s322 = scalar_select %p321, %s24, 1
          %p323 = scmp.lt.s32.totalorder %s25, 0
          %s324 = scalar_select %p323, %s25, 0
          %s325 = smul.addr %s324, 17
          %s326 = smul.addr %s322, 17
          %s327 = sadd.s32 %s325, %s326
          %s328 = smul.addr %s327, 8
          %s329 = scalar_lea.vmem %s0, %s328
        $region52: #{_lambda_.2} parent=47 // pred_fallthru
          _
      $region48: #{_lambda_.2} parent=5 // pred_fallthru
        _
      %p330 = scmp.le.s32.totalorder 1, %s17
      %p331 = scmp.lt.s32.totalorder %s17, 3
      %p332 = pnand %p330, %p331
      %p333 = pneg %p332
      // Predicated region
      $region53: #{_lambda_.2} parent=5 // pred_check
        _
      $region54: #{_lambda_.2} parent=5 // pred_check_branch
        %335 = sbr.rel (%p332) target = $region56
      $region55: #{_lambda_.2} parent=5 // pred_region
        %s336 = ssub.s32 %s17, 1
        // Predicated region
        $region57: #{_lambda_.2} parent=55 // pred_check
          %p337 = pneg %p99
        $region58: #{_lambda_.2} parent=55 // pred_check_branch
          %339 = sbr.rel (%p337) target = $region60
        $region59: #{_lambda_.2} parent=55 // pred_region
          %341 = dma.done [#allocation3], 1024
        $region60: #{_lambda_.2} parent=55 // pred_fallthru
          _
        // Predicated region
        $region61: #{_lambda_.2} parent=55 // pred_check
          %p342 = pneg %p120
        $region62: #{_lambda_.2} parent=55 // pred_check_branch
          %344 = sbr.rel (%p342) target = $region64
        $region63: #{_lambda_.2} parent=55 // pred_region
          %346 = dma.done [#allocation5], 1024
        $region64: #{_lambda_.2} parent=55 // pred_fallthru
          _
        %p347 = scmp.lt.s32.totalorder %s26, 1
        %s348 = scalar_select %p347, %s26, 1
        %p349 = scmp.lt.s32.totalorder %s27, 0
        %s350 = scalar_select %p349, %s27, 0
        %s351 = smul.addr %s350, 17
        %s352 = smul.addr %s348, 17
        %s353 = sadd.s32 %s351, %s352
        %s354 = smul.addr %s353, 8
        %s355 = scalar_lea.vmem %s0, %s354
        %p356 = pneg %p57
        %p357 = pneg %p54
        %p358 = pneg %p78
        %p359 = pneg %p75
        %p360 = pneg %p99
        %p361 = pneg %p96
        %p362 = pneg %p120
        %p363 = pneg %p117
        %p364 = pneg %p141
        %p365 = pneg %p138
        %p366 = pneg %p162
        %p367 = pneg %p159
        %p368 = pneg %p183
        %p369 = pneg %p180
        %p370 = pneg %p204
        %p371 = pneg %p201
        %p372 = pneg %p225
        %p373 = pneg %p222
        %p374 = pneg %p253
        %p375 = pneg %p250
        %s376 = smul.u32 16, %s27
        %p377 = scmp.lt.s32.totalorder %s26, 1
        %s378 = scalar_select %p377, %s26, 1
        %p379 = scmp.lt.s32.totalorder %s376, 15
        %s380 = scalar_select %p379, %s376, 15
        %s381 = smul.addr %s378, 16
        %s382 = sadd.s32 %s380, %s381
        %s383 = smul.addr %s382, 4
        %s384 = scalar_lea.vmem %s9, %s383
        %p385 = scmp.lt.s32.totalorder %s26, 1
        %s386 = scalar_select %p385, %s26, 1
        %p387 = scmp.lt.s32.totalorder %s27, 0
        %s388 = scalar_select %p387, %s27, 0
        %s389 = smul.addr %s388, 17
        %s390 = smul.addr %s386, 17
        %s391 = sadd.s32 %s389, %s390
        %s392 = smul.addr %s391, 8
        %s393 = scalar_lea.vmem %s0, %s392
        %s394 = smul.u32 16, %s27
        %p395 = scmp.lt.s32.totalorder %s26, 1
        %s396 = scalar_select %p395, %s26, 1
        %p397 = scmp.lt.s32.totalorder %s394, 15
        %s398 = scalar_select %p397, %s394, 15
        %s399 = smul.addr %s396, 16
        %s400 = sadd.s32 %s398, %s399
        %s401 = smul.addr %s400, 4
        %s402 = scalar_lea.vmem %s9, %s401
        %s403 = smul.u32 16, %s27
        %v405 = vld [vmem:[%s393] sm:$0xff]
        %v406 = vld [vmem:[%s393 + $0x8] sm:$0xff]
        %v407 = vld [vmem:[%s393 + $0x10] sm:$0xff]
        %v408 = vld [vmem:[%s393 + $0x18] sm:$0xff]
        %v409 = vld [vmem:[%s393 + $0x20] sm:$0xff]
        %v410 = vld [vmem:[%s393 + $0x28] sm:$0xff]
        %v411 = vld [vmem:[%s393 + $0x30] sm:$0xff]
        %v412 = vld [vmem:[%s393 + $0x38] sm:$0xff]
        %v413 = vld [vmem:[%s393 + $0x40] sm:$0xff]
        %v414 = vld [vmem:[%s393 + $0x48] sm:$0xff]
        %v415 = vld [vmem:[%s393 + $0x50] sm:$0xff]
        %v416 = vld [vmem:[%s393 + $0x58] sm:$0xff]
        %v417 = vld [vmem:[%s393 + $0x60] sm:$0xff]
        %v418 = vld [vmem:[%s393 + $0x68] sm:$0xff]
        %v419 = vld [vmem:[%s393 + $0x70] sm:$0xff]
        %v420 = vld [vmem:[%s393 + $0x78] sm:$0xff]
        %v421 = vld [vmem:[%s393 + $0x80] sm:$0xff]
        %v422 = vpack.c.bf16 %v405, %v405
        %v423 = vpack.c.bf16 %v406, %v406
        %v424 = vpack.c.bf16 %v407, %v407
        %v425 = vpack.c.bf16 %v408, %v408
        %v426 = vpack.c.bf16 %v409, %v409
        %v427 = vpack.c.bf16 %v410, %v410
        %v428 = vpack.c.bf16 %v411, %v411
        %v429 = vpack.c.bf16 %v412, %v412
        %v430 = vpack.c.bf16 %v413, %v413
        %v431 = vpack.c.bf16 %v414, %v414
        %v432 = vpack.c.bf16 %v415, %v415
        %v433 = vpack.c.bf16 %v416, %v416
        %v434 = vpack.c.bf16 %v417, %v417
        %v435 = vpack.c.bf16 %v418, %v418
        %v436 = vpack.c.bf16 %v419, %v419
        %v437 = vpack.c.bf16 %v420, %v420
        %v438 = vpack.c.bf16 %v421, %v421
        %v439 = vld [vmem:[%s1] sm:$0xf]
        %v440 = vld [vmem:[%s1 + $0x4] sm:$0xf]
        %v458 = vunpack.c.l.b16 %v422
        %v459 = vunpack.c.l.b16 %v423
        %v460 = vunpack.c.l.b16 %v424
        %v461 = vunpack.c.l.b16 %v425
        %v462 = vunpack.c.l.b16 %v426
        %v463 = vunpack.c.l.b16 %v427
        %v464 = vunpack.c.l.b16 %v428
        %v465 = vunpack.c.l.b16 %v429
        %v466 = vunpack.c.l.b16 %v430
        %v467 = vunpack.c.l.b16 %v431
        %v468 = vunpack.c.l.b16 %v432
        %v469 = vunpack.c.l.b16 %v433
        %v470 = vunpack.c.l.b16 %v434
        %v471 = vunpack.c.l.b16 %v435
        %v472 = vunpack.c.l.b16 %v436
        %v473 = vunpack.c.l.b16 %v437
        %v474 = vunpack.c.l.b16 %v438
        %v475 = vpack.c.b16 %v459, %v458
        %v476 = vpack.c.b16 %v461, %v460
        %v477 = vpack.c.b16 %v463, %v462
        %v478 = vpack.c.b16 %v465, %v464
        %v479 = vpack.c.b16 %v467, %v466
        %v480 = vpack.c.b16 %v469, %v468
        %v481 = vpack.c.b16 %v471, %v470
        %v482 = vpack.c.b16 %v473, %v472
        %v483 = vpack.c.b16 %v474, %v474
        %vm484 = vsmask.f32 7424
        %v486 = vshrl.u32 %v475, 16
        %v488 = vshll.u32 %v475, 16
        %v490 = vrot.slane %v488, 1
        %v491 = vor.u32 %v486, %v490
        %v493 = vshll.u32 %v476, 16
        %v495 = vrot.slane %v493, 1
        %v496 = vsel %vm484, %v491, %v495
        %v497 = vshrl.u32 %v476, 16
        %v499 = vor.u32 %v497, %v495
        %v501 = vshll.u32 %v477, 16
        %v503 = vrot.slane %v501, 1
        %v504 = vsel %vm484, %v499, %v503
        %v505 = vshrl.u32 %v477, 16
        %v507 = vor.u32 %v505, %v503
        %v509 = vshll.u32 %v478, 16
        %v511 = vrot.slane %v509, 1
        %v512 = vsel %vm484, %v507, %v511
        %v513 = vshrl.u32 %v478, 16
        %v515 = vor.u32 %v513, %v511
        %v517 = vshll.u32 %v479, 16
        %v519 = vrot.slane %v517, 1
        %v520 = vsel %vm484, %v515, %v519
        %v521 = vshrl.u32 %v479, 16
        %v523 = vor.u32 %v521, %v519
        %v525 = vshll.u32 %v480, 16
        %v527 = vrot.slane %v525, 1
        %v528 = vsel %vm484, %v523, %v527
        %v529 = vshrl.u32 %v480, 16
        %v531 = vor.u32 %v529, %v527
        %v533 = vshll.u32 %v481, 16
        %v535 = vrot.slane %v533, 1
        %v536 = vsel %vm484, %v531, %v535
        %v537 = vshrl.u32 %v481, 16
        %v539 = vor.u32 %v537, %v535
        %v541 = vshll.u32 %v482, 16
        %v543 = vrot.slane %v541, 1
        %v544 = vsel %vm484, %v539, %v543
        %v545 = vshrl.u32 %v482, 16
        %v547 = vor.u32 %v545, %v543
        %v549 = vshll.u32 %v483, 16
        %v551 = vrot.slane %v549, 1
        %v552 = vsel %vm484, %v547, %v551
        %v553 = vshrl.u32 %v483, 16
        %v555 = vor.u32 %v553, %v551
        %vm556 = vcmask 64512
        %v558 = vsel %vm556, %v496, 0
        %v561 = vsel %vm556, %v504, 0
        %v564 = vsel %vm556, %v512, 0
        %v567 = vsel %vm556, %v520, 0
        %v570 = vsel %vm556, %v528, 0
        %v573 = vsel %vm556, %v536, 0
        %v576 = vsel %vm556, %v544, 0
        %v579 = vsel %vm556, %v552, 0
        %v582 = vsel %vm556, %v555, 0
        %vm584 = vcmask 1043456
        %v586 = vsel %vm584, %v440, 0
        %588 = vmatpush.bf16.msra.mxu0 0
        %589 = vmatpush.bf16.msra.mxu0 0
        %590 = vmatpush.bf16.msra.mxu0 0
        %591 = vmatpush.bf16.msra.mxu0 0
        %592 = vmatpush.bf16.msra.mxu0 0
        %593 = vmatpush.bf16.msra.mxu0 0
        %594 = vmatpush.bf16.msra.mxu0 0
        %595 = vmatpush.bf16.msra.mxu0 %v586
        %596 = vmatmul.bf16.gmra.mxu0 %v558
        %v597 = vpop.f32.mrf.mxu0
        %v598 = vadd.f32 0.0, %v597
        %v599 = vpop.f32.mrf.mxu0
        %v600 = vadd.f32 0.0, %v599
        %601 = vmatmul.bf16.gmra.mxu0 %v561
        %v602 = vpop.f32.mrf.mxu0
        %v603 = vadd.f32 0.0, %v602
        %v604 = vpop.f32.mrf.mxu0
        %v605 = vadd.f32 0.0, %v604
        %606 = vmatmul.bf16.gmra.mxu0 %v564
        %v607 = vpop.f32.mrf.mxu0
        %v608 = vadd.f32 0.0, %v607
        %v609 = vpop.f32.mrf.mxu0
        %v610 = vadd.f32 0.0, %v609
        %611 = vmatmul.bf16.gmra.mxu0 %v567
        %v612 = vpop.f32.mrf.mxu0
        %v613 = vadd.f32 0.0, %v612
        %v614 = vpop.f32.mrf.mxu0
        %v615 = vadd.f32 0.0, %v614
        %616 = vmatmul.bf16.gmra.mxu0 %v570
        %v617 = vpop.f32.mrf.mxu0
        %v618 = vadd.f32 0.0, %v617
        %v619 = vpop.f32.mrf.mxu0
        %v620 = vadd.f32 0.0, %v619
        %621 = vmatmul.bf16.gmra.mxu0 %v573
        %v622 = vpop.f32.mrf.mxu0
        %v623 = vadd.f32 0.0, %v622
        %v624 = vpop.f32.mrf.mxu0
        %v625 = vadd.f32 0.0, %v624
        %626 = vmatmul.bf16.gmra.mxu0 %v576
        %v627 = vpop.f32.mrf.mxu0
        %v628 = vadd.f32 0.0, %v627
        %v629 = vpop.f32.mrf.mxu0
        %v630 = vadd.f32 0.0, %v629
        %631 = vmatmul.bf16.gmra.mxu0 %v579
        %v632 = vpop.f32.mrf.mxu0
        %v633 = vadd.f32 0.0, %v632
        %v634 = vpop.f32.mrf.mxu0
        %v635 = vadd.f32 0.0, %v634
        %636 = vmatmul.bf16.gmra.mxu0 %v582
        %v637 = vpop.f32.mrf.mxu0
        %v638 = vadd.f32 0.0, %v637
        %v639 = vpop.f32.mrf.mxu0
        %640 = vdwg.mxu0
        %v641 = vsel %vm556, %v475, 0
        %v643 = vsel %vm556, %v476, 0
        %v645 = vsel %vm556, %v477, 0
        %v647 = vsel %vm556, %v478, 0
        %v649 = vsel %vm556, %v479, 0
        %v651 = vsel %vm556, %v480, 0
        %v653 = vsel %vm556, %v481, 0
        %v655 = vsel %vm556, %v482, 0
        %v657 = vsel %vm556, %v483, 0
        %v660 = vsel %vm584, %v439, 0
        %662 = vmatpush.bf16.msra.mxu0 0
        %663 = vmatpush.bf16.msra.mxu0 0
        %664 = vmatpush.bf16.msra.mxu0 0
        %665 = vmatpush.bf16.msra.mxu0 0
        %666 = vmatpush.bf16.msra.mxu0 0
        %667 = vmatpush.bf16.msra.mxu0 0
        %668 = vmatpush.bf16.msra.mxu0 0
        %669 = vmatpush.bf16.msra.mxu0 %v660
        %670 = vmatmul.bf16.gmra.mxu0 %v641
        %v671 = vpop.f32.mrf.mxu0
        %v672 = vadd.f32 %v598, %v671
        %v673 = vpop.f32.mrf.mxu0
        %v674 = vadd.f32 %v600, %v673
        %675 = vmatmul.bf16.gmra.mxu0 %v643
        %v676 = vpop.f32.mrf.mxu0
        %v677 = vadd.f32 %v603, %v676
        %v678 = vpop.f32.mrf.mxu0
        %v679 = vadd.f32 %v605, %v678
        %680 = vmatmul.bf16.gmra.mxu0 %v645
        %v681 = vpop.f32.mrf.mxu0
        %v682 = vadd.f32 %v608, %v681
        %v683 = vpop.f32.mrf.mxu0
        %v684 = vadd.f32 %v610, %v683
        %685 = vmatmul.bf16.gmra.mxu0 %v647
        %v686 = vpop.f32.mrf.mxu0
        %v687 = vadd.f32 %v613, %v686
        %v688 = vpop.f32.mrf.mxu0
        %v689 = vadd.f32 %v615, %v688
        %690 = vmatmul.bf16.gmra.mxu0 %v649
        %v691 = vpop.f32.mrf.mxu0
        %v692 = vadd.f32 %v618, %v691
        %v693 = vpop.f32.mrf.mxu0
        %v694 = vadd.f32 %v620, %v693
        %695 = vmatmul.bf16.gmra.mxu0 %v651
        %v696 = vpop.f32.mrf.mxu0
        %v697 = vadd.f32 %v623, %v696
        %v698 = vpop.f32.mrf.mxu0
        %v699 = vadd.f32 %v625, %v698
        %700 = vmatmul.bf16.gmra.mxu0 %v653
        %v701 = vpop.f32.mrf.mxu0
        %v702 = vadd.f32 %v628, %v701
        %v703 = vpop.f32.mrf.mxu0
        %v704 = vadd.f32 %v630, %v703
        %705 = vmatmul.bf16.gmra.mxu0 %v655
        %v706 = vpop.f32.mrf.mxu0
        %v707 = vadd.f32 %v633, %v706
        %v708 = vpop.f32.mrf.mxu0
        %v709 = vadd.f32 %v635, %v708
        %710 = vmatmul.bf16.gmra.mxu0 %v657
        %v711 = vpop.f32.mrf.mxu0
        %v712 = vadd.f32 %v638, %v711
        %v713 = vpop.f32.mrf.mxu0
        %714 = vdwg.mxu0
        %v715 = vld [vmem:[%s5] sm:$0x1]
        %v717 = vperm.slane %v715, 0
        %v719 = vadd.f32 %v672, %v717
        %v720 = vadd.f32 %v674, %v717
        %v721 = vadd.f32 %v677, %v717
        %v722 = vadd.f32 %v679, %v717
        %v723 = vadd.f32 %v682, %v717
        %v724 = vadd.f32 %v684, %v717
        %v725 = vadd.f32 %v687, %v717
        %v726 = vadd.f32 %v689, %v717
        %v727 = vadd.f32 %v692, %v717
        %v728 = vadd.f32 %v694, %v717
        %v729 = vadd.f32 %v697, %v717
        %v730 = vadd.f32 %v699, %v717
        %v731 = vadd.f32 %v702, %v717
        %v732 = vadd.f32 %v704, %v717
        %v733 = vadd.f32 %v707, %v717
        %v734 = vadd.f32 %v709, %v717
        %v735 = vadd.f32 %v712, %v717
        %vm736 = vcmp.gt.f32.partialorder %v719, 0.0
        %vm737 = vcmp.gt.f32.partialorder %v720, 0.0
        %vm738 = vcmp.gt.f32.partialorder %v721, 0.0
        %vm739 = vcmp.gt.f32.partialorder %v722, 0.0
        %vm740 = vcmp.gt.f32.partialorder %v723, 0.0
        %vm741 = vcmp.gt.f32.partialorder %v724, 0.0
        %vm742 = vcmp.gt.f32.partialorder %v725, 0.0
        %vm743 = vcmp.gt.f32.partialorder %v726, 0.0
        %vm744 = vcmp.gt.f32.partialorder %v727, 0.0
        %vm745 = vcmp.gt.f32.partialorder %v728, 0.0
        %vm746 = vcmp.gt.f32.partialorder %v729, 0.0
        %vm747 = vcmp.gt.f32.partialorder %v730, 0.0
        %vm748 = vcmp.gt.f32.partialorder %v731, 0.0
        %vm749 = vcmp.gt.f32.partialorder %v732, 0.0
        %vm750 = vcmp.gt.f32.partialorder %v733, 0.0
        %vm751 = vcmp.gt.f32.partialorder %v734, 0.0
        %vm752 = vcmp.gt.f32.partialorder %v735, 0.0
        %v753 = vmin.f32 %v719, 0.0
        %v754 = vmin.f32 %v720, 0.0
        %v755 = vmin.f32 %v721, 0.0
        %v756 = vmin.f32 %v722, 0.0
        %v757 = vmin.f32 %v723, 0.0
        %v758 = vmin.f32 %v724, 0.0
        %v759 = vmin.f32 %v725, 0.0
        %v760 = vmin.f32 %v726, 0.0
        %v761 = vmin.f32 %v727, 0.0
        %v762 = vmin.f32 %v728, 0.0
        %v763 = vmin.f32 %v729, 0.0
        %v764 = vmin.f32 %v730, 0.0
        %v765 = vmin.f32 %v731, 0.0
        %v766 = vmin.f32 %v732, 0.0
        %v767 = vmin.f32 %v733, 0.0
        %v768 = vmin.f32 %v734, 0.0
        %v769 = vmin.f32 %v735, 0.0
        %v770 = vmul.f32 %v753, 1.442695
        %v771 = vpow.pop %v770
        %v772 = vmul.f32 %v754, 1.442695
        %v773 = vpow.pop %v772
        %v774 = vmul.f32 %v755, 1.442695
        %v775 = vpow.pop %v774
        %v776 = vmul.f32 %v756, 1.442695
        %v777 = vpow.pop %v776
        %v778 = vmul.f32 %v757, 1.442695
        %v779 = vpow.pop %v778
        %v780 = vmul.f32 %v758, 1.442695
        %v781 = vpow.pop %v780
        %v782 = vmul.f32 %v759, 1.442695
        %v783 = vpow.pop %v782
        %v784 = vmul.f32 %v760, 1.442695
        %v785 = vpow.pop %v784
        %v786 = vmul.f32 %v761, 1.442695
        %v787 = vpow.pop %v786
        %v788 = vmul.f32 %v762, 1.442695
        %v789 = vpow.pop %v788
        %v790 = vmul.f32 %v763, 1.442695
        %v791 = vpow.pop %v790
        %v792 = vmul.f32 %v764, 1.442695
        %v793 = vpow.pop %v792
        %v794 = vmul.f32 %v765, 1.442695
        %v795 = vpow.pop %v794
        %v796 = vmul.f32 %v766, 1.442695
        %v797 = vpow.pop %v796
        %v798 = vmul.f32 %v767, 1.442695
        %v799 = vpow.pop %v798
        %v800 = vmul.f32 %v768, 1.442695
        %v801 = vpow.pop %v800
        %v802 = vmul.f32 %v769, 1.442695
        %v803 = vpow.pop %v802
        %v804 = vsub.f32 %v771, 1.0
        %v805 = vsub.f32 %v773, 1.0
        %v806 = vsub.f32 %v775, 1.0
        %v807 = vsub.f32 %v777, 1.0
        %v808 = vsub.f32 %v779, 1.0
        %v809 = vsub.f32 %v781, 1.0
        %v810 = vsub.f32 %v783, 1.0
        %v811 = vsub.f32 %v785, 1.0
        %v812 = vsub.f32 %v787, 1.0
        %v813 = vsub.f32 %v789, 1.0
        %v814 = vsub.f32 %v791, 1.0
        %v815 = vsub.f32 %v793, 1.0
        %v816 = vsub.f32 %v795, 1.0
        %v817 = vsub.f32 %v797, 1.0
        %v818 = vsub.f32 %v799, 1.0
        %v819 = vsub.f32 %v801, 1.0
        %v820 = vsub.f32 %v803, 1.0
        %v821 = vsel %vm736, %v719, %v804
        %v822 = vsel %vm737, %v720, %v805
        %v823 = vsel %vm738, %v721, %v806
        %v824 = vsel %vm739, %v722, %v807
        %v825 = vsel %vm740, %v723, %v808
        %v826 = vsel %vm741, %v724, %v809
        %v827 = vsel %vm742, %v725, %v810
        %v828 = vsel %vm743, %v726, %v811
        %v829 = vsel %vm744, %v727, %v812
        %v830 = vsel %vm745, %v728, %v813
        %v831 = vsel %vm746, %v729, %v814
        %v832 = vsel %vm747, %v730, %v815
        %v833 = vsel %vm748, %v731, %v816
        %v834 = vsel %vm749, %v732, %v817
        %v835 = vsel %vm750, %v733, %v818
        %v836 = vsel %vm751, %v734, %v819
        %v837 = vsel %vm752, %v735, %v820
        %v838 = vpack.c.bf16 %v821, %v821
        %v839 = vpack.c.bf16 %v822, %v822
        %v840 = vpack.c.bf16 %v823, %v823
        %v841 = vpack.c.bf16 %v824, %v824
        %v842 = vpack.c.bf16 %v825, %v825
        %v843 = vpack.c.bf16 %v826, %v826
        %v844 = vpack.c.bf16 %v827, %v827
        %v845 = vpack.c.bf16 %v828, %v828
        %v846 = vpack.c.bf16 %v829, %v829
        %v847 = vpack.c.bf16 %v830, %v830
        %v848 = vpack.c.bf16 %v831, %v831
        %v849 = vpack.c.bf16 %v832, %v832
        %v850 = vpack.c.bf16 %v833, %v833
        %v851 = vpack.c.bf16 %v834, %v834
        %v852 = vpack.c.bf16 %v835, %v835
        %v853 = vpack.c.bf16 %v836, %v836
        %v854 = vpack.c.bf16 %v837, %v837
        %v855 = vld [vmem:[#allocation2] sm:$0xf]
        %v856 = vld [vmem:[#allocation2 + $0x4] sm:$0xf]
        %v857 = vld [vmem:[#allocation2 + $0x8] sm:$0xf]
        %v858 = vld [vmem:[#allocation2 + $0xc] sm:$0xf]
        %v859 = vld [vmem:[#allocation2 + $0x10] sm:$0xf]
        %v860 = vld [vmem:[#allocation2 + $0x14] sm:$0xf]
        %v861 = vld [vmem:[#allocation2 + $0x18] sm:$0xf]
        %v862 = vld [vmem:[#allocation2 + $0x1c] sm:$0xf]
        %v863 = vld [vmem:[#allocation2 + $0x20] sm:$0xf]
        %v864 = vld [vmem:[#allocation2 + $0x24] sm:$0xf]
        %v865 = vld [vmem:[#allocation2 + $0x28] sm:$0xf]
        %v866 = vld [vmem:[#allocation2 + $0x2c] sm:$0xf]
        %v867 = vld [vmem:[#allocation2 + $0x30] sm:$0xf]
        %v868 = vld [vmem:[#allocation2 + $0x34] sm:$0xf]
        %v869 = vld [vmem:[#allocation2 + $0x38] sm:$0xf]
        %v870 = vld [vmem:[#allocation2 + $0x3c] sm:$0xf]
        %v888 = vunpack.c.l.b16 %v838
        %v889 = vunpack.c.l.b16 %v839
        %v890 = vunpack.c.l.b16 %v840
        %v891 = vunpack.c.l.b16 %v841
        %v892 = vunpack.c.l.b16 %v842
        %v893 = vunpack.c.l.b16 %v843
        %v894 = vunpack.c.l.b16 %v844
        %v895 = vunpack.c.l.b16 %v845
        %v896 = vunpack.c.l.b16 %v846
        %v897 = vunpack.c.l.b16 %v847
        %v898 = vunpack.c.l.b16 %v848
        %v899 = vunpack.c.l.b16 %v849
        %v900 = vunpack.c.l.b16 %v850
        %v901 = vunpack.c.l.b16 %v851
        %v902 = vunpack.c.l.b16 %v852
        %v903 = vunpack.c.l.b16 %v853
        %v904 = vunpack.c.l.b16 %v854
        %v905 = vpack.c.b16 %v889, %v888
        %v906 = vpack.c.b16 %v891, %v890
        %v907 = vpack.c.b16 %v893, %v892
        %v908 = vpack.c.b16 %v895, %v894
        %v909 = vpack.c.b16 %v897, %v896
        %v910 = vpack.c.b16 %v899, %v898
        %v911 = vpack.c.b16 %v901, %v900
        %v912 = vpack.c.b16 %v903, %v902
        %v913 = vpack.c.b16 %v904, %v904
        %v915 = vshrl.u32 %v905, 16
        %v917 = vshll.u32 %v905, 16
        %v919 = vrot.slane %v917, 1
        %v920 = vor.u32 %v915, %v919
        %v922 = vshll.u32 %v906, 16
        %v924 = vrot.slane %v922, 1
        %v925 = vsel %vm484, %v920, %v924
        %v926 = vshrl.u32 %v906, 16
        %v928 = vor.u32 %v926, %v924
        %v930 = vshll.u32 %v907, 16
        %v932 = vrot.slane %v930, 1
        %v933 = vsel %vm484, %v928, %v932
        %v934 = vshrl.u32 %v907, 16
        %v936 = vor.u32 %v934, %v932
        %v938 = vshll.u32 %v908, 16
        %v940 = vrot.slane %v938, 1
        %v941 = vsel %vm484, %v936, %v940
        %v942 = vshrl.u32 %v908, 16
        %v944 = vor.u32 %v942, %v940
        %v946 = vshll.u32 %v909, 16
        %v948 = vrot.slane %v946, 1
        %v949 = vsel %vm484, %v944, %v948
        %v950 = vshrl.u32 %v909, 16
        %v952 = vor.u32 %v950, %v948
        %v954 = vshll.u32 %v910, 16
        %v956 = vrot.slane %v954, 1
        %v957 = vsel %vm484, %v952, %v956
        %v958 = vshrl.u32 %v910, 16
        %v960 = vor.u32 %v958, %v956
        %v962 = vshll.u32 %v911, 16
        %v964 = vrot.slane %v962, 1
        %v965 = vsel %vm484, %v960, %v964
        %v966 = vshrl.u32 %v911, 16
        %v968 = vor.u32 %v966, %v964
        %v970 = vshll.u32 %v912, 16
        %v972 = vrot.slane %v970, 1
        %v973 = vsel %vm484, %v968, %v972
        %v974 = vshrl.u32 %v912, 16
        %v976 = vor.u32 %v974, %v972
        %v978 = vshll.u32 %v913, 16
        %v980 = vrot.slane %v978, 1
        %v981 = vsel %vm484, %v976, %v980
        %v982 = vshrl.u32 %v913, 16
        %v984 = vor.u32 %v982, %v980
        %v993 = vunpack.c.l.b16 %v863
        %v994 = vunpack.c.l.b16 %v864
        %v995 = vunpack.c.l.b16 %v865
        %v996 = vunpack.c.l.b16 %v866
        %v997 = vunpack.c.l.b16 %v867
        %v998 = vunpack.c.l.b16 %v868
        %v999 = vunpack.c.l.b16 %v869
        %v1000 = vunpack.c.l.b16 %v870
        %v1001 = vpack.c.b16 %v994, %v993
        %v1002 = vpack.c.b16 %v996, %v995
        %v1003 = vpack.c.b16 %v998, %v997
        %v1004 = vpack.c.b16 %v1000, %v999
        %vm1009 = vcmask 523264
        %v1011 = vsel %vm1009, %v925, 0
        %v1014 = vsel %vm1009, %v933, 0
        %v1017 = vsel %vm1009, %v941, 0
        %v1020 = vsel %vm1009, %v949, 0
        %v1023 = vsel %vm1009, %v957, 0
        %v1026 = vsel %vm1009, %v965, 0
        %v1029 = vsel %vm1009, %v973, 0
        %v1032 = vsel %vm1009, %v981, 0
        %v1035 = vsel %vm1009, %v984, 0
        %1037 = vmatpush.bf16.msra.mxu0 0
        %1038 = vmatpush.bf16.msra.mxu0 0
        %1039 = vmatpush.bf16.msra.mxu0 0
        %1040 = vmatpush.bf16.msra.mxu0 0
        %1041 = vmatpush.bf16.msra.mxu0 %v1004
        %1042 = vmatpush.bf16.msra.mxu0 %v1003
        %1043 = vmatpush.bf16.msra.mxu0 %v1002
        %1044 = vmatpush.bf16.msra.mxu0 %v1001
        %1045 = vmatmul.bf16.gmra.mxu0 %v1011
        %v1046 = vpop.f32.mrf.mxu0
        %v1047 = vadd.f32 0.0, %v1046
        %v1048 = vpop.f32.mrf.mxu0
        %v1049 = vadd.f32 0.0, %v1048
        %1050 = vmatmul.bf16.gmra.mxu0 %v1014
        %v1051 = vpop.f32.mrf.mxu0
        %v1052 = vadd.f32 0.0, %v1051
        %v1053 = vpop.f32.mrf.mxu0
        %v1054 = vadd.f32 0.0, %v1053
        %1055 = vmatmul.bf16.gmra.mxu0 %v1017
        %v1056 = vpop.f32.mrf.mxu0
        %v1057 = vadd.f32 0.0, %v1056
        %v1058 = vpop.f32.mrf.mxu0
        %v1059 = vadd.f32 0.0, %v1058
        %1060 = vmatmul.bf16.gmra.mxu0 %v1020
        %v1061 = vpop.f32.mrf.mxu0
        %v1062 = vadd.f32 0.0, %v1061
        %v1063 = vpop.f32.mrf.mxu0
        %v1064 = vadd.f32 0.0, %v1063
        %1065 = vmatmul.bf16.gmra.mxu0 %v1023
        %v1066 = vpop.f32.mrf.mxu0
        %v1067 = vadd.f32 0.0, %v1066
        %v1068 = vpop.f32.mrf.mxu0
        %v1069 = vadd.f32 0.0, %v1068
        %1070 = vmatmul.bf16.gmra.mxu0 %v1026
        %v1071 = vpop.f32.mrf.mxu0
        %v1072 = vadd.f32 0.0, %v1071
        %v1073 = vpop.f32.mrf.mxu0
        %v1074 = vadd.f32 0.0, %v1073
        %1075 = vmatmul.bf16.gmra.mxu0 %v1029
        %v1076 = vpop.f32.mrf.mxu0
        %v1077 = vadd.f32 0.0, %v1076
        %v1078 = vpop.f32.mrf.mxu0
        %v1079 = vadd.f32 0.0, %v1078
        %1080 = vmatmul.bf16.gmra.mxu0 %v1032
        %v1081 = vpop.f32.mrf.mxu0
        %v1082 = vadd.f32 0.0, %v1081
        %v1083 = vpop.f32.mrf.mxu0
        %v1084 = vadd.f32 0.0, %v1083
        %1085 = vmatmul.bf16.gmra.mxu0 %v1035
        %v1086 = vpop.f32.mrf.mxu0
        %v1087 = vadd.f32 0.0, %v1086
        %v1088 = vpop.f32.mrf.mxu0
        %1089 = vdwg.mxu0
        %v1098 = vunpack.c.l.b16 %v855
        %v1099 = vunpack.c.l.b16 %v856
        %v1100 = vunpack.c.l.b16 %v857
        %v1101 = vunpack.c.l.b16 %v858
        %v1102 = vunpack.c.l.b16 %v859
        %v1103 = vunpack.c.l.b16 %v860
        %v1104 = vunpack.c.l.b16 %v861
        %v1105 = vunpack.c.l.b16 %v862
        %v1106 = vpack.c.b16 %v1099, %v1098
        %v1107 = vpack.c.b16 %v1101, %v1100
        %v1108 = vpack.c.b16 %v1103, %v1102
        %v1109 = vpack.c.b16 %v1105, %v1104
        %v1114 = vsel %vm1009, %v905, 0
        %v1116 = vsel %vm1009, %v906, 0
        %v1118 = vsel %vm1009, %v907, 0
        %v1120 = vsel %vm1009, %v908, 0
        %v1122 = vsel %vm1009, %v909, 0
        %v1124 = vsel %vm1009, %v910, 0
        %v1126 = vsel %vm1009, %v911, 0
        %v1128 = vsel %vm1009, %v912, 0
        %v1130 = vsel %vm1009, %v913, 0
        %1132 = vmatpush.bf16.msra.mxu0 0
        %1133 = vmatpush.bf16.msra.mxu0 0
        %1134 = vmatpush.bf16.msra.mxu0 0
        %1135 = vmatpush.bf16.msra.mxu0 0
        %1136 = vmatpush.bf16.msra.mxu0 %v1109
        %1137 = vmatpush.bf16.msra.mxu0 %v1108
        %1138 = vmatpush.bf16.msra.mxu0 %v1107
        %1139 = vmatpush.bf16.msra.mxu0 %v1106
        %1140 = vmatmul.bf16.gmra.mxu0 %v1114
        %v1141 = vpop.f32.mrf.mxu0
        %v1142 = vadd.f32 %v1047, %v1141
        %v1143 = vpop.f32.mrf.mxu0
        %v1144 = vadd.f32 %v1049, %v1143
        %1145 = vmatmul.bf16.gmra.mxu0 %v1116
        %v1146 = vpop.f32.mrf.mxu0
        %v1147 = vadd.f32 %v1052, %v1146
        %v1148 = vpop.f32.mrf.mxu0
        %v1149 = vadd.f32 %v1054, %v1148
        %1150 = vmatmul.bf16.gmra.mxu0 %v1118
        %v1151 = vpop.f32.mrf.mxu0
        %v1152 = vadd.f32 %v1057, %v1151
        %v1153 = vpop.f32.mrf.mxu0
        %v1154 = vadd.f32 %v1059, %v1153
        %1155 = vmatmul.bf16.gmra.mxu0 %v1120
        %v1156 = vpop.f32.mrf.mxu0
        %v1157 = vadd.f32 %v1062, %v1156
        %v1158 = vpop.f32.mrf.mxu0
        %v1159 = vadd.f32 %v1064, %v1158
        %1160 = vmatmul.bf16.gmra.mxu0 %v1122
        %v1161 = vpop.f32.mrf.mxu0
        %v1162 = vadd.f32 %v1067, %v1161
        %v1163 = vpop.f32.mrf.mxu0
        %v1164 = vadd.f32 %v1069, %v1163
        %1165 = vmatmul.bf16.gmra.mxu0 %v1124
        %v1166 = vpop.f32.mrf.mxu0
        %v1167 = vadd.f32 %v1072, %v1166
        %v1168 = vpop.f32.mrf.mxu0
        %v1169 = vadd.f32 %v1074, %v1168
        %1170 = vmatmul.bf16.gmra.mxu0 %v1126
        %v1171 = vpop.f32.mrf.mxu0
        %v1172 = vadd.f32 %v1077, %v1171
        %v1173 = vpop.f32.mrf.mxu0
        %v1174 = vadd.f32 %v1079, %v1173
        %1175 = vmatmul.bf16.gmra.mxu0 %v1128
        %v1176 = vpop.f32.mrf.mxu0
        %v1177 = vadd.f32 %v1082, %v1176
        %v1178 = vpop.f32.mrf.mxu0
        %v1179 = vadd.f32 %v1084, %v1178
        %1180 = vmatmul.bf16.gmra.mxu0 %v1130
        %v1181 = vpop.f32.mrf.mxu0
        %v1182 = vadd.f32 %v1087, %v1181
        %v1183 = vpop.f32.mrf.mxu0
        %1184 = vdwg.mxu0
        %v1185 = vld [vmem:[%s6] sm:$0x1]
        %v1187 = vperm.slane %v1185, 0
        %v1189 = vadd.f32 %v1142, %v1187
        %v1190 = vadd.f32 %v1144, %v1187
        %v1191 = vadd.f32 %v1147, %v1187
        %v1192 = vadd.f32 %v1149, %v1187
        %v1193 = vadd.f32 %v1152, %v1187
        %v1194 = vadd.f32 %v1154, %v1187
        %v1195 = vadd.f32 %v1157, %v1187
        %v1196 = vadd.f32 %v1159, %v1187
        %v1197 = vadd.f32 %v1162, %v1187
        %v1198 = vadd.f32 %v1164, %v1187
        %v1199 = vadd.f32 %v1167, %v1187
        %v1200 = vadd.f32 %v1169, %v1187
        %v1201 = vadd.f32 %v1172, %v1187
        %v1202 = vadd.f32 %v1174, %v1187
        %v1203 = vadd.f32 %v1177, %v1187
        %v1204 = vadd.f32 %v1179, %v1187
        %v1205 = vadd.f32 %v1182, %v1187
        %vm1206 = vcmp.gt.f32.partialorder %v1189, 0.0
        %vm1207 = vcmp.gt.f32.partialorder %v1190, 0.0
        %vm1208 = vcmp.gt.f32.partialorder %v1191, 0.0
        %vm1209 = vcmp.gt.f32.partialorder %v1192, 0.0
        %vm1210 = vcmp.gt.f32.partialorder %v1193, 0.0
        %vm1211 = vcmp.gt.f32.partialorder %v1194, 0.0
        %vm1212 = vcmp.gt.f32.partialorder %v1195, 0.0
        %vm1213 = vcmp.gt.f32.partialorder %v1196, 0.0
        %vm1214 = vcmp.gt.f32.partialorder %v1197, 0.0
        %vm1215 = vcmp.gt.f32.partialorder %v1198, 0.0
        %vm1216 = vcmp.gt.f32.partialorder %v1199, 0.0
        %vm1217 = vcmp.gt.f32.partialorder %v1200, 0.0
        %vm1218 = vcmp.gt.f32.partialorder %v1201, 0.0
        %vm1219 = vcmp.gt.f32.partialorder %v1202, 0.0
        %vm1220 = vcmp.gt.f32.partialorder %v1203, 0.0
        %vm1221 = vcmp.gt.f32.partialorder %v1204, 0.0
        %vm1222 = vcmp.gt.f32.partialorder %v1205, 0.0
        %v1223 = vmin.f32 %v1189, 0.0
        %v1224 = vmin.f32 %v1190, 0.0
        %v1225 = vmin.f32 %v1191, 0.0
        %v1226 = vmin.f32 %v1192, 0.0
        %v1227 = vmin.f32 %v1193, 0.0
        %v1228 = vmin.f32 %v1194, 0.0
        %v1229 = vmin.f32 %v1195, 0.0
        %v1230 = vmin.f32 %v1196, 0.0
        %v1231 = vmin.f32 %v1197, 0.0
        %v1232 = vmin.f32 %v1198, 0.0
        %v1233 = vmin.f32 %v1199, 0.0
        %v1234 = vmin.f32 %v1200, 0.0
        %v1235 = vmin.f32 %v1201, 0.0
        %v1236 = vmin.f32 %v1202, 0.0
        %v1237 = vmin.f32 %v1203, 0.0
        %v1238 = vmin.f32 %v1204, 0.0
        %v1239 = vmin.f32 %v1205, 0.0
        %v1240 = vmul.f32 %v1223, 1.442695
        %v1241 = vpow.pop %v1240
        %v1242 = vmul.f32 %v1224, 1.442695
        %v1243 = vpow.pop %v1242
        %v1244 = vmul.f32 %v1225, 1.442695
        %v1245 = vpow.pop %v1244
        %v1246 = vmul.f32 %v1226, 1.442695
        %v1247 = vpow.pop %v1246
        %v1248 = vmul.f32 %v1227, 1.442695
        %v1249 = vpow.pop %v1248
        %v1250 = vmul.f32 %v1228, 1.442695
        %v1251 = vpow.pop %v1250
        %v1252 = vmul.f32 %v1229, 1.442695
        %v1253 = vpow.pop %v1252
        %v1254 = vmul.f32 %v1230, 1.442695
        %v1255 = vpow.pop %v1254
        %v1256 = vmul.f32 %v1231, 1.442695
        %v1257 = vpow.pop %v1256
        %v1258 = vmul.f32 %v1232, 1.442695
        %v1259 = vpow.pop %v1258
        %v1260 = vmul.f32 %v1233, 1.442695
        %v1261 = vpow.pop %v1260
        %v1262 = vmul.f32 %v1234, 1.442695
        %v1263 = vpow.pop %v1262
        %v1264 = vmul.f32 %v1235, 1.442695
        %v1265 = vpow.pop %v1264
        %v1266 = vmul.f32 %v1236, 1.442695
        %v1267 = vpow.pop %v1266
        %v1268 = vmul.f32 %v1237, 1.442695
        %v1269 = vpow.pop %v1268
        %v1270 = vmul.f32 %v1238, 1.442695
        %v1271 = vpow.pop %v1270
        %v1272 = vmul.f32 %v1239, 1.442695
        %v1273 = vpow.pop %v1272
        %v1274 = vsub.f32 %v1241, 1.0
        %v1275 = vsub.f32 %v1243, 1.0
        %v1276 = vsub.f32 %v1245, 1.0
        %v1277 = vsub.f32 %v1247, 1.0
        %v1278 = vsub.f32 %v1249, 1.0
        %v1279 = vsub.f32 %v1251, 1.0
        %v1280 = vsub.f32 %v1253, 1.0
        %v1281 = vsub.f32 %v1255, 1.0
        %v1282 = vsub.f32 %v1257, 1.0
        %v1283 = vsub.f32 %v1259, 1.0
        %v1284 = vsub.f32 %v1261, 1.0
        %v1285 = vsub.f32 %v1263, 1.0
        %v1286 = vsub.f32 %v1265, 1.0
        %v1287 = vsub.f32 %v1267, 1.0
        %v1288 = vsub.f32 %v1269, 1.0
        %v1289 = vsub.f32 %v1271, 1.0
        %v1290 = vsub.f32 %v1273, 1.0
        %v1291 = vsel %vm1206, %v1189, %v1274
        %v1292 = vsel %vm1207, %v1190, %v1275
        %v1293 = vsel %vm1208, %v1191, %v1276
        %v1294 = vsel %vm1209, %v1192, %v1277
        %v1295 = vsel %vm1210, %v1193, %v1278
        %v1296 = vsel %vm1211, %v1194, %v1279
        %v1297 = vsel %vm1212, %v1195, %v1280
        %v1298 = vsel %vm1213, %v1196, %v1281
        %v1299 = vsel %vm1214, %v1197, %v1282
        %v1300 = vsel %vm1215, %v1198, %v1283
        %v1301 = vsel %vm1216, %v1199, %v1284
        %v1302 = vsel %vm1217, %v1200, %v1285
        %v1303 = vsel %vm1218, %v1201, %v1286
        %v1304 = vsel %vm1219, %v1202, %v1287
        %v1305 = vsel %vm1220, %v1203, %v1288
        %v1306 = vsel %vm1221, %v1204, %v1289
        %v1307 = vsel %vm1222, %v1205, %v1290
        %v1308 = vpack.c.bf16 %v1291, %v1291
        %v1309 = vpack.c.bf16 %v1292, %v1292
        %v1310 = vpack.c.bf16 %v1293, %v1293
        %v1311 = vpack.c.bf16 %v1294, %v1294
        %v1312 = vpack.c.bf16 %v1295, %v1295
        %v1313 = vpack.c.bf16 %v1296, %v1296
        %v1314 = vpack.c.bf16 %v1297, %v1297
        %v1315 = vpack.c.bf16 %v1298, %v1298
        %v1316 = vpack.c.bf16 %v1299, %v1299
        %v1317 = vpack.c.bf16 %v1300, %v1300
        %v1318 = vpack.c.bf16 %v1301, %v1301
        %v1319 = vpack.c.bf16 %v1302, %v1302
        %v1320 = vpack.c.bf16 %v1303, %v1303
        %v1321 = vpack.c.bf16 %v1304, %v1304
        %v1322 = vpack.c.bf16 %v1305, %v1305
        %v1323 = vpack.c.bf16 %v1306, %v1306
        %v1324 = vpack.c.bf16 %v1307, %v1307
        %v1325 = vld [vmem:[#allocation4] sm:$0xf]
        %v1326 = vld [vmem:[#allocation4 + $0x4] sm:$0xf]
        %v1327 = vld [vmem:[#allocation4 + $0x8] sm:$0xf]
        %v1328 = vld [vmem:[#allocation4 + $0xc] sm:$0xf]
        %v1329 = vld [vmem:[#allocation4 + $0x10] sm:$0xf]
        %v1330 = vld [vmem:[#allocation4 + $0x14] sm:$0xf]
        %v1331 = vld [vmem:[#allocation4 + $0x18] sm:$0xf]
        %v1332 = vld [vmem:[#allocation4 + $0x1c] sm:$0xf]
        %v1333 = vld [vmem:[#allocation4 + $0x20] sm:$0xf]
        %v1334 = vld [vmem:[#allocation4 + $0x24] sm:$0xf]
        %v1335 = vld [vmem:[#allocation4 + $0x28] sm:$0xf]
        %v1336 = vld [vmem:[#allocation4 + $0x2c] sm:$0xf]
        %v1337 = vld [vmem:[#allocation4 + $0x30] sm:$0xf]
        %v1338 = vld [vmem:[#allocation4 + $0x34] sm:$0xf]
        %v1339 = vld [vmem:[#allocation4 + $0x38] sm:$0xf]
        %v1340 = vld [vmem:[#allocation4 + $0x3c] sm:$0xf]
        %v1358 = vunpack.c.l.b16 %v1308
        %v1359 = vunpack.c.l.b16 %v1309
        %v1360 = vunpack.c.l.b16 %v1310
        %v1361 = vunpack.c.l.b16 %v1311
        %v1362 = vunpack.c.l.b16 %v1312
        %v1363 = vunpack.c.l.b16 %v1313
        %v1364 = vunpack.c.l.b16 %v1314
        %v1365 = vunpack.c.l.b16 %v1315
        %v1366 = vunpack.c.l.b16 %v1316
        %v1367 = vunpack.c.l.b16 %v1317
        %v1368 = vunpack.c.l.b16 %v1318
        %v1369 = vunpack.c.l.b16 %v1319
        %v1370 = vunpack.c.l.b16 %v1320
        %v1371 = vunpack.c.l.b16 %v1321
        %v1372 = vunpack.c.l.b16 %v1322
        %v1373 = vunpack.c.l.b16 %v1323
        %v1374 = vunpack.c.l.b16 %v1324
        %v1375 = vpack.c.b16 %v1359, %v1358
        %v1376 = vpack.c.b16 %v1361, %v1360
        %v1377 = vpack.c.b16 %v1363, %v1362
        %v1378 = vpack.c.b16 %v1365, %v1364
        %v1379 = vpack.c.b16 %v1367, %v1366
        %v1380 = vpack.c.b16 %v1369, %v1368
        %v1381 = vpack.c.b16 %v1371, %v1370
        %v1382 = vpack.c.b16 %v1373, %v1372
        %v1383 = vpack.c.b16 %v1374, %v1374
        %v1385 = vshrl.u32 %v1375, 16
        %v1387 = vshll.u32 %v1375, 16
        %v1389 = vrot.slane %v1387, 1
        %v1390 = vor.u32 %v1385, %v1389
        %v1392 = vshll.u32 %v1376, 16
        %v1394 = vrot.slane %v1392, 1
        %v1395 = vsel %vm484, %v1390, %v1394
        %v1396 = vshrl.u32 %v1376, 16
        %v1398 = vor.u32 %v1396, %v1394
        %v1400 = vshll.u32 %v1377, 16
        %v1402 = vrot.slane %v1400, 1
        %v1403 = vsel %vm484, %v1398, %v1402
        %v1404 = vshrl.u32 %v1377, 16
        %v1406 = vor.u32 %v1404, %v1402
        %v1408 = vshll.u32 %v1378, 16
        %v1410 = vrot.slane %v1408, 1
        %v1411 = vsel %vm484, %v1406, %v1410
        %v1412 = vshrl.u32 %v1378, 16
        %v1414 = vor.u32 %v1412, %v1410
        %v1416 = vshll.u32 %v1379, 16
        %v1418 = vrot.slane %v1416, 1
        %v1419 = vsel %vm484, %v1414, %v1418
        %v1420 = vshrl.u32 %v1379, 16
        %v1422 = vor.u32 %v1420, %v1418
        %v1424 = vshll.u32 %v1380, 16
        %v1426 = vrot.slane %v1424, 1
        %v1427 = vsel %vm484, %v1422, %v1426
        %v1428 = vshrl.u32 %v1380, 16
        %v1430 = vor.u32 %v1428, %v1426
        %v1432 = vshll.u32 %v1381, 16
        %v1434 = vrot.slane %v1432, 1
        %v1435 = vsel %vm484, %v1430, %v1434
        %v1436 = vshrl.u32 %v1381, 16
        %v1438 = vor.u32 %v1436, %v1434
        %v1440 = vshll.u32 %v1382, 16
        %v1442 = vrot.slane %v1440, 1
        %v1443 = vsel %vm484, %v1438, %v1442
        %v1444 = vshrl.u32 %v1382, 16
        %v1446 = vor.u32 %v1444, %v1442
        %v1448 = vshll.u32 %v1383, 16
        %v1450 = vrot.slane %v1448, 1
        %v1451 = vsel %vm484, %v1446, %v1450
        %v1452 = vshrl.u32 %v1383, 16
        %v1454 = vor.u32 %v1452, %v1450
        %v1463 = vunpack.c.l.b16 %v1333
        %v1464 = vunpack.c.l.b16 %v1334
        %v1465 = vunpack.c.l.b16 %v1335
        %v1466 = vunpack.c.l.b16 %v1336
        %v1467 = vunpack.c.l.b16 %v1337
        %v1468 = vunpack.c.l.b16 %v1338
        %v1469 = vunpack.c.l.b16 %v1339
        %v1470 = vunpack.c.l.b16 %v1340
        %v1471 = vpack.c.b16 %v1464, %v1463
        %v1472 = vpack.c.b16 %v1466, %v1465
        %v1473 = vpack.c.b16 %v1468, %v1467
        %v1474 = vpack.c.b16 %v1470, %v1469
        %v1480 = vsel %vm1009, %v1395, 0
        %v1483 = vsel %vm1009, %v1403, 0
        %v1486 = vsel %vm1009, %v1411, 0
        %v1489 = vsel %vm1009, %v1419, 0
        %v1492 = vsel %vm1009, %v1427, 0
        %v1495 = vsel %vm1009, %v1435, 0
        %v1498 = vsel %vm1009, %v1443, 0
        %v1501 = vsel %vm1009, %v1451, 0
        %v1504 = vsel %vm1009, %v1454, 0
        %1506 = vmatpush.bf16.msra.mxu0 0
        %1507 = vmatpush.bf16.msra.mxu0 0
        %1508 = vmatpush.bf16.msra.mxu0 0
        %1509 = vmatpush.bf16.msra.mxu0 0
        %1510 = vmatpush.bf16.msra.mxu0 %v1474
        %1511 = vmatpush.bf16.msra.mxu0 %v1473
        %1512 = vmatpush.bf16.msra.mxu0 %v1472
        %1513 = vmatpush.bf16.msra.mxu0 %v1471
        %1514 = vmatmul.bf16.gmra.mxu0 %v1480
        %v1515 = vpop.f32.mrf.mxu0
        %v1516 = vadd.f32 0.0, %v1515
        %v1517 = vpop.f32.mrf.mxu0
        %v1518 = vadd.f32 0.0, %v1517
        %1519 = vmatmul.bf16.gmra.mxu0 %v1483
        %v1520 = vpop.f32.mrf.mxu0
        %v1521 = vadd.f32 0.0, %v1520
        %v1522 = vpop.f32.mrf.mxu0
        %v1523 = vadd.f32 0.0, %v1522
        %1524 = vmatmul.bf16.gmra.mxu0 %v1486
        %v1525 = vpop.f32.mrf.mxu0
        %v1526 = vadd.f32 0.0, %v1525
        %v1527 = vpop.f32.mrf.mxu0
        %v1528 = vadd.f32 0.0, %v1527
        %1529 = vmatmul.bf16.gmra.mxu0 %v1489
        %v1530 = vpop.f32.mrf.mxu0
        %v1531 = vadd.f32 0.0, %v1530
        %v1532 = vpop.f32.mrf.mxu0
        %v1533 = vadd.f32 0.0, %v1532
        %1534 = vmatmul.bf16.gmra.mxu0 %v1492
        %v1535 = vpop.f32.mrf.mxu0
        %v1536 = vadd.f32 0.0, %v1535
        %v1537 = vpop.f32.mrf.mxu0
        %v1538 = vadd.f32 0.0, %v1537
        %1539 = vmatmul.bf16.gmra.mxu0 %v1495
        %v1540 = vpop.f32.mrf.mxu0
        %v1541 = vadd.f32 0.0, %v1540
        %v1542 = vpop.f32.mrf.mxu0
        %v1543 = vadd.f32 0.0, %v1542
        %1544 = vmatmul.bf16.gmra.mxu0 %v1498
        %v1545 = vpop.f32.mrf.mxu0
        %v1546 = vadd.f32 0.0, %v1545
        %v1547 = vpop.f32.mrf.mxu0
        %v1548 = vadd.f32 0.0, %v1547
        %1549 = vmatmul.bf16.gmra.mxu0 %v1501
        %v1550 = vpop.f32.mrf.mxu0
        %v1551 = vadd.f32 0.0, %v1550
        %v1552 = vpop.f32.mrf.mxu0
        %v1553 = vadd.f32 0.0, %v1552
        %1554 = vmatmul.bf16.gmra.mxu0 %v1504
        %v1555 = vpop.f32.mrf.mxu0
        %v1556 = vadd.f32 0.0, %v1555
        %v1557 = vpop.f32.mrf.mxu0
        %1558 = vdwg.mxu0
        %v1567 = vunpack.c.l.b16 %v1325
        %v1568 = vunpack.c.l.b16 %v1326
        %v1569 = vunpack.c.l.b16 %v1327
        %v1570 = vunpack.c.l.b16 %v1328
        %v1571 = vunpack.c.l.b16 %v1329
        %v1572 = vunpack.c.l.b16 %v1330
        %v1573 = vunpack.c.l.b16 %v1331
        %v1574 = vunpack.c.l.b16 %v1332
        %v1575 = vpack.c.b16 %v1568, %v1567
        %v1576 = vpack.c.b16 %v1570, %v1569
        %v1577 = vpack.c.b16 %v1572, %v1571
        %v1578 = vpack.c.b16 %v1574, %v1573
        %v1583 = vsel %vm1009, %v1375, 0
        %v1585 = vsel %vm1009, %v1376, 0
        %v1587 = vsel %vm1009, %v1377, 0
        %v1589 = vsel %vm1009, %v1378, 0
        %v1591 = vsel %vm1009, %v1379, 0
        %v1593 = vsel %vm1009, %v1380, 0
        %v1595 = vsel %vm1009, %v1381, 0
        %v1597 = vsel %vm1009, %v1382, 0
        %v1599 = vsel %vm1009, %v1383, 0
        %1601 = vmatpush.bf16.msra.mxu0 0
        %1602 = vmatpush.bf16.msra.mxu0 0
        %1603 = vmatpush.bf16.msra.mxu0 0
        %1604 = vmatpush.bf16.msra.mxu0 0
        %1605 = vmatpush.bf16.msra.mxu0 %v1578
        %1606 = vmatpush.bf16.msra.mxu0 %v1577
        %1607 = vmatpush.bf16.msra.mxu0 %v1576
        %1608 = vmatpush.bf16.msra.mxu0 %v1575
        %1609 = vmatmul.bf16.gmra.mxu0 %v1583
        %v1610 = vpop.f32.mrf.mxu0
        %v1611 = vadd.f32 %v1516, %v1610
        %v1612 = vpop.f32.mrf.mxu0
        %v1613 = vadd.f32 %v1518, %v1612
        %1614 = vmatmul.bf16.gmra.mxu0 %v1585
        %v1615 = vpop.f32.mrf.mxu0
        %v1616 = vadd.f32 %v1521, %v1615
        %v1617 = vpop.f32.mrf.mxu0
        %v1618 = vadd.f32 %v1523, %v1617
        %1619 = vmatmul.bf16.gmra.mxu0 %v1587
        %v1620 = vpop.f32.mrf.mxu0
        %v1621 = vadd.f32 %v1526, %v1620
        %v1622 = vpop.f32.mrf.mxu0
        %v1623 = vadd.f32 %v1528, %v1622
        %1624 = vmatmul.bf16.gmra.mxu0 %v1589
        %v1625 = vpop.f32.mrf.mxu0
        %v1626 = vadd.f32 %v1531, %v1625
        %v1627 = vpop.f32.mrf.mxu0
        %v1628 = vadd.f32 %v1533, %v1627
        %1629 = vmatmul.bf16.gmra.mxu0 %v1591
        %v1630 = vpop.f32.mrf.mxu0
        %v1631 = vadd.f32 %v1536, %v1630
        %v1632 = vpop.f32.mrf.mxu0
        %v1633 = vadd.f32 %v1538, %v1632
        %1634 = vmatmul.bf16.gmra.mxu0 %v1593
        %v1635 = vpop.f32.mrf.mxu0
        %v1636 = vadd.f32 %v1541, %v1635
        %v1637 = vpop.f32.mrf.mxu0
        %v1638 = vadd.f32 %v1543, %v1637
        %1639 = vmatmul.bf16.gmra.mxu0 %v1595
        %v1640 = vpop.f32.mrf.mxu0
        %v1641 = vadd.f32 %v1546, %v1640
        %v1642 = vpop.f32.mrf.mxu0
        %v1643 = vadd.f32 %v1548, %v1642
        %1644 = vmatmul.bf16.gmra.mxu0 %v1597
        %v1645 = vpop.f32.mrf.mxu0
        %v1646 = vadd.f32 %v1551, %v1645
        %v1647 = vpop.f32.mrf.mxu0
        %v1648 = vadd.f32 %v1553, %v1647
        %1649 = vmatmul.bf16.gmra.mxu0 %v1599
        %v1650 = vpop.f32.mrf.mxu0
        %v1651 = vadd.f32 %v1556, %v1650
        %v1652 = vpop.f32.mrf.mxu0
        %1653 = vdwg.mxu0
        %v1654 = vld [vmem:[%s7] sm:$0x1]
        %v1656 = vperm.slane %v1654, 0
        %v1658 = vadd.f32 %v1611, %v1656
        %v1659 = vadd.f32 %v1613, %v1656
        %v1660 = vadd.f32 %v1616, %v1656
        %v1661 = vadd.f32 %v1618, %v1656
        %v1662 = vadd.f32 %v1621, %v1656
        %v1663 = vadd.f32 %v1623, %v1656
        %v1664 = vadd.f32 %v1626, %v1656
        %v1665 = vadd.f32 %v1628, %v1656
        %v1666 = vadd.f32 %v1631, %v1656
        %v1667 = vadd.f32 %v1633, %v1656
        %v1668 = vadd.f32 %v1636, %v1656
        %v1669 = vadd.f32 %v1638, %v1656
        %v1670 = vadd.f32 %v1641, %v1656
        %v1671 = vadd.f32 %v1643, %v1656
        %v1672 = vadd.f32 %v1646, %v1656
        %v1673 = vadd.f32 %v1648, %v1656
        %v1674 = vadd.f32 %v1651, %v1656
        %vm1675 = vcmp.gt.f32.partialorder %v1658, 0.0
        %vm1676 = vcmp.gt.f32.partialorder %v1659, 0.0
        %vm1677 = vcmp.gt.f32.partialorder %v1660, 0.0
        %vm1678 = vcmp.gt.f32.partialorder %v1661, 0.0
        %vm1679 = vcmp.gt.f32.partialorder %v1662, 0.0
        %vm1680 = vcmp.gt.f32.partialorder %v1663, 0.0
        %vm1681 = vcmp.gt.f32.partialorder %v1664, 0.0
        %vm1682 = vcmp.gt.f32.partialorder %v1665, 0.0
        %vm1683 = vcmp.gt.f32.partialorder %v1666, 0.0
        %vm1684 = vcmp.gt.f32.partialorder %v1667, 0.0
        %vm1685 = vcmp.gt.f32.partialorder %v1668, 0.0
        %vm1686 = vcmp.gt.f32.partialorder %v1669, 0.0
        %vm1687 = vcmp.gt.f32.partialorder %v1670, 0.0
        %vm1688 = vcmp.gt.f32.partialorder %v1671, 0.0
        %vm1689 = vcmp.gt.f32.partialorder %v1672, 0.0
        %vm1690 = vcmp.gt.f32.partialorder %v1673, 0.0
        %vm1691 = vcmp.gt.f32.partialorder %v1674, 0.0
        %v1692 = vmin.f32 %v1658, 0.0
        %v1693 = vmin.f32 %v1659, 0.0
        %v1694 = vmin.f32 %v1660, 0.0
        %v1695 = vmin.f32 %v1661, 0.0
        %v1696 = vmin.f32 %v1662, 0.0
        %v1697 = vmin.f32 %v1663, 0.0
        %v1698 = vmin.f32 %v1664, 0.0
        %v1699 = vmin.f32 %v1665, 0.0
        %v1700 = vmin.f32 %v1666, 0.0
        %v1701 = vmin.f32 %v1667, 0.0
        %v1702 = vmin.f32 %v1668, 0.0
        %v1703 = vmin.f32 %v1669, 0.0
        %v1704 = vmin.f32 %v1670, 0.0
        %v1705 = vmin.f32 %v1671, 0.0
        %v1706 = vmin.f32 %v1672, 0.0
        %v1707 = vmin.f32 %v1673, 0.0
        %v1708 = vmin.f32 %v1674, 0.0
        %v1709 = vmul.f32 %v1692, 1.442695
        %v1710 = vpow.pop %v1709
        %v1711 = vmul.f32 %v1693, 1.442695
        %v1712 = vpow.pop %v1711
        %v1713 = vmul.f32 %v1694, 1.442695
        %v1714 = vpow.pop %v1713
        %v1715 = vmul.f32 %v1695, 1.442695
        %v1716 = vpow.pop %v1715
        %v1717 = vmul.f32 %v1696, 1.442695
        %v1718 = vpow.pop %v1717
        %v1719 = vmul.f32 %v1697, 1.442695
        %v1720 = vpow.pop %v1719
        %v1721 = vmul.f32 %v1698, 1.442695
        %v1722 = vpow.pop %v1721
        %v1723 = vmul.f32 %v1699, 1.442695
        %v1724 = vpow.pop %v1723
        %v1725 = vmul.f32 %v1700, 1.442695
        %v1726 = vpow.pop %v1725
        %v1727 = vmul.f32 %v1701, 1.442695
        %v1728 = vpow.pop %v1727
        %v1729 = vmul.f32 %v1702, 1.442695
        %v1730 = vpow.pop %v1729
        %v1731 = vmul.f32 %v1703, 1.442695
        %v1732 = vpow.pop %v1731
        %v1733 = vmul.f32 %v1704, 1.442695
        %v1734 = vpow.pop %v1733
        %v1735 = vmul.f32 %v1705, 1.442695
        %v1736 = vpow.pop %v1735
        %v1737 = vmul.f32 %v1706, 1.442695
        %v1738 = vpow.pop %v1737
        %v1739 = vmul.f32 %v1707, 1.442695
        %v1740 = vpow.pop %v1739
        %v1741 = vmul.f32 %v1708, 1.442695
        %v1742 = vpow.pop %v1741
        %v1743 = vsub.f32 %v1710, 1.0
        %v1744 = vsub.f32 %v1712, 1.0
        %v1745 = vsub.f32 %v1714, 1.0
        %v1746 = vsub.f32 %v1716, 1.0
        %v1747 = vsub.f32 %v1718, 1.0
        %v1748 = vsub.f32 %v1720, 1.0
        %v1749 = vsub.f32 %v1722, 1.0
        %v1750 = vsub.f32 %v1724, 1.0
        %v1751 = vsub.f32 %v1726, 1.0
        %v1752 = vsub.f32 %v1728, 1.0
        %v1753 = vsub.f32 %v1730, 1.0
        %v1754 = vsub.f32 %v1732, 1.0
        %v1755 = vsub.f32 %v1734, 1.0
        %v1756 = vsub.f32 %v1736, 1.0
        %v1757 = vsub.f32 %v1738, 1.0
        %v1758 = vsub.f32 %v1740, 1.0
        %v1759 = vsub.f32 %v1742, 1.0
        %v1760 = vsel %vm1675, %v1658, %v1743
        %v1761 = vsel %vm1676, %v1659, %v1744
        %v1762 = vsel %vm1677, %v1660, %v1745
        %v1763 = vsel %vm1678, %v1661, %v1746
        %v1764 = vsel %vm1679, %v1662, %v1747
        %v1765 = vsel %vm1680, %v1663, %v1748
        %v1766 = vsel %vm1681, %v1664, %v1749
        %v1767 = vsel %vm1682, %v1665, %v1750
        %v1768 = vsel %vm1683, %v1666, %v1751
        %v1769 = vsel %vm1684, %v1667, %v1752
        %v1770 = vsel %vm1685, %v1668, %v1753
        %v1771 = vsel %vm1686, %v1669, %v1754
        %v1772 = vsel %vm1687, %v1670, %v1755
        %v1773 = vsel %vm1688, %v1671, %v1756
        %v1774 = vsel %vm1689, %v1672, %v1757
        %v1775 = vsel %vm1690, %v1673, %v1758
        %v1776 = vsel %vm1691, %v1674, %v1759
        %v1777 = vpack.c.bf16 %v1760, %v1760
        %v1778 = vpack.c.bf16 %v1761, %v1761
        %v1779 = vpack.c.bf16 %v1762, %v1762
        %v1780 = vpack.c.bf16 %v1763, %v1763
        %v1781 = vpack.c.bf16 %v1764, %v1764
        %v1782 = vpack.c.bf16 %v1765, %v1765
        %v1783 = vpack.c.bf16 %v1766, %v1766
        %v1784 = vpack.c.bf16 %v1767, %v1767
        %v1785 = vpack.c.bf16 %v1768, %v1768
        %v1786 = vpack.c.bf16 %v1769, %v1769
        %v1787 = vpack.c.bf16 %v1770, %v1770
        %v1788 = vpack.c.bf16 %v1771, %v1771
        %v1789 = vpack.c.bf16 %v1772, %v1772
        %v1790 = vpack.c.bf16 %v1773, %v1773
        %v1791 = vpack.c.bf16 %v1774, %v1774
        %v1792 = vpack.c.bf16 %v1775, %v1775
        %v1793 = vpack.c.bf16 %v1776, %v1776
        %v1794 = vld [vmem:[%s4] sm:$0xf]
        %v1795 = vld [vmem:[%s4 + $0x4] sm:$0xf]
        %v1796 = vld [vmem:[%s4 + $0x8] sm:$0xf]
        %v1797 = vld [vmem:[%s4 + $0xc] sm:$0xf]
        %v1798 = vld [vmem:[%s4 + $0x10] sm:$0xf]
        %v1799 = vld [vmem:[%s4 + $0x14] sm:$0xf]
        %v1800 = vld [vmem:[%s4 + $0x18] sm:$0xf]
        %v1801 = vld [vmem:[%s4 + $0x1c] sm:$0xf]
        %v1802 = vld [vmem:[%s4 + $0x20] sm:$0xf]
        %v1803 = vld [vmem:[%s4 + $0x24] sm:$0xf]
        %v1804 = vld [vmem:[%s4 + $0x28] sm:$0xf]
        %v1805 = vld [vmem:[%s4 + $0x2c] sm:$0xf]
        %v1806 = vld [vmem:[%s4 + $0x30] sm:$0xf]
        %v1807 = vld [vmem:[%s4 + $0x34] sm:$0xf]
        %v1808 = vld [vmem:[%s4 + $0x38] sm:$0xf]
        %v1809 = vld [vmem:[%s4 + $0x3c] sm:$0xf]
        %v1810 = vld [vmem:[%s4 + $0x40] sm:$0xf]
        %v1811 = vld [vmem:[%s4 + $0x44] sm:$0xf]
        %v1812 = vld [vmem:[%s4 + $0x48] sm:$0xf]
        %v1813 = vld [vmem:[%s4 + $0x4c] sm:$0xf]
        %v1814 = vld [vmem:[%s4 + $0x50] sm:$0xf]
        %v1815 = vld [vmem:[%s4 + $0x54] sm:$0xf]
        %v1816 = vld [vmem:[%s4 + $0x58] sm:$0xf]
        %v1817 = vld [vmem:[%s4 + $0x5c] sm:$0xf]
        %v1835 = vunpack.c.l.b16 %v1777
        %v1836 = vunpack.c.l.b16 %v1778
        %v1837 = vunpack.c.l.b16 %v1779
        %v1838 = vunpack.c.l.b16 %v1780
        %v1839 = vunpack.c.l.b16 %v1781
        %v1840 = vunpack.c.l.b16 %v1782
        %v1841 = vunpack.c.l.b16 %v1783
        %v1842 = vunpack.c.l.b16 %v1784
        %v1843 = vunpack.c.l.b16 %v1785
        %v1844 = vunpack.c.l.b16 %v1786
        %v1845 = vunpack.c.l.b16 %v1787
        %v1846 = vunpack.c.l.b16 %v1788
        %v1847 = vunpack.c.l.b16 %v1789
        %v1848 = vunpack.c.l.b16 %v1790
        %v1849 = vunpack.c.l.b16 %v1791
        %v1850 = vunpack.c.l.b16 %v1792
        %v1851 = vunpack.c.l.b16 %v1793
        %v1852 = vpack.c.b16 %v1836, %v1835
        %v1853 = vpack.c.b16 %v1838, %v1837
        %v1854 = vpack.c.b16 %v1840, %v1839
        %v1855 = vpack.c.b16 %v1842, %v1841
        %v1856 = vpack.c.b16 %v1844, %v1843
        %v1857 = vpack.c.b16 %v1846, %v1845
        %v1858 = vpack.c.b16 %v1848, %v1847
        %v1859 = vpack.c.b16 %v1850, %v1849
        %v1860 = vpack.c.b16 %v1851, %v1851
        %v1862 = vshrl.u32 %v1852, 16
        %v1864 = vshll.u32 %v1852, 16
        %v1866 = vrot.slane %v1864, 1
        %v1867 = vor.u32 %v1862, %v1866
        %v1869 = vshll.u32 %v1853, 16
        %v1871 = vrot.slane %v1869, 1
        %v1872 = vsel %vm484, %v1867, %v1871
        %v1873 = vshrl.u32 %v1853, 16
        %v1875 = vor.u32 %v1873, %v1871
        %v1877 = vshll.u32 %v1854, 16
        %v1879 = vrot.slane %v1877, 1
        %v1880 = vsel %vm484, %v1875, %v1879
        %v1881 = vshrl.u32 %v1854, 16
        %v1883 = vor.u32 %v1881, %v1879
        %v1885 = vshll.u32 %v1855, 16
        %v1887 = vrot.slane %v1885, 1
        %v1888 = vsel %vm484, %v1883, %v1887
        %v1889 = vshrl.u32 %v1855, 16
        %v1891 = vor.u32 %v1889, %v1887
        %v1893 = vshll.u32 %v1856, 16
        %v1895 = vrot.slane %v1893, 1
        %v1896 = vsel %vm484, %v1891, %v1895
        %v1897 = vshrl.u32 %v1856, 16
        %v1899 = vor.u32 %v1897, %v1895
        %v1901 = vshll.u32 %v1857, 16
        %v1903 = vrot.slane %v1901, 1
        %v1904 = vsel %vm484, %v1899, %v1903
        %v1905 = vshrl.u32 %v1857, 16
        %v1907 = vor.u32 %v1905, %v1903
        %v1909 = vshll.u32 %v1858, 16
        %v1911 = vrot.slane %v1909, 1
        %v1912 = vsel %vm484, %v1907, %v1911
        %v1913 = vshrl.u32 %v1858, 16
        %v1915 = vor.u32 %v1913, %v1911
        %v1917 = vshll.u32 %v1859, 16
        %v1919 = vrot.slane %v1917, 1
        %v1920 = vsel %vm484, %v1915, %v1919
        %v1921 = vshrl.u32 %v1859, 16
        %v1923 = vor.u32 %v1921, %v1919
        %v1925 = vshll.u32 %v1860, 16
        %v1927 = vrot.slane %v1925, 1
        %v1928 = vsel %vm484, %v1923, %v1927
        %v1929 = vshrl.u32 %v1860, 16
        %v1931 = vor.u32 %v1929, %v1927
        %v1940 = vunpack.c.l.b16 %v1802
        %v1941 = vunpack.c.l.b16 %v1803
        %v1942 = vunpack.c.l.b16 %v1804
        %v1943 = vunpack.c.l.b16 %v1805
        %v1944 = vunpack.c.l.b16 %v1806
        %v1945 = vunpack.c.l.b16 %v1807
        %v1946 = vunpack.c.l.b16 %v1808
        %v1947 = vunpack.c.l.b16 %v1809
        %v1948 = vpack.c.b16 %v1941, %v1940
        %v1949 = vpack.c.b16 %v1943, %v1942
        %v1950 = vpack.c.b16 %v1945, %v1944
        %v1951 = vpack.c.b16 %v1947, %v1946
        %v1957 = vsel %vm1009, %v1872, 0
        %v1960 = vsel %vm1009, %v1880, 0
        %v1963 = vsel %vm1009, %v1888, 0
        %v1966 = vsel %vm1009, %v1896, 0
        %v1969 = vsel %vm1009, %v1904, 0
        %v1972 = vsel %vm1009, %v1912, 0
        %v1975 = vsel %vm1009, %v1920, 0
        %v1978 = vsel %vm1009, %v1928, 0
        %v1981 = vsel %vm1009, %v1931, 0
        %1983 = vmatpush.bf16.msra.mxu0 0
        %1984 = vmatpush.bf16.msra.mxu0 0
        %1985 = vmatpush.bf16.msra.mxu0 0
        %1986 = vmatpush.bf16.msra.mxu0 0
        %1987 = vmatpush.bf16.msra.mxu0 %v1951
        %1988 = vmatpush.bf16.msra.mxu0 %v1950
        %1989 = vmatpush.bf16.msra.mxu0 %v1949
        %1990 = vmatpush.bf16.msra.mxu0 %v1948
        %1991 = vmatmul.bf16.gmra.mxu0 %v1957
        %v1992 = vpop.f32.mrf.mxu0
        %v1993 = vadd.f32 0.0, %v1992
        %v1994 = vpop.f32.mrf.mxu0
        %v1995 = vadd.f32 0.0, %v1994
        %1996 = vmatmul.bf16.gmra.mxu0 %v1960
        %v1997 = vpop.f32.mrf.mxu0
        %v1998 = vadd.f32 0.0, %v1997
        %v1999 = vpop.f32.mrf.mxu0
        %v2000 = vadd.f32 0.0, %v1999
        %2001 = vmatmul.bf16.gmra.mxu0 %v1963
        %v2002 = vpop.f32.mrf.mxu0
        %v2003 = vadd.f32 0.0, %v2002
        %v2004 = vpop.f32.mrf.mxu0
        %v2005 = vadd.f32 0.0, %v2004
        %2006 = vmatmul.bf16.gmra.mxu0 %v1966
        %v2007 = vpop.f32.mrf.mxu0
        %v2008 = vadd.f32 0.0, %v2007
        %v2009 = vpop.f32.mrf.mxu0
        %v2010 = vadd.f32 0.0, %v2009
        %2011 = vmatmul.bf16.gmra.mxu0 %v1969
        %v2012 = vpop.f32.mrf.mxu0
        %v2013 = vadd.f32 0.0, %v2012
        %v2014 = vpop.f32.mrf.mxu0
        %v2015 = vadd.f32 0.0, %v2014
        %2016 = vmatmul.bf16.gmra.mxu0 %v1972
        %v2017 = vpop.f32.mrf.mxu0
        %v2018 = vadd.f32 0.0, %v2017
        %v2019 = vpop.f32.mrf.mxu0
        %v2020 = vadd.f32 0.0, %v2019
        %2021 = vmatmul.bf16.gmra.mxu0 %v1975
        %v2022 = vpop.f32.mrf.mxu0
        %v2023 = vadd.f32 0.0, %v2022
        %v2024 = vpop.f32.mrf.mxu0
        %v2025 = vadd.f32 0.0, %v2024
        %2026 = vmatmul.bf16.gmra.mxu0 %v1978
        %v2027 = vpop.f32.mrf.mxu0
        %v2028 = vadd.f32 0.0, %v2027
        %v2029 = vpop.f32.mrf.mxu0
        %v2030 = vadd.f32 0.0, %v2029
        %2031 = vmatmul.bf16.gmra.mxu0 %v1981
        %v2032 = vpop.f32.mrf.mxu0
        %v2033 = vpop.f32.mrf.mxu0
        %2034 = vdwg.mxu0
        %v2043 = vunpack.c.l.b16 %v1794
        %v2044 = vunpack.c.l.b16 %v1795
        %v2045 = vunpack.c.l.b16 %v1796
        %v2046 = vunpack.c.l.b16 %v1797
        %v2047 = vunpack.c.l.b16 %v1798
        %v2048 = vunpack.c.l.b16 %v1799
        %v2049 = vunpack.c.l.b16 %v1800
        %v2050 = vunpack.c.l.b16 %v1801
        %v2051 = vpack.c.b16 %v2044, %v2043
        %v2052 = vpack.c.b16 %v2046, %v2045
        %v2053 = vpack.c.b16 %v2048, %v2047
        %v2054 = vpack.c.b16 %v2050, %v2049
        %v2059 = vsel %vm1009, %v1852, 0
        %v2061 = vsel %vm1009, %v1853, 0
        %v2063 = vsel %vm1009, %v1854, 0
        %v2065 = vsel %vm1009, %v1855, 0
        %v2067 = vsel %vm1009, %v1856, 0
        %v2069 = vsel %vm1009, %v1857, 0
        %v2071 = vsel %vm1009, %v1858, 0
        %v2073 = vsel %vm1009, %v1859, 0
        %v2075 = vsel %vm1009, %v1860, 0
        %2077 = vmatpush.bf16.msra.mxu0 0
        %2078 = vmatpush.bf16.msra.mxu0 0
        %2079 = vmatpush.bf16.msra.mxu0 0
        %2080 = vmatpush.bf16.msra.mxu0 0
        %2081 = vmatpush.bf16.msra.mxu0 %v2054
        %2082 = vmatpush.bf16.msra.mxu0 %v2053
        %2083 = vmatpush.bf16.msra.mxu0 %v2052
        %2084 = vmatpush.bf16.msra.mxu0 %v2051
        %2085 = vmatmul.bf16.gmra.mxu0 %v2059
        %v2086 = vpop.f32.mrf.mxu0
        %v2087 = vadd.f32 %v1993, %v2086
        %v2088 = vpop.f32.mrf.mxu0
        %v2089 = vadd.f32 %v1995, %v2088
        %2090 = vmatmul.bf16.gmra.mxu0 %v2061
        %v2091 = vpop.f32.mrf.mxu0
        %v2092 = vadd.f32 %v1998, %v2091
        %v2093 = vpop.f32.mrf.mxu0
        %v2094 = vadd.f32 %v2000, %v2093
        %2095 = vmatmul.bf16.gmra.mxu0 %v2063
        %v2096 = vpop.f32.mrf.mxu0
        %v2097 = vadd.f32 %v2003, %v2096
        %v2098 = vpop.f32.mrf.mxu0
        %v2099 = vadd.f32 %v2005, %v2098
        %2100 = vmatmul.bf16.gmra.mxu0 %v2065
        %v2101 = vpop.f32.mrf.mxu0
        %v2102 = vadd.f32 %v2008, %v2101
        %v2103 = vpop.f32.mrf.mxu0
        %v2104 = vadd.f32 %v2010, %v2103
        %2105 = vmatmul.bf16.gmra.mxu0 %v2067
        %v2106 = vpop.f32.mrf.mxu0
        %v2107 = vadd.f32 %v2013, %v2106
        %v2108 = vpop.f32.mrf.mxu0
        %v2109 = vadd.f32 %v2015, %v2108
        %2110 = vmatmul.bf16.gmra.mxu0 %v2069
        %v2111 = vpop.f32.mrf.mxu0
        %v2112 = vadd.f32 %v2018, %v2111
        %v2113 = vpop.f32.mrf.mxu0
        %v2114 = vadd.f32 %v2020, %v2113
        %2115 = vmatmul.bf16.gmra.mxu0 %v2071
        %v2116 = vpop.f32.mrf.mxu0
        %v2117 = vadd.f32 %v2023, %v2116
        %v2118 = vpop.f32.mrf.mxu0
        %v2119 = vadd.f32 %v2025, %v2118
        %2120 = vmatmul.bf16.gmra.mxu0 %v2073
        %v2121 = vpop.f32.mrf.mxu0
        %v2122 = vadd.f32 %v2028, %v2121
        %v2123 = vpop.f32.mrf.mxu0
        %v2124 = vadd.f32 %v2030, %v2123
        %2125 = vmatmul.bf16.gmra.mxu0 %v2075
        %v2126 = vpop.f32.mrf.mxu0
        %v2127 = vpop.f32.mrf.mxu0
        %2128 = vdwg.mxu0
        %vm2129 = vcmask 1046528
        %v2130 = vrot.slane %v1852, 1
        %v2131 = vrot.slane %v1853, 1
        %v2132 = vsel %vm2129, %v2130, %v2131
        %v2133 = vrot.slane %v1854, 1
        %v2134 = vsel %vm2129, %v2131, %v2133
        %v2135 = vrot.slane %v1855, 1
        %v2136 = vsel %vm2129, %v2133, %v2135
        %v2137 = vrot.slane %v1856, 1
        %v2138 = vsel %vm2129, %v2135, %v2137
        %v2139 = vrot.slane %v1857, 1
        %v2140 = vsel %vm2129, %v2137, %v2139
        %v2141 = vrot.slane %v1858, 1
        %v2142 = vsel %vm2129, %v2139, %v2141
        %v2143 = vrot.slane %v1859, 1
        %v2144 = vsel %vm2129, %v2141, %v2143
        %v2145 = vrot.slane %v1860, 1
        %v2146 = vsel %vm2129, %v2143, %v2145
        %v2155 = vunpack.c.l.b16 %v1810
        %v2156 = vunpack.c.l.b16 %v1811
        %v2157 = vunpack.c.l.b16 %v1812
        %v2158 = vunpack.c.l.b16 %v1813
        %v2159 = vunpack.c.l.b16 %v1814
        %v2160 = vunpack.c.l.b16 %v1815
        %v2161 = vunpack.c.l.b16 %v1816
        %v2162 = vunpack.c.l.b16 %v1817
        %v2163 = vpack.c.b16 %v2156, %v2155
        %v2164 = vpack.c.b16 %v2158, %v2157
        %v2165 = vpack.c.b16 %v2160, %v2159
        %v2166 = vpack.c.b16 %v2162, %v2161
        %v2172 = vsel %vm1009, %v2132, 0
        %v2175 = vsel %vm1009, %v2134, 0
        %v2178 = vsel %vm1009, %v2136, 0
        %v2181 = vsel %vm1009, %v2138, 0
        %v2184 = vsel %vm1009, %v2140, 0
        %v2187 = vsel %vm1009, %v2142, 0
        %v2190 = vsel %vm1009, %v2144, 0
        %v2193 = vsel %vm1009, %v2146, 0
        %v2196 = vsel %vm1009, %v2145, 0
        %2198 = vmatpush.bf16.msra.mxu0 0
        %2199 = vmatpush.bf16.msra.mxu0 0
        %2200 = vmatpush.bf16.msra.mxu0 0
        %2201 = vmatpush.bf16.msra.mxu0 0
        %2202 = vmatpush.bf16.msra.mxu0 %v2166
        %2203 = vmatpush.bf16.msra.mxu0 %v2165
        %2204 = vmatpush.bf16.msra.mxu0 %v2164
        %2205 = vmatpush.bf16.msra.mxu0 %v2163
        %2206 = vmatmul.bf16.gmra.mxu0 %v2172
        %v2207 = vpop.f32.mrf.mxu0
        %v2208 = vadd.f32 0.0, %v2207
        %v2209 = vpop.f32.mrf.mxu0
        %v2210 = vadd.f32 0.0, %v2209
        %2211 = vmatmul.bf16.gmra.mxu0 %v2175
        %v2212 = vpop.f32.mrf.mxu0
        %v2213 = vadd.f32 0.0, %v2212
        %v2214 = vpop.f32.mrf.mxu0
        %v2215 = vadd.f32 0.0, %v2214
        %2216 = vmatmul.bf16.gmra.mxu0 %v2178
        %v2217 = vpop.f32.mrf.mxu0
        %v2218 = vadd.f32 0.0, %v2217
        %v2219 = vpop.f32.mrf.mxu0
        %v2220 = vadd.f32 0.0, %v2219
        %2221 = vmatmul.bf16.gmra.mxu0 %v2181
        %v2222 = vpop.f32.mrf.mxu0
        %v2223 = vadd.f32 0.0, %v2222
        %v2224 = vpop.f32.mrf.mxu0
        %v2225 = vadd.f32 0.0, %v2224
        %2226 = vmatmul.bf16.gmra.mxu0 %v2184
        %v2227 = vpop.f32.mrf.mxu0
        %v2228 = vadd.f32 0.0, %v2227
        %v2229 = vpop.f32.mrf.mxu0
        %v2230 = vadd.f32 0.0, %v2229
        %2231 = vmatmul.bf16.gmra.mxu0 %v2187
        %v2232 = vpop.f32.mrf.mxu0
        %v2233 = vadd.f32 0.0, %v2232
        %v2234 = vpop.f32.mrf.mxu0
        %v2235 = vadd.f32 0.0, %v2234
        %2236 = vmatmul.bf16.gmra.mxu0 %v2190
        %v2237 = vpop.f32.mrf.mxu0
        %v2238 = vadd.f32 0.0, %v2237
        %v2239 = vpop.f32.mrf.mxu0
        %v2240 = vadd.f32 0.0, %v2239
        %2241 = vmatmul.bf16.gmra.mxu0 %v2193
        %v2242 = vpop.f32.mrf.mxu0
        %v2243 = vadd.f32 0.0, %v2242
        %v2244 = vpop.f32.mrf.mxu0
        %v2245 = vadd.f32 0.0, %v2244
        %2246 = vmatmul.bf16.gmra.mxu0 %v2196
        %v2247 = vpop.f32.mrf.mxu0
        %v2248 = vpop.f32.mrf.mxu0
        %2249 = vdwg.mxu0
        %v2250 = vadd.f32 %v2087, %v2208
        %v2251 = vadd.f32 %v2089, %v2210
        %v2252 = vadd.f32 %v2092, %v2213
        %v2253 = vadd.f32 %v2094, %v2215
        %v2254 = vadd.f32 %v2097, %v2218
        %v2255 = vadd.f32 %v2099, %v2220
        %v2256 = vadd.f32 %v2102, %v2223
        %v2257 = vadd.f32 %v2104, %v2225
        %v2258 = vadd.f32 %v2107, %v2228
        %v2259 = vadd.f32 %v2109, %v2230
        %v2260 = vadd.f32 %v2112, %v2233
        %v2261 = vadd.f32 %v2114, %v2235
        %v2262 = vadd.f32 %v2117, %v2238
        %v2263 = vadd.f32 %v2119, %v2240
        %v2264 = vadd.f32 %v2122, %v2243
        %v2265 = vadd.f32 %v2124, %v2245
        %v2266 = vld [vmem:[%s8] sm:$0x1]
        %v2268 = vperm.slane %v2266, 0
        %v2270 = vadd.f32 %v2250, %v2268
        %v2271 = vadd.f32 %v2251, %v2268
        %v2272 = vadd.f32 %v2252, %v2268
        %v2273 = vadd.f32 %v2253, %v2268
        %v2274 = vadd.f32 %v2254, %v2268
        %v2275 = vadd.f32 %v2255, %v2268
        %v2276 = vadd.f32 %v2256, %v2268
        %v2277 = vadd.f32 %v2257, %v2268
        %v2278 = vadd.f32 %v2258, %v2268
        %v2279 = vadd.f32 %v2259, %v2268
        %v2280 = vadd.f32 %v2260, %v2268
        %v2281 = vadd.f32 %v2261, %v2268
        %v2282 = vadd.f32 %v2262, %v2268
        %v2283 = vadd.f32 %v2263, %v2268
        %v2284 = vadd.f32 %v2264, %v2268
        %v2285 = vadd.f32 %v2265, %v2268
        %v2286 = vpack.c.bf16 %v2270, %v2270
        %v2287 = vpack.c.bf16 %v2271, %v2271
        %v2288 = vpack.c.bf16 %v2272, %v2272
        %v2289 = vpack.c.bf16 %v2273, %v2273
        %v2290 = vpack.c.bf16 %v2274, %v2274
        %v2291 = vpack.c.bf16 %v2275, %v2275
        %v2292 = vpack.c.bf16 %v2276, %v2276
        %v2293 = vpack.c.bf16 %v2277, %v2277
        %v2294 = vpack.c.bf16 %v2278, %v2278
        %v2295 = vpack.c.bf16 %v2279, %v2279
        %v2296 = vpack.c.bf16 %v2280, %v2280
        %v2297 = vpack.c.bf16 %v2281, %v2281
        %v2298 = vpack.c.bf16 %v2282, %v2282
        %v2299 = vpack.c.bf16 %v2283, %v2283
        %v2300 = vpack.c.bf16 %v2284, %v2284
        %v2301 = vpack.c.bf16 %v2285, %v2285
        %vm2302 = vcmask 519168
        %2303 = vst.msk [vmem:[%s402] sm:$0xf] %vm2302, %v2286
        %2304 = vst.msk [vmem:[%s402 + $0x4] sm:$0xf] %vm2302, %v2287
        %2305 = vst.msk [vmem:[%s402 + $0x8] sm:$0xf] %vm2302, %v2288
        %2306 = vst.msk [vmem:[%s402 + $0xc] sm:$0xf] %vm2302, %v2289
        %2307 = vst.msk [vmem:[%s402 + $0x10] sm:$0xf] %vm2302, %v2290
        %2308 = vst.msk [vmem:[%s402 + $0x14] sm:$0xf] %vm2302, %v2291
        %2309 = vst.msk [vmem:[%s402 + $0x18] sm:$0xf] %vm2302, %v2292
        %2310 = vst.msk [vmem:[%s402 + $0x1c] sm:$0xf] %vm2302, %v2293
        %2311 = vst.msk [vmem:[%s402 + $0x20] sm:$0xf] %vm2302, %v2294
        %2312 = vst.msk [vmem:[%s402 + $0x24] sm:$0xf] %vm2302, %v2295
        %2313 = vst.msk [vmem:[%s402 + $0x28] sm:$0xf] %vm2302, %v2296
        %2314 = vst.msk [vmem:[%s402 + $0x2c] sm:$0xf] %vm2302, %v2297
        %2315 = vst.msk [vmem:[%s402 + $0x30] sm:$0xf] %vm2302, %v2298
        %2316 = vst.msk [vmem:[%s402 + $0x34] sm:$0xf] %vm2302, %v2299
        %2317 = vst.msk [vmem:[%s402 + $0x38] sm:$0xf] %vm2302, %v2300
        %2318 = vst.msk [vmem:[%s402 + $0x3c] sm:$0xf] %vm2302, %v2301
        %s2319 = smul.u32 16, %s27
        %p2320 = scmp.lt.s32.totalorder %s26, 1
        %s2321 = scalar_select %p2320, %s26, 1
        %p2322 = scmp.lt.s32.totalorder %s2319, 15
        %s2323 = scalar_select %p2322, %s2319, 15
        %s2324 = smul.addr %s2321, 16
        %s2325 = sadd.s32 %s2323, %s2324
        %s2326 = smul.addr %s2325, 4
        %s2327 = scalar_lea.vmem %s9, %s2326
        // Predicated region
        $region65: #{_lambda_.2} parent=55 // pred_check
          %p2328 = pneg %p250
        $region66: #{_lambda_.2} parent=55 // pred_check_branch
          %2330 = sbr.rel (%p2328) target = $region68
        $region67: #{_lambda_.2} parent=55 // pred_region
          %s2331 = smul.u32 16, %s27
        $region68: #{_lambda_.2} parent=55 // pred_fallthru
          _
      $region56: #{_lambda_.2} parent=5 // pred_fallthru
        _
      %p2332 = scmp.le.s32.totalorder 2, %s17
      // Predicated region
      $region69: #{_lambda_.2} parent=5 // pred_check
        %p2333 = pneg %p2332
      $region70: #{_lambda_.2} parent=5 // pred_check_branch
        %2335 = sbr.rel (%p2333) target = $region72
      $region71: #{_lambda_.2} parent=5 // pred_region
        %s2336 = ssub.s32 %s17, 2
        // Predicated region
        $region73: #{_lambda_.2} parent=71 // pred_check
          %p2337 = pneg %p256
        $region74: #{_lambda_.2} parent=71 // pred_check_branch
          %2339 = sbr.rel (%p2337) target = $region76
        $region75: #{_lambda_.2} parent=71 // pred_region
          %s2340 = smul.u32 16, %s29
          %p2341 = scmp.lt.s32.totalorder %s28, 1
          %s2342 = scalar_select %p2341, %s28, 1
          %p2343 = scmp.lt.s32.totalorder %s2340, 15
          %s2344 = scalar_select %p2343, %s2340, 15
          %s2345 = smul.addr %s2342, 16
          %s2346 = sadd.s32 %s2344, %s2345
          %s2347 = smul.addr %s2346, 4
          %s2348 = scalar_lea.vmem %s9, %s2347
        $region76: #{_lambda_.2} parent=71 // pred_fallthru
          _
      $region72: #{_lambda_.2} parent=5 // pred_fallthru
        _
    $region6: #{_lambda_.2} parent=1 // loop_footer
      %s21 = sadd.s32 1, %s17
    $region7: #{_lambda_.2} parent=1 // loop_footer_branch
      %16 = sbr.rel target = $region3
    $region8: #{_lambda_.2} parent=1 // loop_exit
      _
    %2349 = vsyncpa [#allocation3], 1
    %s2350 = scalar_lea.sflag [#allocation3], 1
    %2351 = vsyncpa %s2350, 1
    %2352 = vsyncpa [#allocation5], 1

</llo_original>
